<compile_context>
chip_gen: v6e
topology: v6e:2x2x1
jax: 0.10.0
libtpu: 0.0.40
codegen_flags: <defaults>
</compile_context>

<pallas_src>
import functools

import jax
import jax.numpy as jnp
from jax import lax
from jax.experimental import pallas as pl
from jax.experimental.pallas import tpu as pltpu

LANE = 128                      # pad the hidden/lane axis to a multiple of this
MXU_DTYPE = jnp.bfloat16        # matmul operand dtype (accumulation stays f32)


def _round_up(n, m):
    return ((n + m - 1) // m) * m


# ----------------------------- in-kernel helpers -----------------------------
def _leaky(x, slope=0.01):
    return jnp.where(x > 0, x, slope * x)


def _elu(x):
    # ELU(alpha=1); clamp the exp argument so the unselected branch stays finite.
    return jnp.where(x > 0, x, jnp.exp(jnp.minimum(x, 0.0)) - 1.0)


def _mm(a, b):
    # MXU matmul: bf16 operands, f32 accumulation.
    return jnp.dot(a.astype(MXU_DTYPE), b.astype(MXU_DTYPE),
                   preferred_element_type=jnp.float32)


def _masked_softmax(logits, mask):
    # softmax over the last (source) axis restricted to mask > 0 (f32 throughout).
    neg = jnp.float32(-1e30)
    l = jnp.where(mask > 0, logits, neg)
    m = jnp.max(l, axis=-1, keepdims=True)
    e = jnp.where(mask > 0, jnp.exp(l - m), 0.0)
    s = jnp.sum(e, axis=-1, keepdims=True)
    return e * pl.reciprocal(jnp.maximum(s, jnp.float32(1e-16)), approx=True)


def _gru_relu(xin, hid, wih_t, whh_t, bih, bhh, hp):
    # torch.nn.GRUCell fused with the trailing relu.
    # Six small matmuls fused into two [*, H]@[H, 3H] matmuls.
    gi = _mm(xin, wih_t) + bih                     # [*, 3Hp]
    gh = _mm(hid, whh_t) + bhh                     # [*, 3Hp]
    r = jax.nn.sigmoid(gi[:, 0:hp] + gh[:, 0:hp])
    z = jax.nn.sigmoid(gi[:, hp:2 * hp] + gh[:, hp:2 * hp])
    nc = jnp.tanh(gi[:, 2 * hp:3 * hp] + r * gh[:, 2 * hp:3 * hp])
    hnew = (1.0 - z) * nc + z * hid
    return jnp.maximum(hnew, 0.0)


def _gat_conv_elu(xs, xd, adj, w_t, asrc_row, adst_row, bias):
    # PyG GATConv (heads=1, negative_slope=0.01, add_self_loops=False) + trailing elu.
    # att_src / att_dst pre-folded into the projection -> no in-kernel transpose and
    # one fewer projection matmul. Logit math in f32.
    s = _mm(xs, w_t)                                               # [N_src, Hp]
    a_s = lax.dot_general(asrc_row, xs,
                          dimension_numbers=(((1,), (1,)), ((), ())),
                          preferred_element_type=jnp.float32)      # [1, N_src]
    a_d = jnp.sum(xd * adst_row, axis=-1, keepdims=True)           # [N_dst, 1]
    p = _masked_softmax(_leaky(a_d + a_s), adj)                    # [N_dst, N_src]
    return _elu(_mm(p, s) + bias)


# --------------------------------- fused kernel -------------------------------
def _attentive_fp_kernel(
    # graph inputs
    x0_ref, eflat_ref, adj_ref, onehot_ref,
    # lin1
    l1w_ref, l1b_ref,
    # GATEConv
    gw1x_ref, gw1e_ref, gw2_ref, gattl_ref, gattr_ref, gbias_ref,
    # first GRU
    g0wih_ref, g0whh_ref, g0bih_ref, g0bhh_ref,
    # stacked atom GATConvs / GRUs
    acw_ref, acas_ref, acad_ref, acb_ref,
    agwih_ref, agwhh_ref, agbih_ref, agbhh_ref,
    # mol GATConv
    mcw_ref, mcas_ref, mcad_ref, mcb_ref,
    # mol GRU
    mgwih_ref, mgwhh_ref, mgbih_ref, mgbhh_ref,
    # lin2
    l2w_ref, l2b_ref,
    # output
    o_ref,
    *, hp, num_atom_layers, num_timesteps):
    n = x0_ref.shape[0]
    adj = adj_ref[...]
    onehot = onehot_ref[...]

    # ---- x = leaky_relu(lin1(x)) ----
    x = _leaky(_mm(x0_ref[...], l1w_ref[...]) + l1b_ref[...])            # [N, Hp]

    # ---- h = elu(GATEConv(x, edge_attr)) ----
    xp = _mm(x, gw1x_ref[...])                                           # [N_src, Hp]
    ep = _mm(eflat_ref[...], gw1e_ref[...]).reshape(n, n, hp)            # [N_dst, N_src, Hp]
    z = _leaky(xp[None, :, :] + ep)                                      # lin1(cat([x_j, e_ij]))
    a_l = jnp.sum(z * gattl_ref[...].reshape(1, 1, hp), axis=-1)         # [N_dst, N_src]
    a_r = jnp.sum(x * gattr_ref[...], axis=-1, keepdims=True)            # [N_dst, 1]
    p = _masked_softmax(_leaky(a_l + a_r), adj)
    msg = _mm(x, gw2_ref[...])                                           # lin2(x_j)
    h = _elu(_mm(p, msg) + gbias_ref[...])                               # [N_dst, Hp]

    # ---- x = relu(GRU(h, x)) ----
    x = _gru_relu(h, x, g0wih_ref[...], g0whh_ref[...],
                  g0bih_ref[...], g0bhh_ref[...], hp)

    # ---- atom conv / GRU layers (in-kernel loop, state stays in VMEM) ----
    if num_atom_layers > 0:
        def atom_body(l, xc):
            hh = _gat_conv_elu(xc, xc, adj, acw_ref[l], acas_ref[l],
                               acad_ref[l], acb_ref[l])
            return _gru_relu(hh, xc, agwih_ref[l], agwhh_ref[l],
                             agbih_ref[l], agbhh_ref[l], hp)
        x = lax.fori_loop(0, num_atom_layers, atom_body, x)

    # ---- out = relu(global_add_pool(x, batch)) ----
    out = jnp.maximum(_mm(onehot, x), 0.0)                               # [G, Hp]

    # ---- molecule-level readout timesteps ----
    mcw = mcw_ref[...]
    mcas = mcas_ref[...]
    mcad = mcad_ref[...]
    mcb = mcb_ref[...]
    mgwih = mgwih_ref[...]
    mgwhh = mgwhh_ref[...]
    mgbih = mgbih_ref[...]
    mgbhh = mgbhh_ref[...]

    def ts_body(t, outc):
        hh = _gat_conv_elu(x, outc, onehot, mcw, mcas, mcad, mcb)
        return _gru_relu(hh, outc, mgwih, mgwhh, mgbih, mgbhh, hp)

    if num_timesteps > 0:
        out = lax.fori_loop(0, num_timesteps, ts_body, out)

    # ---- lin2(out) ----
    o_ref[...] = _mm(out, l2w_ref[...]) + l2b_ref[...]


# ------------------------------ parameter setup --------------------------------
def _glorot(key, shape):
    fan_out, fan_in = shape[-2], shape[-1]
    lim = (6.0 / (fan_in + fan_out)) ** 0.5
    return jax.random.uniform(key, shape, minval=-lim, maxval=lim, dtype=jnp.float32)


def _uniform(key, shape, k):
    return jax.random.uniform(key, shape, minval=-k, maxval=k, dtype=jnp.float32)


def _init_gru(key, hidden):
    k = 1.0 / (hidden ** 0.5)
    k1, k2, k3, k4 = jax.random.split(key, 4)
    return dict(
        wih=_uniform(k1, (3 * hidden, hidden), k),   # torch layout [3H, H] (r, z, n)
        whh=_uniform(k2, (3 * hidden, hidden), k),
        bih=_uniform(k3, (3 * hidden,), k),
        bhh=_uniform(k4, (3 * hidden,), k),
    )


def _init_gat(key, hidden):
    k1, k2, k3 = jax.random.split(key, 3)
    return dict(
        w=_glorot(k1, (hidden, hidden)),            # [out, in]
        att_src=_glorot(k2, (1, hidden)),
        att_dst=_glorot(k3, (1, hidden)),
        bias=jnp.zeros((hidden,), jnp.float32),
    )


def init_attentive_fp_params(key, in_channels, hidden, out_channels, edge_dim,
                             num_layers, num_timesteps):
    keys = jax.random.split(key, 10)
    params = dict(
        lin1_w=_glorot(keys[0], (hidden, in_channels)),
        lin1_b=jnp.zeros((hidden,), jnp.float32),
        gate=dict(
            # GATEConv.lin1 maps cat([x_j (hidden), e_ij (edge_dim)]) -> hidden
            w1=_glorot(keys[1], (hidden, hidden + edge_dim)),
            w2=_glorot(keys[2], (hidden, hidden)),
            att_l=_glorot(keys[3], (1, hidden)),
            att_r=_glorot(keys[4], (1, hidden)),
            bias=jnp.zeros((hidden,), jnp.float32),
        ),
        gru=_init_gru(keys[5], hidden),
        atom_convs=[],
        atom_grus=[],
        mol_conv=_init_gat(keys[6], hidden),
        mol_gru=_init_gru(keys[7], hidden),
        lin2_w=_glorot(keys[8], (out_channels, hidden)),
        lin2_b=jnp.zeros((out_channels,), jnp.float32),
        num_timesteps=num_timesteps,
    )
    layer_keys = jax.random.split(keys[9], max(1, 2 * (num_layers - 1)))
    for i in range(num_layers - 1):
        params["atom_convs"].append(_init_gat(layer_keys[2 * i], hidden))
        params["atom_grus"].append(_init_gru(layer_keys[2 * i + 1], hidden))
    return params


# --------------------- wrapper-side layout plumbing (packing) -------------------
def _pad2(a, rows=None, cols=None):
    r = a.shape[0] if rows is None else rows
    c = a.shape[1] if cols is None else cols
    return jnp.pad(a, ((0, r - a.shape[0]), (0, c - a.shape[1])))


def _pack_gru(gp, h, hp):
    def pw(w):  # [3H, H] torch layout -> [Hp, 3Hp] pre-transposed, per-gate padded
        blocks = [_pad2(w[g * h:(g + 1) * h, :].T, hp, hp) for g in range(3)]
        return jnp.concatenate(blocks, axis=1).astype(MXU_DTYPE)

    def pb(b):  # [3H] -> [1, 3Hp]
        blocks = [_pad2(b[g * h:(g + 1) * h][None, :], 1, hp) for g in range(3)]
        return jnp.concatenate(blocks, axis=1)

    return pw(gp["wih"]), pw(gp["whh"]), pb(gp["bih"]), pb(gp["bhh"])


def _pack_gat(gp, hp):
    w = gp["w"]                                              # [out, in]
    w_t = _pad2(w.T, hp, hp).astype(MXU_DTYPE)               # [Hp_in, Hp_out]
    asrc = _pad2(gp["att_src"] @ w, 1, hp)                   # att folded into projection
    adst = _pad2(gp["att_dst"] @ w, 1, hp)
    bias = _pad2(gp["bias"][None, :], 1, hp)
    return w_t, asrc, adst, bias


def _pack_params(params, hidden, hp):
    h = hidden
    l1w = _pad2(params["lin1_w"].T, None, hp).astype(MXU_DTYPE)     # [Cin, Hp]
    l1b = _pad2(params["lin1_b"][None, :], 1, hp)

    g = params["gate"]
    gw1x = _pad2(g["w1"][:, :h].T, hp, hp).astype(MXU_DTYPE)        # node part of lin1
    gw1e = _pad2(g["w1"][:, h:].T, None, hp).astype(MXU_DTYPE)      # edge part of lin1
    gw2 = _pad2(g["w2"].T, hp, hp).astype(MXU_DTYPE)
    gattl = _pad2(g["att_l"], 1, hp)
    gattr = _pad2(g["att_r"], 1, hp)
    gbias = _pad2(g["bias"][None, :], 1, hp)

    gru0 = _pack_gru(params["gru"], h, hp)

    num_atom = len(params["atom_convs"])
    if num_atom > 0:
        acs = [_pack_gat(p, hp) for p in params["atom_convs"]]
        ags = [_pack_gru(p, h, hp) for p in params["atom_grus"]]
        ac_stack = [jnp.stack([a[i] for a in acs]) for i in range(4)]
        ag_stack = [jnp.stack([a[i] for a in ags]) for i in range(4)]
    else:  # dummies, never read (num_atom_layers == 0 skips the loop)
        ac_stack = [jnp.zeros((1, hp, hp), MXU_DTYPE),
                    jnp.zeros((1, 1, hp), jnp.float32),
                    jnp.zeros((1, 1, hp), jnp.float32),
                    jnp.zeros((1, 1, hp), jnp.float32)]
        ag_stack = [jnp.zeros((1, hp, 3 * hp), MXU_DTYPE),
                    jnp.zeros((1, hp, 3 * hp), MXU_DTYPE),
                    jnp.zeros((1, 1, 3 * hp), jnp.float32),
                    jnp.zeros((1, 1, 3 * hp), jnp.float32)]

    mc = _pack_gat(params["mol_conv"], hp)
    mg = _pack_gru(params["mol_gru"], h, hp)

    l2w = _pad2(params["lin2_w"].T, hp, None).astype(MXU_DTYPE)     # [Hp, Cout]
    l2b = params["lin2_b"][None, :]

    ops = [l1w, l1b, gw1x, gw1e, gw2, gattl, gattr, gbias, *gru0,
           *ac_stack, *ag_stack, *mc, *mg, l2w, l2b]
    return ops, num_atom


# --------------------------------- forward ------------------------------------
def attentive_fp_forward(params, x, edge_attr_dense, adj, onehot):
    n, _ = x.shape
    hidden = params["lin1_w"].shape[0]
    num_graphs = onehot.shape[0]
    out_channels = params["lin2_w"].shape[0]
    edge_dim = edge_attr_dense.shape[-1]
    hp = _round_up(hidden, LANE)

    ops, num_atom = _pack_params(params, hidden, hp)
    eflat = edge_attr_dense.reshape(n * n, edge_dim)     # lane-dense edge attrs

    inputs = [x, eflat, adj, onehot] + ops
    kernel = functools.partial(
        _attentive_fp_kernel, hp=hp, num_atom_layers=num_atom,
        num_timesteps=params["num_timesteps"])

    return pl.pallas_call(
        kernel,
        out_shape=jax.ShapeDtypeStruct((num_graphs, out_channels), jnp.float32),
        in_specs=[pl.BlockSpec(memory_space=pltpu.MemorySpace.VMEM)] * len(inputs),
        out_specs=pl.BlockSpec(memory_space=pltpu.MemorySpace.VMEM),
        compiler_params=pltpu.CompilerParams(vmem_limit_bytes=32 * 1024 * 1024),
    )(*inputs)


# ----------------------------------- main --------------------------------------
if __name__ == "__main__":
    IN_CHANNELS = 16
    HIDDEN = 32
    OUT_CHANNELS = 8
    EDGE_DIM = 8
    NUM_LAYERS = 2
    NUM_TIMESTEPS = 2
    N_NODES = 8
    NUM_GRAPHS = 2

    key = jax.random.PRNGKey(0)
    k_param, k_x, k_e = jax.random.split(key, 3)

    params = init_attentive_fp_params(
        k_param, IN_CHANNELS, HIDDEN, OUT_CHANNELS, EDGE_DIM,
        NUM_LAYERS, NUM_TIMESTEPS)

    # two graphs of 4 nodes each, fully connected within each graph (no self loops)
    batch = jnp.array([0, 0, 0, 0, 1, 1, 1, 1], dtype=jnp.int32)
    same_graph = batch[:, None] == batch[None, :]
    adj = (same_graph & ~jnp.eye(N_NODES, dtype=bool)).astype(jnp.float32)            # [N_dst, N_src]
    onehot = (batch[None, :] == jnp.arange(NUM_GRAPHS)[:, None]).astype(jnp.float32)  # [G, N]

    x = jax.random.normal(k_x, (N_NODES, IN_CHANNELS), dtype=jnp.float32)
    edge_attr_dense = jax.random.normal(k_e, (N_NODES, N_NODES, EDGE_DIM),
                                        dtype=jnp.float32)

    result = attentive_fp_forward(params, x, edge_attr_dense, adj, onehot)
    result = jax.block_until_ready(result)

    assert result.shape == (NUM_GRAPHS, OUT_CHANNELS)
    assert bool(jnp.all(jnp.isfinite(result)))
    print("KERNEL_OK")
</pallas_src>

<mosaic_0001>
module attributes {stable_mosaic.version = 11 : i64} {
  func.func @_attentive_fp_kernel(%arg0: memref<8x16xf32, #tpu.memory_space<vmem>>, %arg1: memref<64x8xf32, #tpu.memory_space<vmem>>, %arg2: memref<8x8xf32, #tpu.memory_space<vmem>>, %arg3: memref<2x8xf32, #tpu.memory_space<vmem>>, %arg4: memref<16x128xbf16, #tpu.memory_space<vmem>>, %arg5: memref<1x128xf32, #tpu.memory_space<vmem>>, %arg6: memref<128x128xbf16, #tpu.memory_space<vmem>>, %arg7: memref<8x128xbf16, #tpu.memory_space<vmem>>, %arg8: memref<128x128xbf16, #tpu.memory_space<vmem>>, %arg9: memref<1x128xf32, #tpu.memory_space<vmem>>, %arg10: memref<1x128xf32, #tpu.memory_space<vmem>>, %arg11: memref<1x128xf32, #tpu.memory_space<vmem>>, %arg12: memref<128x384xbf16, #tpu.memory_space<vmem>>, %arg13: memref<128x384xbf16, #tpu.memory_space<vmem>>, %arg14: memref<1x384xf32, #tpu.memory_space<vmem>>, %arg15: memref<1x384xf32, #tpu.memory_space<vmem>>, %arg16: memref<1x128x128xbf16, #tpu.memory_space<vmem>>, %arg17: memref<1x1x128xf32, #tpu.memory_space<vmem>>, %arg18: memref<1x1x128xf32, #tpu.memory_space<vmem>>, %arg19: memref<1x1x128xf32, #tpu.memory_space<vmem>>, %arg20: memref<1x128x384xbf16, #tpu.memory_space<vmem>>, %arg21: memref<1x128x384xbf16, #tpu.memory_space<vmem>>, %arg22: memref<1x1x384xf32, #tpu.memory_space<vmem>>, %arg23: memref<1x1x384xf32, #tpu.memory_space<vmem>>, %arg24: memref<128x128xbf16, #tpu.memory_space<vmem>>, %arg25: memref<1x128xf32, #tpu.memory_space<vmem>>, %arg26: memref<1x128xf32, #tpu.memory_space<vmem>>, %arg27: memref<1x128xf32, #tpu.memory_space<vmem>>, %arg28: memref<128x384xbf16, #tpu.memory_space<vmem>>, %arg29: memref<128x384xbf16, #tpu.memory_space<vmem>>, %arg30: memref<1x384xf32, #tpu.memory_space<vmem>>, %arg31: memref<1x384xf32, #tpu.memory_space<vmem>>, %arg32: memref<128x8xbf16, #tpu.memory_space<vmem>>, %arg33: memref<1x8xf32, #tpu.memory_space<vmem>>, %arg34: memref<2x8xf32, #tpu.memory_space<vmem>>) attributes {dimension_semantics = [], scalar_prefetch = 0 : i64, scratch_operands = 0 : i64, tpu.core_type = #tpu.core_type<tc>} {
    %c0 = arith.constant 0 : index
    %c0_0 = arith.constant 0 : index
    %0 = vector.load %arg2[%c0, %c0_0] : memref<8x8xf32, #tpu.memory_space<vmem>>, vector<8x8xf32>
    %c0_1 = arith.constant 0 : index
    %c0_2 = arith.constant 0 : index
    %1 = vector.load %arg3[%c0_1, %c0_2] : memref<2x8xf32, #tpu.memory_space<vmem>>, vector<2x8xf32>
    %c0_3 = arith.constant 0 : index
    %c0_4 = arith.constant 0 : index
    %2 = vector.load %arg0[%c0_3, %c0_4] : memref<8x16xf32, #tpu.memory_space<vmem>>, vector<8x16xf32>
    %c0_5 = arith.constant 0 : index
    %c0_6 = arith.constant 0 : index
    %3 = vector.load %arg4[%c0_5, %c0_6] : memref<16x128xbf16, #tpu.memory_space<vmem>>, vector<16x128xbf16>
    %4 = arith.truncf %2 : vector<8x16xf32> to vector<8x16xbf16>
    %cst = arith.constant dense<0.000000e+00> : vector<8x128xf32>
    %5 = tpu.matmul %4, %3, %cst {dimension_numbers = #tpu.dot_dimension_numbers<[1], [0], [0], [1], [0, 0, 1, 1], [], []>} : vector<8x16xbf16>, vector<16x128xbf16>, vector<8x128xf32> -> vector<8x128xf32>
    %c0_7 = arith.constant 0 : index
    %c0_8 = arith.constant 0 : index
    %6 = vector.load %arg5[%c0_7, %c0_8] : memref<1x128xf32, #tpu.memory_space<vmem>>, vector<1x128xf32>
    %7 = vector.broadcast %6 : vector<1x128xf32> to vector<8x128xf32>
    %8 = arith.addf %5, %7 : vector<8x128xf32>
    %cst_9 = arith.constant 0.000000e+00 : f32
    %9 = vector.broadcast %cst_9 : f32 to vector<8x128xf32>
    %10 = arith.cmpf ogt, %8, %9 : vector<8x128xf32>
    %cst_10 = arith.constant 0.00999999977 : f32
    %11 = vector.broadcast %cst_10 : f32 to vector<8x128xf32>
    %12 = arith.mulf %11, %8 : vector<8x128xf32>
    %13 = arith.select %10, %8, %12 : vector<8x128xi1>, vector<8x128xf32>
    %c0_11 = arith.constant 0 : index
    %c0_12 = arith.constant 0 : index
    %14 = vector.load %arg6[%c0_11, %c0_12] : memref<128x128xbf16, #tpu.memory_space<vmem>>, vector<128x128xbf16>
    %15 = arith.truncf %13 : vector<8x128xf32> to vector<8x128xbf16>
    %cst_13 = arith.constant dense<0.000000e+00> : vector<8x128xf32>
    %16 = tpu.matmul %15, %14, %cst_13 {dimension_numbers = #tpu.dot_dimension_numbers<[1], [0], [0], [1], [0, 0, 1, 1], [], []>} : vector<8x128xbf16>, vector<128x128xbf16>, vector<8x128xf32> -> vector<8x128xf32>
    %c0_14 = arith.constant 0 : index
    %c0_15 = arith.constant 0 : index
    %17 = vector.load %arg1[%c0_14, %c0_15] : memref<64x8xf32, #tpu.memory_space<vmem>>, vector<64x8xf32>
    %c0_16 = arith.constant 0 : index
    %c0_17 = arith.constant 0 : index
    %18 = vector.load %arg7[%c0_16, %c0_17] : memref<8x128xbf16, #tpu.memory_space<vmem>>, vector<8x128xbf16>
    %19 = arith.truncf %17 : vector<64x8xf32> to vector<64x8xbf16>
    %cst_18 = arith.constant dense<0.000000e+00> : vector<64x128xf32>
    %20 = tpu.matmul %19, %18, %cst_18 {dimension_numbers = #tpu.dot_dimension_numbers<[1], [0], [0], [1], [0, 0, 1, 1], [], []>} : vector<64x8xbf16>, vector<8x128xbf16>, vector<64x128xf32> -> vector<64x128xf32>
    %21 = vector.shape_cast %20 : vector<64x128xf32> to vector<8x8x128xf32>
    %22 = vector.shape_cast %16 : vector<8x128xf32> to vector<1x8x128xf32>
    %23 = vector.broadcast %22 : vector<1x8x128xf32> to vector<8x8x128xf32>
    %24 = arith.addf %23, %21 : vector<8x8x128xf32>
    %cst_19 = arith.constant 0.000000e+00 : f32
    %25 = vector.broadcast %cst_19 : f32 to vector<8x8x128xf32>
    %26 = arith.cmpf ogt, %24, %25 : vector<8x8x128xf32>
    %cst_20 = arith.constant 0.00999999977 : f32
    %27 = vector.broadcast %cst_20 : f32 to vector<8x8x128xf32>
    %28 = arith.mulf %27, %24 : vector<8x8x128xf32>
    %29 = arith.select %26, %24, %28 : vector<8x8x128xi1>, vector<8x8x128xf32>
    %c0_21 = arith.constant 0 : index
    %c0_22 = arith.constant 0 : index
    %30 = vector.load %arg9[%c0_21, %c0_22] : memref<1x128xf32, #tpu.memory_space<vmem>>, vector<1x128xf32>
    %31 = vector.shape_cast %30 : vector<1x128xf32> to vector<1x1x128xf32>
    %32 = vector.broadcast %31 : vector<1x1x128xf32> to vector<8x8x128xf32>
    %33 = arith.mulf %29, %32 : vector<8x8x128xf32>
    %cst_23 = arith.constant dense<0.000000e+00> : vector<8x8xf32>
    %34 = vector.multi_reduction <add>, %33, %cst_23 [2] : vector<8x8x128xf32> to vector<8x8xf32>
    %c0_24 = arith.constant 0 : index
    %c0_25 = arith.constant 0 : index
    %35 = vector.load %arg10[%c0_24, %c0_25] : memref<1x128xf32, #tpu.memory_space<vmem>>, vector<1x128xf32>
    %36 = vector.broadcast %35 : vector<1x128xf32> to vector<8x128xf32>
    %37 = arith.mulf %13, %36 : vector<8x128xf32>
    %cst_26 = arith.constant dense<0.000000e+00> : vector<8xf32>
    %38 = vector.multi_reduction <add>, %37, %cst_26 [1] : vector<8x128xf32> to vector<8xf32>
    %39 = vector.shape_cast %38 : vector<8xf32> to vector<8x1xf32>
    %40 = vector.broadcast %39 : vector<8x1xf32> to vector<8x8xf32>
    %41 = arith.addf %34, %40 : vector<8x8xf32>
    %cst_27 = arith.constant 0.000000e+00 : f32
    %42 = vector.broadcast %cst_27 : f32 to vector<8x8xf32>
    %43 = arith.cmpf ogt, %41, %42 : vector<8x8xf32>
    %cst_28 = arith.constant 0.00999999977 : f32
    %44 = vector.broadcast %cst_28 : f32 to vector<8x8xf32>
    %45 = arith.mulf %44, %41 : vector<8x8xf32>
    %46 = arith.select %43, %41, %45 : vector<8x8xi1>, vector<8x8xf32>
    %cst_29 = arith.constant 0.000000e+00 : f32
    %47 = vector.broadcast %cst_29 : f32 to vector<8x8xf32>
    %48 = arith.cmpf ogt, %0, %47 : vector<8x8xf32>
    %cst_30 = arith.constant -1.000000e+30 : f32
    %49 = vector.broadcast %cst_30 : f32 to vector<8x8xf32>
    %50 = arith.select %48, %46, %49 : vector<8x8xi1>, vector<8x8xf32>
    %cst_31 = arith.constant dense<0xFF800000> : vector<8xf32>
    %51 = vector.multi_reduction <maximumf>, %50, %cst_31 [1] : vector<8x8xf32> to vector<8xf32>
    %52 = vector.shape_cast %51 : vector<8xf32> to vector<8x1xf32>
    %cst_32 = arith.constant 0.000000e+00 : f32
    %53 = vector.broadcast %cst_32 : f32 to vector<8x8xf32>
    %54 = arith.cmpf ogt, %0, %53 : vector<8x8xf32>
    %55 = vector.broadcast %52 : vector<8x1xf32> to vector<8x8xf32>
    %56 = arith.subf %50, %55 : vector<8x8xf32>
    %57 = math.exp %56 : vector<8x8xf32>
    %cst_33 = arith.constant 0.000000e+00 : f32
    %58 = vector.broadcast %cst_33 : f32 to vector<8x8xf32>
    %59 = arith.select %54, %57, %58 : vector<8x8xi1>, vector<8x8xf32>
    %cst_34 = arith.constant dense<0.000000e+00> : vector<8xf32>
    %60 = vector.multi_reduction <add>, %59, %cst_34 [1] : vector<8x8xf32> to vector<8xf32>
    %61 = vector.shape_cast %60 : vector<8xf32> to vector<8x1xf32>
    %cst_35 = arith.constant 1.000000e-16 : f32
    %62 = vector.broadcast %cst_35 : f32 to vector<8x1xf32>
    %63 = arith.maximumf %61, %62 : vector<8x1xf32>
    %64 = tpu.reciprocal %63 {approx = true} : vector<8x1xf32> -> vector<8x1xf32>
    %65 = vector.broadcast %64 : vector<8x1xf32> to vector<8x8xf32>
    %66 = arith.mulf %59, %65 : vector<8x8xf32>
    %c0_36 = arith.constant 0 : index
    %c0_37 = arith.constant 0 : index
    %67 = vector.load %arg8[%c0_36, %c0_37] : memref<128x128xbf16, #tpu.memory_space<vmem>>, vector<128x128xbf16>
    %68 = arith.truncf %13 : vector<8x128xf32> to vector<8x128xbf16>
    %cst_38 = arith.constant dense<0.000000e+00> : vector<8x128xf32>
    %69 = tpu.matmul %68, %67, %cst_38 {dimension_numbers = #tpu.dot_dimension_numbers<[1], [0], [0], [1], [0, 0, 1, 1], [], []>} : vector<8x128xbf16>, vector<128x128xbf16>, vector<8x128xf32> -> vector<8x128xf32>
    %70 = arith.truncf %66 : vector<8x8xf32> to vector<8x8xbf16>
    %71 = arith.truncf %69 : vector<8x128xf32> to vector<8x128xbf16>
    %cst_39 = arith.constant dense<0.000000e+00> : vector<8x128xf32>
    %72 = tpu.matmul %70, %71, %cst_39 {dimension_numbers = #tpu.dot_dimension_numbers<[1], [0], [0], [1], [0, 0, 1, 1], [], []>} : vector<8x8xbf16>, vector<8x128xbf16>, vector<8x128xf32> -> vector<8x128xf32>
    %c0_40 = arith.constant 0 : index
    %c0_41 = arith.constant 0 : index
    %73 = vector.load %arg11[%c0_40, %c0_41] : memref<1x128xf32, #tpu.memory_space<vmem>>, vector<1x128xf32>
    %74 = vector.broadcast %73 : vector<1x128xf32> to vector<8x128xf32>
    %75 = arith.addf %72, %74 : vector<8x128xf32>
    %cst_42 = arith.constant 0.000000e+00 : f32
    %76 = vector.broadcast %cst_42 : f32 to vector<8x128xf32>
    %77 = arith.cmpf ogt, %75, %76 : vector<8x128xf32>
    %cst_43 = arith.constant 0.000000e+00 : f32
    %78 = vector.broadcast %cst_43 : f32 to vector<8x128xf32>
    %79 = arith.minimumf %75, %78 : vector<8x128xf32>
    %80 = math.exp %79 : vector<8x128xf32>
    %cst_44 = arith.constant 1.000000e+00 : f32
    %81 = vector.broadcast %cst_44 : f32 to vector<8x128xf32>
    %82 = arith.subf %80, %81 : vector<8x128xf32>
    %83 = arith.select %77, %75, %82 : vector<8x128xi1>, vector<8x128xf32>
    %c0_45 = arith.constant 0 : index
    %c0_46 = arith.constant 0 : index
    %84 = vector.load %arg12[%c0_45, %c0_46] : memref<128x384xbf16, #tpu.memory_space<vmem>>, vector<128x384xbf16>
    %c0_47 = arith.constant 0 : index
    %c0_48 = arith.constant 0 : index
    %85 = vector.load %arg13[%c0_47, %c0_48] : memref<128x384xbf16, #tpu.memory_space<vmem>>, vector<128x384xbf16>
    %c0_49 = arith.constant 0 : index
    %c0_50 = arith.constant 0 : index
    %86 = vector.load %arg14[%c0_49, %c0_50] : memref<1x384xf32, #tpu.memory_space<vmem>>, vector<1x384xf32>
    %c0_51 = arith.constant 0 : index
    %c0_52 = arith.constant 0 : index
    %87 = vector.load %arg15[%c0_51, %c0_52] : memref<1x384xf32, #tpu.memory_space<vmem>>, vector<1x384xf32>
    %88 = arith.truncf %83 : vector<8x128xf32> to vector<8x128xbf16>
    %cst_53 = arith.constant dense<0.000000e+00> : vector<8x384xf32>
    %89 = tpu.matmul %88, %84, %cst_53 {dimension_numbers = #tpu.dot_dimension_numbers<[1], [0], [0], [1], [0, 0, 1, 1], [], []>} : vector<8x128xbf16>, vector<128x384xbf16>, vector<8x384xf32> -> vector<8x384xf32>
    %90 = vector.broadcast %86 : vector<1x384xf32> to vector<8x384xf32>
    %91 = arith.addf %89, %90 : vector<8x384xf32>
    %92 = arith.truncf %13 : vector<8x128xf32> to vector<8x128xbf16>
    %cst_54 = arith.constant dense<0.000000e+00> : vector<8x384xf32>
    %93 = tpu.matmul %92, %85, %cst_54 {dimension_numbers = #tpu.dot_dimension_numbers<[1], [0], [0], [1], [0, 0, 1, 1], [], []>} : vector<8x128xbf16>, vector<128x384xbf16>, vector<8x384xf32> -> vector<8x384xf32>
    %94 = vector.broadcast %87 : vector<1x384xf32> to vector<8x384xf32>
    %95 = arith.addf %93, %94 : vector<8x384xf32>
    %96 = vector.extract_strided_slice %91 {offsets = [0, 0], sizes = [8, 128], strides = [1, 1]} : vector<8x384xf32> to vector<8x128xf32>
    %97 = vector.extract_strided_slice %95 {offsets = [0, 0], sizes = [8, 128], strides = [1, 1]} : vector<8x384xf32> to vector<8x128xf32>
    %98 = arith.addf %96, %97 : vector<8x128xf32>
    %99 = arith.negf %98 : vector<8x128xf32>
    %100 = math.exp %99 : vector<8x128xf32>
    %cst_55 = arith.constant 1.000000e+00 : f32
    %101 = vector.broadcast %cst_55 : f32 to vector<8x128xf32>
    %102 = arith.addf %101, %100 : vector<8x128xf32>
    %103 = arith.divf %101, %102 : vector<8x128xf32>
    %104 = vector.extract_strided_slice %91 {offsets = [0, 128], sizes = [8, 128], strides = [1, 1]} : vector<8x384xf32> to vector<8x128xf32>
    %105 = vector.extract_strided_slice %95 {offsets = [0, 128], sizes = [8, 128], strides = [1, 1]} : vector<8x384xf32> to vector<8x128xf32>
    %106 = arith.addf %104, %105 : vector<8x128xf32>
    %107 = arith.negf %106 : vector<8x128xf32>
    %108 = math.exp %107 : vector<8x128xf32>
    %cst_56 = arith.constant 1.000000e+00 : f32
    %109 = vector.broadcast %cst_56 : f32 to vector<8x128xf32>
    %110 = arith.addf %109, %108 : vector<8x128xf32>
    %111 = arith.divf %109, %110 : vector<8x128xf32>
    %112 = vector.extract_strided_slice %91 {offsets = [0, 256], sizes = [8, 128], strides = [1, 1]} : vector<8x384xf32> to vector<8x128xf32>
    %113 = vector.extract_strided_slice %95 {offsets = [0, 256], sizes = [8, 128], strides = [1, 1]} : vector<8x384xf32> to vector<8x128xf32>
    %114 = arith.mulf %103, %113 : vector<8x128xf32>
    %115 = arith.addf %112, %114 : vector<8x128xf32>
    %116 = math.tanh %115 : vector<8x128xf32>
    %cst_57 = arith.constant 1.000000e+00 : f32
    %117 = vector.broadcast %cst_57 : f32 to vector<8x128xf32>
    %118 = arith.subf %117, %111 : vector<8x128xf32>
    %119 = arith.mulf %118, %116 : vector<8x128xf32>
    %120 = arith.mulf %111, %13 : vector<8x128xf32>
    %121 = arith.addf %119, %120 : vector<8x128xf32>
    %cst_58 = arith.constant 0.000000e+00 : f32
    %122 = vector.broadcast %cst_58 : f32 to vector<8x128xf32>
    %123 = arith.maximumf %121, %122 : vector<8x128xf32>
    %c0_i32 = arith.constant 0 : i32
    %124 = arith.index_cast %c0_i32 : i32 to index
    %c0_59 = arith.constant 0 : index
    %c0_60 = arith.constant 0 : index
    %125 = vector.load %arg16[%124, %c0_59, %c0_60] : memref<1x128x128xbf16, #tpu.memory_space<vmem>>, vector<1x128x128xbf16>
    %126 = vector.shape_cast %125 : vector<1x128x128xbf16> to vector<128x128xbf16>
    %127 = arith.index_cast %c0_i32 : i32 to index
    %c0_61 = arith.constant 0 : index
    %c0_62 = arith.constant 0 : index
    %128 = vector.load %arg17[%127, %c0_61, %c0_62] : memref<1x1x128xf32, #tpu.memory_space<vmem>>, vector<1x1x128xf32>
    %129 = vector.shape_cast %128 : vector<1x1x128xf32> to vector<1x128xf32>
    %130 = arith.index_cast %c0_i32 : i32 to index
    %c0_63 = arith.constant 0 : index
    %c0_64 = arith.constant 0 : index
    %131 = vector.load %arg18[%130, %c0_63, %c0_64] : memref<1x1x128xf32, #tpu.memory_space<vmem>>, vector<1x1x128xf32>
    %132 = vector.shape_cast %131 : vector<1x1x128xf32> to vector<1x128xf32>
    %133 = arith.index_cast %c0_i32 : i32 to index
    %c0_65 = arith.constant 0 : index
    %c0_66 = arith.constant 0 : index
    %134 = vector.load %arg19[%133, %c0_65, %c0_66] : memref<1x1x128xf32, #tpu.memory_space<vmem>>, vector<1x1x128xf32>
    %135 = vector.shape_cast %134 : vector<1x1x128xf32> to vector<1x128xf32>
    %136 = arith.truncf %123 : vector<8x128xf32> to vector<8x128xbf16>
    %cst_67 = arith.constant dense<0.000000e+00> : vector<8x128xf32>
    %137 = tpu.matmul %136, %126, %cst_67 {dimension_numbers = #tpu.dot_dimension_numbers<[1], [0], [0], [1], [0, 0, 1, 1], [], []>} : vector<8x128xbf16>, vector<128x128xbf16>, vector<8x128xf32> -> vector<8x128xf32>
    %cst_68 = arith.constant dense<0.000000e+00> : vector<1x8xf32>
    %138 = tpu.matmul %129, %123, %cst_68 {dimension_numbers = #tpu.dot_dimension_numbers<[1], [1], [0], [0], [0, 0, 1, 0], [], []>} : vector<1x128xf32>, vector<8x128xf32>, vector<1x8xf32> -> vector<1x8xf32>
    %139 = vector.broadcast %132 : vector<1x128xf32> to vector<8x128xf32>
    %140 = arith.mulf %123, %139 : vector<8x128xf32>
    %cst_69 = arith.constant dense<0.000000e+00> : vector<8xf32>
    %141 = vector.multi_reduction <add>, %140, %cst_69 [1] : vector<8x128xf32> to vector<8xf32>
    %142 = vector.shape_cast %141 : vector<8xf32> to vector<8x1xf32>
    %143 = vector.broadcast %142 : vector<8x1xf32> to vector<8x8xf32>
    %144 = vector.broadcast %138 : vector<1x8xf32> to vector<8x8xf32>
    %145 = arith.addf %143, %144 : vector<8x8xf32>
    %cst_70 = arith.constant 0.000000e+00 : f32
    %146 = vector.broadcast %cst_70 : f32 to vector<8x8xf32>
    %147 = arith.cmpf ogt, %145, %146 : vector<8x8xf32>
    %cst_71 = arith.constant 0.00999999977 : f32
    %148 = vector.broadcast %cst_71 : f32 to vector<8x8xf32>
    %149 = arith.mulf %148, %145 : vector<8x8xf32>
    %150 = arith.select %147, %145, %149 : vector<8x8xi1>, vector<8x8xf32>
    %cst_72 = arith.constant 0.000000e+00 : f32
    %151 = vector.broadcast %cst_72 : f32 to vector<8x8xf32>
    %152 = arith.cmpf ogt, %0, %151 : vector<8x8xf32>
    %cst_73 = arith.constant -1.000000e+30 : f32
    %153 = vector.broadcast %cst_73 : f32 to vector<8x8xf32>
    %154 = arith.select %152, %150, %153 : vector<8x8xi1>, vector<8x8xf32>
    %cst_74 = arith.constant dense<0xFF800000> : vector<8xf32>
    %155 = vector.multi_reduction <maximumf>, %154, %cst_74 [1] : vector<8x8xf32> to vector<8xf32>
    %156 = vector.shape_cast %155 : vector<8xf32> to vector<8x1xf32>
    %cst_75 = arith.constant 0.000000e+00 : f32
    %157 = vector.broadcast %cst_75 : f32 to vector<8x8xf32>
    %158 = arith.cmpf ogt, %0, %157 : vector<8x8xf32>
    %159 = vector.broadcast %156 : vector<8x1xf32> to vector<8x8xf32>
    %160 = arith.subf %154, %159 : vector<8x8xf32>
    %161 = math.exp %160 : vector<8x8xf32>
    %cst_76 = arith.constant 0.000000e+00 : f32
    %162 = vector.broadcast %cst_76 : f32 to vector<8x8xf32>
    %163 = arith.select %158, %161, %162 : vector<8x8xi1>, vector<8x8xf32>
    %cst_77 = arith.constant dense<0.000000e+00> : vector<8xf32>
    %164 = vector.multi_reduction <add>, %163, %cst_77 [1] : vector<8x8xf32> to vector<8xf32>
    %165 = vector.shape_cast %164 : vector<8xf32> to vector<8x1xf32>
    %cst_78 = arith.constant 1.000000e-16 : f32
    %166 = vector.broadcast %cst_78 : f32 to vector<8x1xf32>
    %167 = arith.maximumf %165, %166 : vector<8x1xf32>
    %168 = tpu.reciprocal %167 {approx = true} : vector<8x1xf32> -> vector<8x1xf32>
    %169 = vector.broadcast %168 : vector<8x1xf32> to vector<8x8xf32>
    %170 = arith.mulf %163, %169 : vector<8x8xf32>
    %171 = arith.truncf %170 : vector<8x8xf32> to vector<8x8xbf16>
    %172 = arith.truncf %137 : vector<8x128xf32> to vector<8x128xbf16>
    %cst_79 = arith.constant dense<0.000000e+00> : vector<8x128xf32>
    %173 = tpu.matmul %171, %172, %cst_79 {dimension_numbers = #tpu.dot_dimension_numbers<[1], [0], [0], [1], [0, 0, 1, 1], [], []>} : vector<8x8xbf16>, vector<8x128xbf16>, vector<8x128xf32> -> vector<8x128xf32>
    %174 = vector.broadcast %135 : vector<1x128xf32> to vector<8x128xf32>
    %175 = arith.addf %173, %174 : vector<8x128xf32>
    %cst_80 = arith.constant 0.000000e+00 : f32
    %176 = vector.broadcast %cst_80 : f32 to vector<8x128xf32>
    %177 = arith.cmpf ogt, %175, %176 : vector<8x128xf32>
    %cst_81 = arith.constant 0.000000e+00 : f32
    %178 = vector.broadcast %cst_81 : f32 to vector<8x128xf32>
    %179 = arith.minimumf %175, %178 : vector<8x128xf32>
    %180 = math.exp %179 : vector<8x128xf32>
    %cst_82 = arith.constant 1.000000e+00 : f32
    %181 = vector.broadcast %cst_82 : f32 to vector<8x128xf32>
    %182 = arith.subf %180, %181 : vector<8x128xf32>
    %183 = arith.select %177, %175, %182 : vector<8x128xi1>, vector<8x128xf32>
    %184 = arith.index_cast %c0_i32 : i32 to index
    %c0_83 = arith.constant 0 : index
    %c0_84 = arith.constant 0 : index
    %185 = vector.load %arg20[%184, %c0_83, %c0_84] : memref<1x128x384xbf16, #tpu.memory_space<vmem>>, vector<1x128x384xbf16>
    %186 = vector.shape_cast %185 : vector<1x128x384xbf16> to vector<128x384xbf16>
    %187 = arith.index_cast %c0_i32 : i32 to index
    %c0_85 = arith.constant 0 : index
    %c0_86 = arith.constant 0 : index
    %188 = vector.load %arg21[%187, %c0_85, %c0_86] : memref<1x128x384xbf16, #tpu.memory_space<vmem>>, vector<1x128x384xbf16>
    %189 = vector.shape_cast %188 : vector<1x128x384xbf16> to vector<128x384xbf16>
    %190 = arith.index_cast %c0_i32 : i32 to index
    %c0_87 = arith.constant 0 : index
    %c0_88 = arith.constant 0 : index
    %191 = vector.load %arg22[%190, %c0_87, %c0_88] : memref<1x1x384xf32, #tpu.memory_space<vmem>>, vector<1x1x384xf32>
    %192 = vector.shape_cast %191 : vector<1x1x384xf32> to vector<1x384xf32>
    %193 = arith.index_cast %c0_i32 : i32 to index
    %c0_89 = arith.constant 0 : index
    %c0_90 = arith.constant 0 : index
    %194 = vector.load %arg23[%193, %c0_89, %c0_90] : memref<1x1x384xf32, #tpu.memory_space<vmem>>, vector<1x1x384xf32>
    %195 = vector.shape_cast %194 : vector<1x1x384xf32> to vector<1x384xf32>
    %196 = arith.truncf %183 : vector<8x128xf32> to vector<8x128xbf16>
    %cst_91 = arith.constant dense<0.000000e+00> : vector<8x384xf32>
    %197 = tpu.matmul %196, %186, %cst_91 {dimension_numbers = #tpu.dot_dimension_numbers<[1], [0], [0], [1], [0, 0, 1, 1], [], []>} : vector<8x128xbf16>, vector<128x384xbf16>, vector<8x384xf32> -> vector<8x384xf32>
    %198 = vector.broadcast %192 : vector<1x384xf32> to vector<8x384xf32>
    %199 = arith.addf %197, %198 : vector<8x384xf32>
    %200 = arith.truncf %123 : vector<8x128xf32> to vector<8x128xbf16>
    %cst_92 = arith.constant dense<0.000000e+00> : vector<8x384xf32>
    %201 = tpu.matmul %200, %189, %cst_92 {dimension_numbers = #tpu.dot_dimension_numbers<[1], [0], [0], [1], [0, 0, 1, 1], [], []>} : vector<8x128xbf16>, vector<128x384xbf16>, vector<8x384xf32> -> vector<8x384xf32>
    %202 = vector.broadcast %195 : vector<1x384xf32> to vector<8x384xf32>
    %203 = arith.addf %201, %202 : vector<8x384xf32>
    %204 = vector.extract_strided_slice %199 {offsets = [0, 0], sizes = [8, 128], strides = [1, 1]} : vector<8x384xf32> to vector<8x128xf32>
    %205 = vector.extract_strided_slice %203 {offsets = [0, 0], sizes = [8, 128], strides = [1, 1]} : vector<8x384xf32> to vector<8x128xf32>
    %206 = arith.addf %204, %205 : vector<8x128xf32>
    %207 = arith.negf %206 : vector<8x128xf32>
    %208 = math.exp %207 : vector<8x128xf32>
    %cst_93 = arith.constant 1.000000e+00 : f32
    %209 = vector.broadcast %cst_93 : f32 to vector<8x128xf32>
    %210 = arith.addf %209, %208 : vector<8x128xf32>
    %211 = arith.divf %209, %210 : vector<8x128xf32>
    %212 = vector.extract_strided_slice %199 {offsets = [0, 128], sizes = [8, 128], strides = [1, 1]} : vector<8x384xf32> to vector<8x128xf32>
    %213 = vector.extract_strided_slice %203 {offsets = [0, 128], sizes = [8, 128], strides = [1, 1]} : vector<8x384xf32> to vector<8x128xf32>
    %214 = arith.addf %212, %213 : vector<8x128xf32>
    %215 = arith.negf %214 : vector<8x128xf32>
    %216 = math.exp %215 : vector<8x128xf32>
    %cst_94 = arith.constant 1.000000e+00 : f32
    %217 = vector.broadcast %cst_94 : f32 to vector<8x128xf32>
    %218 = arith.addf %217, %216 : vector<8x128xf32>
    %219 = arith.divf %217, %218 : vector<8x128xf32>
    %220 = vector.extract_strided_slice %199 {offsets = [0, 256], sizes = [8, 128], strides = [1, 1]} : vector<8x384xf32> to vector<8x128xf32>
    %221 = vector.extract_strided_slice %203 {offsets = [0, 256], sizes = [8, 128], strides = [1, 1]} : vector<8x384xf32> to vector<8x128xf32>
    %222 = arith.mulf %211, %221 : vector<8x128xf32>
    %223 = arith.addf %220, %222 : vector<8x128xf32>
    %224 = math.tanh %223 : vector<8x128xf32>
    %cst_95 = arith.constant 1.000000e+00 : f32
    %225 = vector.broadcast %cst_95 : f32 to vector<8x128xf32>
    %226 = arith.subf %225, %219 : vector<8x128xf32>
    %227 = arith.mulf %226, %224 : vector<8x128xf32>
    %228 = arith.mulf %219, %123 : vector<8x128xf32>
    %229 = arith.addf %227, %228 : vector<8x128xf32>
    %cst_96 = arith.constant 0.000000e+00 : f32
    %230 = vector.broadcast %cst_96 : f32 to vector<8x128xf32>
    %231 = arith.maximumf %229, %230 : vector<8x128xf32>
    %c1_i32 = arith.constant 1 : i32
    %232 = arith.truncf %1 : vector<2x8xf32> to vector<2x8xbf16>
    %233 = arith.truncf %231 : vector<8x128xf32> to vector<8x128xbf16>
    %cst_97 = arith.constant dense<0.000000e+00> : vector<2x128xf32>
    %234 = tpu.matmul %232, %233, %cst_97 {dimension_numbers = #tpu.dot_dimension_numbers<[1], [0], [0], [1], [0, 0, 1, 1], [], []>} : vector<2x8xbf16>, vector<8x128xbf16>, vector<2x128xf32> -> vector<2x128xf32>
    %cst_98 = arith.constant 0.000000e+00 : f32
    %235 = vector.broadcast %cst_98 : f32 to vector<2x128xf32>
    %236 = arith.maximumf %234, %235 : vector<2x128xf32>
    %c0_99 = arith.constant 0 : index
    %c0_100 = arith.constant 0 : index
    %237 = vector.load %arg24[%c0_99, %c0_100] : memref<128x128xbf16, #tpu.memory_space<vmem>>, vector<128x128xbf16>
    %c0_101 = arith.constant 0 : index
    %c0_102 = arith.constant 0 : index
    %238 = vector.load %arg25[%c0_101, %c0_102] : memref<1x128xf32, #tpu.memory_space<vmem>>, vector<1x128xf32>
    %c0_103 = arith.constant 0 : index
    %c0_104 = arith.constant 0 : index
    %239 = vector.load %arg26[%c0_103, %c0_104] : memref<1x128xf32, #tpu.memory_space<vmem>>, vector<1x128xf32>
    %c0_105 = arith.constant 0 : index
    %c0_106 = arith.constant 0 : index
    %240 = vector.load %arg27[%c0_105, %c0_106] : memref<1x128xf32, #tpu.memory_space<vmem>>, vector<1x128xf32>
    %c0_107 = arith.constant 0 : index
    %c0_108 = arith.constant 0 : index
    %241 = vector.load %arg28[%c0_107, %c0_108] : memref<128x384xbf16, #tpu.memory_space<vmem>>, vector<128x384xbf16>
    %c0_109 = arith.constant 0 : index
    %c0_110 = arith.constant 0 : index
    %242 = vector.load %arg29[%c0_109, %c0_110] : memref<128x384xbf16, #tpu.memory_space<vmem>>, vector<128x384xbf16>
    %c0_111 = arith.constant 0 : index
    %c0_112 = arith.constant 0 : index
    %243 = vector.load %arg30[%c0_111, %c0_112] : memref<1x384xf32, #tpu.memory_space<vmem>>, vector<1x384xf32>
    %c0_113 = arith.constant 0 : index
    %c0_114 = arith.constant 0 : index
    %244 = vector.load %arg31[%c0_113, %c0_114] : memref<1x384xf32, #tpu.memory_space<vmem>>, vector<1x384xf32>
    %c0_i32_115 = arith.constant 0 : i32
    %c2_i32 = arith.constant 2 : i32
    %245 = arith.addi %c0_i32_115, %c2_i32 : i32
    %c1_i32_116 = arith.constant 1 : i32
    %246 = scf.for %arg35 = %c0_i32_115 to %245 step %c1_i32_116 iter_args(%arg36 = %236) -> (vector<2x128xf32>)  : i32 {
      %254 = arith.truncf %231 : vector<8x128xf32> to vector<8x128xbf16>
      %cst_124 = arith.constant dense<0.000000e+00> : vector<8x128xf32>
      %255 = tpu.matmul %254, %237, %cst_124 {dimension_numbers = #tpu.dot_dimension_numbers<[1], [0], [0], [1], [0, 0, 1, 1], [], []>} : vector<8x128xbf16>, vector<128x128xbf16>, vector<8x128xf32> -> vector<8x128xf32>
      %cst_125 = arith.constant dense<0.000000e+00> : vector<1x8xf32>
      %256 = tpu.matmul %238, %231, %cst_125 {dimension_numbers = #tpu.dot_dimension_numbers<[1], [1], [0], [0], [0, 0, 1, 0], [], []>} : vector<1x128xf32>, vector<8x128xf32>, vector<1x8xf32> -> vector<1x8xf32>
      %257 = vector.broadcast %239 : vector<1x128xf32> to vector<2x128xf32>
      %258 = arith.mulf %arg36, %257 : vector<2x128xf32>
      %cst_126 = arith.constant dense<0.000000e+00> : vector<2xf32>
      %259 = vector.multi_reduction <add>, %258, %cst_126 [1] : vector<2x128xf32> to vector<2xf32>
      %260 = vector.shape_cast %259 : vector<2xf32> to vector<2x1xf32>
      %261 = vector.broadcast %260 : vector<2x1xf32> to vector<2x8xf32>
      %262 = vector.broadcast %256 : vector<1x8xf32> to vector<2x8xf32>
      %263 = arith.addf %261, %262 : vector<2x8xf32>
      %cst_127 = arith.constant 0.000000e+00 : f32
      %264 = vector.broadcast %cst_127 : f32 to vector<2x8xf32>
      %265 = arith.cmpf ogt, %263, %264 : vector<2x8xf32>
      %cst_128 = arith.constant 0.00999999977 : f32
      %266 = vector.broadcast %cst_128 : f32 to vector<2x8xf32>
      %267 = arith.mulf %266, %263 : vector<2x8xf32>
      %268 = arith.select %265, %263, %267 : vector<2x8xi1>, vector<2x8xf32>
      %cst_129 = arith.constant 0.000000e+00 : f32
      %269 = vector.broadcast %cst_129 : f32 to vector<2x8xf32>
      %270 = arith.cmpf ogt, %1, %269 : vector<2x8xf32>
      %cst_130 = arith.constant -1.000000e+30 : f32
      %271 = vector.broadcast %cst_130 : f32 to vector<2x8xf32>
      %272 = arith.select %270, %268, %271 : vector<2x8xi1>, vector<2x8xf32>
      %cst_131 = arith.constant dense<0xFF800000> : vector<2xf32>
      %273 = vector.multi_reduction <maximumf>, %272, %cst_131 [1] : vector<2x8xf32> to vector<2xf32>
      %274 = vector.shape_cast %273 : vector<2xf32> to vector<2x1xf32>
      %cst_132 = arith.constant 0.000000e+00 : f32
      %275 = vector.broadcast %cst_132 : f32 to vector<2x8xf32>
      %276 = arith.cmpf ogt, %1, %275 : vector<2x8xf32>
      %277 = vector.broadcast %274 : vector<2x1xf32> to vector<2x8xf32>
      %278 = arith.subf %272, %277 : vector<2x8xf32>
      %279 = math.exp %278 : vector<2x8xf32>
      %cst_133 = arith.constant 0.000000e+00 : f32
      %280 = vector.broadcast %cst_133 : f32 to vector<2x8xf32>
      %281 = arith.select %276, %279, %280 : vector<2x8xi1>, vector<2x8xf32>
      %cst_134 = arith.constant dense<0.000000e+00> : vector<2xf32>
      %282 = vector.multi_reduction <add>, %281, %cst_134 [1] : vector<2x8xf32> to vector<2xf32>
      %283 = vector.shape_cast %282 : vector<2xf32> to vector<2x1xf32>
      %cst_135 = arith.constant 1.000000e-16 : f32
      %284 = vector.broadcast %cst_135 : f32 to vector<2x1xf32>
      %285 = arith.maximumf %283, %284 : vector<2x1xf32>
      %286 = tpu.reciprocal %285 {approx = true} : vector<2x1xf32> -> vector<2x1xf32>
      %287 = vector.broadcast %286 : vector<2x1xf32> to vector<2x8xf32>
      %288 = arith.mulf %281, %287 : vector<2x8xf32>
      %289 = arith.truncf %288 : vector<2x8xf32> to vector<2x8xbf16>
      %290 = arith.truncf %255 : vector<8x128xf32> to vector<8x128xbf16>
      %cst_136 = arith.constant dense<0.000000e+00> : vector<2x128xf32>
      %291 = tpu.matmul %289, %290, %cst_136 {dimension_numbers = #tpu.dot_dimension_numbers<[1], [0], [0], [1], [0, 0, 1, 1], [], []>} : vector<2x8xbf16>, vector<8x128xbf16>, vector<2x128xf32> -> vector<2x128xf32>
      %292 = vector.broadcast %240 : vector<1x128xf32> to vector<2x128xf32>
      %293 = arith.addf %291, %292 : vector<2x128xf32>
      %cst_137 = arith.constant 0.000000e+00 : f32
      %294 = vector.broadcast %cst_137 : f32 to vector<2x128xf32>
      %295 = arith.cmpf ogt, %293, %294 : vector<2x128xf32>
      %cst_138 = arith.constant 0.000000e+00 : f32
      %296 = vector.broadcast %cst_138 : f32 to vector<2x128xf32>
      %297 = arith.minimumf %293, %296 : vector<2x128xf32>
      %298 = math.exp %297 : vector<2x128xf32>
      %cst_139 = arith.constant 1.000000e+00 : f32
      %299 = vector.broadcast %cst_139 : f32 to vector<2x128xf32>
      %300 = arith.subf %298, %299 : vector<2x128xf32>
      %301 = arith.select %295, %293, %300 : vector<2x128xi1>, vector<2x128xf32>
      %302 = arith.truncf %301 : vector<2x128xf32> to vector<2x128xbf16>
      %cst_140 = arith.constant dense<0.000000e+00> : vector<2x384xf32>
      %303 = tpu.matmul %302, %241, %cst_140 {dimension_numbers = #tpu.dot_dimension_numbers<[1], [0], [0], [1], [0, 0, 1, 1], [], []>} : vector<2x128xbf16>, vector<128x384xbf16>, vector<2x384xf32> -> vector<2x384xf32>
      %304 = vector.broadcast %243 : vector<1x384xf32> to vector<2x384xf32>
      %305 = arith.addf %303, %304 : vector<2x384xf32>
      %306 = arith.truncf %arg36 : vector<2x128xf32> to vector<2x128xbf16>
      %cst_141 = arith.constant dense<0.000000e+00> : vector<2x384xf32>
      %307 = tpu.matmul %306, %242, %cst_141 {dimension_numbers = #tpu.dot_dimension_numbers<[1], [0], [0], [1], [0, 0, 1, 1], [], []>} : vector<2x128xbf16>, vector<128x384xbf16>, vector<2x384xf32> -> vector<2x384xf32>
      %308 = vector.broadcast %244 : vector<1x384xf32> to vector<2x384xf32>
      %309 = arith.addf %307, %308 : vector<2x384xf32>
      %310 = vector.extract_strided_slice %305 {offsets = [0, 0], sizes = [2, 128], strides = [1, 1]} : vector<2x384xf32> to vector<2x128xf32>
      %311 = vector.extract_strided_slice %309 {offsets = [0, 0], sizes = [2, 128], strides = [1, 1]} : vector<2x384xf32> to vector<2x128xf32>
      %312 = arith.addf %310, %311 : vector<2x128xf32>
      %313 = arith.negf %312 : vector<2x128xf32>
      %314 = math.exp %313 : vector<2x128xf32>
      %cst_142 = arith.constant 1.000000e+00 : f32
      %315 = vector.broadcast %cst_142 : f32 to vector<2x128xf32>
      %316 = arith.addf %315, %314 : vector<2x128xf32>
      %317 = arith.divf %315, %316 : vector<2x128xf32>
      %318 = vector.extract_strided_slice %305 {offsets = [0, 128], sizes = [2, 128], strides = [1, 1]} : vector<2x384xf32> to vector<2x128xf32>
      %319 = vector.extract_strided_slice %309 {offsets = [0, 128], sizes = [2, 128], strides = [1, 1]} : vector<2x384xf32> to vector<2x128xf32>
      %320 = arith.addf %318, %319 : vector<2x128xf32>
      %321 = arith.negf %320 : vector<2x128xf32>
      %322 = math.exp %321 : vector<2x128xf32>
      %cst_143 = arith.constant 1.000000e+00 : f32
      %323 = vector.broadcast %cst_143 : f32 to vector<2x128xf32>
      %324 = arith.addf %323, %322 : vector<2x128xf32>
      %325 = arith.divf %323, %324 : vector<2x128xf32>
      %326 = vector.extract_strided_slice %305 {offsets = [0, 256], sizes = [2, 128], strides = [1, 1]} : vector<2x384xf32> to vector<2x128xf32>
      %327 = vector.extract_strided_slice %309 {offsets = [0, 256], sizes = [2, 128], strides = [1, 1]} : vector<2x384xf32> to vector<2x128xf32>
      %328 = arith.mulf %317, %327 : vector<2x128xf32>
      %329 = arith.addf %326, %328 : vector<2x128xf32>
      %330 = math.tanh %329 : vector<2x128xf32>
      %cst_144 = arith.constant 1.000000e+00 : f32
      %331 = vector.broadcast %cst_144 : f32 to vector<2x128xf32>
      %332 = arith.subf %331, %325 : vector<2x128xf32>
      %333 = arith.mulf %332, %330 : vector<2x128xf32>
      %334 = arith.mulf %325, %arg36 : vector<2x128xf32>
      %335 = arith.addf %333, %334 : vector<2x128xf32>
      %cst_145 = arith.constant 0.000000e+00 : f32
      %336 = vector.broadcast %cst_145 : f32 to vector<2x128xf32>
      %337 = arith.maximumf %335, %336 : vector<2x128xf32>
      scf.yield %337 : vector<2x128xf32>
    }
    %c0_117 = arith.constant 0 : index
    %c0_118 = arith.constant 0 : index
    %247 = vector.load %arg32[%c0_117, %c0_118] : memref<128x8xbf16, #tpu.memory_space<vmem>>, vector<128x8xbf16>
    %248 = arith.truncf %246 : vector<2x128xf32> to vector<2x128xbf16>
    %cst_119 = arith.constant dense<0.000000e+00> : vector<2x8xf32>
    %249 = tpu.matmul %248, %247, %cst_119 {dimension_numbers = #tpu.dot_dimension_numbers<[1], [0], [0], [1], [0, 0, 1, 1], [], []>} : vector<2x128xbf16>, vector<128x8xbf16>, vector<2x8xf32> -> vector<2x8xf32>
    %c0_120 = arith.constant 0 : index
    %c0_121 = arith.constant 0 : index
    %250 = vector.load %arg33[%c0_120, %c0_121] : memref<1x8xf32, #tpu.memory_space<vmem>>, vector<1x8xf32>
    %251 = vector.broadcast %250 : vector<1x8xf32> to vector<2x8xf32>
    %252 = arith.addf %249, %251 : vector<2x8xf32>
    %c0_122 = arith.constant 0 : index
    %c0_123 = arith.constant 0 : index
    %253 = vector.load %arg34[%c0_122, %c0_123] : memref<2x8xf32, #tpu.memory_space<vmem>>, vector<2x8xf32>
    tpu.vector_store %arg34[%c0_122, %c0_123], %252 {strides = array<i32>} : memref<2x8xf32, #tpu.memory_space<vmem>>, vector<2x8xf32>,
    return
  }
}

</mosaic_0001>

<llo_original>
// kernel: tpu_custom_call.1
$region0: #{tpu_custom_call.1}
  #allocation0 [shape = 'u32[]', space=smem, size = 0x4, offset = 0x4, fixed_abs, tag = 'smem constant byte address 0x4 - core index']
  #allocation1 [shape = 'u32[144,128]{1,0:T(1,128)}', space=vmem, size = 0x12000, scoped, tag = 'internal scratch']
  %s0 = inlined_call_operand.smem [shape: u32[35], index: -1, kind: input, shape index: {}]
  %s1 = sld [smem:[%s0]]
  %s2 = scalar_lea.smem %s0, 1
  %s3 = sld [smem:[%s2]]
  %s4 = scalar_lea.smem %s0, 2
  %s5 = sld [smem:[%s4]]
  %s6 = scalar_lea.smem %s0, 3
  %s7 = sld [smem:[%s6]]
  %s8 = scalar_lea.smem %s0, 4
  %s9 = sld [smem:[%s8]]
  %s10 = scalar_lea.smem %s0, 5
  %s11 = sld [smem:[%s10]]
  %s12 = scalar_lea.smem %s0, 6
  %s13 = sld [smem:[%s12]]
  %s14 = scalar_lea.smem %s0, 7
  %s15 = sld [smem:[%s14]]
  %s16 = scalar_lea.smem %s0, 8
  %s17 = sld [smem:[%s16]]
  %s18 = scalar_lea.smem %s0, 9
  %s19 = sld [smem:[%s18]]
  %s20 = scalar_lea.smem %s0, 10
  %s21 = sld [smem:[%s20]]
  %s22 = scalar_lea.smem %s0, 11
  %s23 = sld [smem:[%s22]]
  %s24 = scalar_lea.smem %s0, 12
  %s25 = sld [smem:[%s24]]
  %s26 = scalar_lea.smem %s0, 13
  %s27 = sld [smem:[%s26]]
  %s28 = scalar_lea.smem %s0, 14
  %s29 = sld [smem:[%s28]]
  %s30 = scalar_lea.smem %s0, 15
  %s31 = sld [smem:[%s30]]
  %s32 = scalar_lea.smem %s0, 16
  %s33 = sld [smem:[%s32]]
  %s34 = scalar_lea.smem %s0, 17
  %s35 = sld [smem:[%s34]]
  %s36 = scalar_lea.smem %s0, 18
  %s37 = sld [smem:[%s36]]
  %s38 = scalar_lea.smem %s0, 19
  %s39 = sld [smem:[%s38]]
  %s40 = scalar_lea.smem %s0, 20
  %s41 = sld [smem:[%s40]]
  %s42 = scalar_lea.smem %s0, 21
  %s43 = sld [smem:[%s42]]
  %s44 = scalar_lea.smem %s0, 22
  %s45 = sld [smem:[%s44]]
  %s46 = scalar_lea.smem %s0, 23
  %s47 = sld [smem:[%s46]]
  %s48 = scalar_lea.smem %s0, 24
  %s49 = sld [smem:[%s48]]
  %s50 = scalar_lea.smem %s0, 25
  %s51 = sld [smem:[%s50]]
  %s52 = scalar_lea.smem %s0, 26
  %s53 = sld [smem:[%s52]]
  %s54 = scalar_lea.smem %s0, 27
  %s55 = sld [smem:[%s54]]
  %s56 = scalar_lea.smem %s0, 28
  %s57 = sld [smem:[%s56]]
  %s58 = scalar_lea.smem %s0, 29
  %s59 = sld [smem:[%s58]]
  %s60 = scalar_lea.smem %s0, 30
  %s61 = sld [smem:[%s60]]
  %s62 = scalar_lea.smem %s0, 31
  %s63 = sld [smem:[%s62]]
  %s64 = scalar_lea.smem %s0, 32
  %s65 = sld [smem:[%s64]]
  %s66 = scalar_lea.smem %s0, 33
  %s67 = sld [smem:[%s66]]
  %s68 = scalar_lea.smem %s0, 34
  %s69 = sld [smem:[%s68]]
  %s70 = sld [smem:[#allocation0]]
  $region273: #{tpu_custom_call.1} parent=0
    _
  %s72 = ssub.s32 1, %s70
  %s73 = scalar_select 0, %s72, %s70
  $region1: #{tpu_custom_call.1} parent=0
    #allocation2 [shape = 'u8[4096]{0}', space=vmem, size = 0x1000, scoped, tag = 'input window, operand 0, single buffered']
    #allocation3 [shape = 's32[1]{0}', space=sflag, size = 0x4, scoped, tag = 'scoped memory for tpu_custom_call.1']
    #allocation4 [shape = 's32[1]{0}', space=sflag, size = 0x4, scoped, tag = 'scoped memory for tpu_custom_call.1']
    #allocation5 [shape = 'u8[4096]{0}', space=vmem, size = 0x1000, scoped, tag = 'input window, operand 2, single buffered']
    #allocation6 [shape = 's32[1]{0}', space=sflag, size = 0x4, scoped, tag = 'scoped memory for tpu_custom_call.1']
    #allocation7 [shape = 'u8[1024]{0}', space=vmem, size = 0x400, scoped, tag = 'input window, operand 3, single buffered']
    #allocation8 [shape = 'u8[4096]{0}', space=vmem, size = 0x1000, scoped, tag = 'input window, operand 4, single buffered']
    #allocation9 [shape = 's32[1]{0}', space=sflag, size = 0x4, scoped, tag = 'scoped memory for tpu_custom_call.1']
    #allocation10 [shape = 'u8[512]{0}', space=vmem, size = 0x400, scoped, tag = 'input window, operand 5, single buffered']
    #allocation11 [shape = 'u8[32768]{0}', space=vmem, size = 0x8000, scoped, tag = 'input window, operand 6, single buffered']
    #allocation12 [shape = 's32[1]{0}', space=sflag, size = 0x4, scoped, tag = 'scoped memory for tpu_custom_call.1']
    #allocation13 [shape = 'u8[2048]{0}', space=vmem, size = 0x800, scoped, tag = 'input window, operand 7, single buffered']
    #allocation14 [shape = 'u8[32768]{0}', space=vmem, size = 0x8000, scoped, tag = 'input window, operand 8, single buffered']
    #allocation15 [shape = 's32[1]{0}', space=sflag, size = 0x4, scoped, tag = 'scoped memory for tpu_custom_call.1']
    #allocation16 [shape = 'u8[512]{0}', space=vmem, size = 0x400, scoped, tag = 'input window, operand 9, single buffered']
    #allocation17 [shape = 'u8[512]{0}', space=vmem, size = 0x400, scoped, tag = 'input window, operand 10, single buffered']
    #allocation18 [shape = 's32[1]{0}', space=sflag, size = 0x4, scoped, tag = 'scoped memory for tpu_custom_call.1']
    #allocation19 [shape = 'u8[512]{0}', space=vmem, size = 0x400, scoped, tag = 'input window, operand 11, single buffered']
    #allocation20 [shape = 'u8[98304]{0}', space=vmem, size = 0x18000, scoped, tag = 'input window, operand 12, single buffered']
    #allocation21 [shape = 's32[1]{0}', space=sflag, size = 0x4, scoped, tag = 'scoped memory for tpu_custom_call.1']
    #allocation22 [shape = 'u8[98304]{0}', space=vmem, size = 0x18000, scoped, tag = 'input window, operand 13, single buffered']
    #allocation23 [shape = 'u8[1536]{0}', space=vmem, size = 0x800, scoped, tag = 'input window, operand 14, single buffered']
    #allocation24 [shape = 's32[1]{0}', space=sflag, size = 0x4, scoped, tag = 'scoped memory for tpu_custom_call.1']
    #allocation25 [shape = 'u8[1536]{0}', space=vmem, size = 0x800, scoped, tag = 'input window, operand 15, single buffered']
    #allocation26 [shape = 'u8[32768]{0}', space=vmem, size = 0x8000, scoped, tag = 'input window, operand 16, single buffered']
    #allocation27 [shape = 's32[1]{0}', space=sflag, size = 0x4, scoped, tag = 'scoped memory for tpu_custom_call.1']
    #allocation28 [shape = 'u8[512]{0}', space=vmem, size = 0x400, scoped, tag = 'input window, operand 17, single buffered']
    #allocation29 [shape = 'u8[512]{0}', space=vmem, size = 0x400, scoped, tag = 'input window, operand 18, single buffered']
    #allocation30 [shape = 's32[1]{0}', space=sflag, size = 0x4, scoped, tag = 'scoped memory for tpu_custom_call.1']
    #allocation31 [shape = 'u8[512]{0}', space=vmem, size = 0x400, scoped, tag = 'input window, operand 19, single buffered']
    #allocation32 [shape = 'u8[98304]{0}', space=vmem, size = 0x18000, scoped, tag = 'input window, operand 20, single buffered']
    #allocation33 [shape = 's32[1]{0}', space=sflag, size = 0x4, scoped, tag = 'scoped memory for tpu_custom_call.1']
    #allocation34 [shape = 'u8[98304]{0}', space=vmem, size = 0x18000, scoped, tag = 'input window, operand 21, single buffered']
    #allocation35 [shape = 'u8[1536]{0}', space=vmem, size = 0x800, scoped, tag = 'input window, operand 22, single buffered']
    #allocation36 [shape = 's32[1]{0}', space=sflag, size = 0x4, scoped, tag = 'scoped memory for tpu_custom_call.1']
    #allocation37 [shape = 'u8[1536]{0}', space=vmem, size = 0x800, scoped, tag = 'input window, operand 23, single buffered']
    #allocation38 [shape = 'u8[32768]{0}', space=vmem, size = 0x8000, scoped, tag = 'input window, operand 24, single buffered']
    #allocation39 [shape = 's32[1]{0}', space=sflag, size = 0x4, scoped, tag = 'scoped memory for tpu_custom_call.1']
    #allocation40 [shape = 'u8[512]{0}', space=vmem, size = 0x400, scoped, tag = 'input window, operand 25, single buffered']
    #allocation41 [shape = 'u8[512]{0}', space=vmem, size = 0x400, scoped, tag = 'input window, operand 26, single buffered']
    #allocation42 [shape = 's32[1]{0}', space=sflag, size = 0x4, scoped, tag = 'scoped memory for tpu_custom_call.1']
    #allocation43 [shape = 'u8[512]{0}', space=vmem, size = 0x400, scoped, tag = 'input window, operand 27, single buffered']
    #allocation44 [shape = 'u8[98304]{0}', space=vmem, size = 0x18000, scoped, tag = 'input window, operand 28, single buffered']
    #allocation45 [shape = 's32[1]{0}', space=sflag, size = 0x4, scoped, tag = 'scoped memory for tpu_custom_call.1']
    #allocation46 [shape = 'u8[1536]{0}', space=vmem, size = 0x800, scoped, tag = 'input window, operand 30, single buffered']
    #allocation47 [shape = 'u8[1536]{0}', space=vmem, size = 0x800, scoped, tag = 'input window, operand 31, single buffered']
    #allocation48 [shape = 's32[1]{0}', space=sflag, size = 0x4, scoped, tag = 'scoped memory for tpu_custom_call.1']
    #allocation49 [shape = 'u8[1024]{0}', space=vmem, size = 0x400, scoped, tag = 'output window, operand 0, single buffered']
    %74 = vsyncpa [#allocation3], 0
    %75 = vsyncpa [#allocation6], 0
    %76 = vsyncpa [#allocation9], 0
    %77 = vsyncpa [#allocation12], 0
    %78 = vsyncpa [#allocation15], 0
    %79 = vsyncpa [#allocation18], 0
    %80 = vsyncpa [#allocation21], 0
    %81 = vsyncpa [#allocation24], 0
    %82 = vsyncpa [#allocation27], 0
    %83 = vsyncpa [#allocation30], 0
    %84 = vsyncpa [#allocation33], 0
    %85 = vsyncpa [#allocation36], 0
    %86 = vsyncpa [#allocation39], 0
    %87 = vsyncpa [#allocation42], 0
    %88 = vsyncpa [#allocation45], 0
    %89 = vsyncpa [#allocation48], 0
    %90 = vsyncpa [#allocation4], 0
    // Predicated region
    $region2: #{tpu_custom_call.1} parent=1 // pred_check
      _
    $region3: #{tpu_custom_call.1} parent=1 // pred_check_branch
      %92 = sbr.rel (0) target = $region5
    $region4: #{tpu_custom_call.1} parent=1 // pred_region
      %s94 = ssub.s32 128, 128
      %95 = vsyncadd [#allocation3], %s94
      %s97 = sshll.u32 [#allocation2], 4
      %s98 = int_to_ptr.vmem [resolvable:$true] %s97
      %100 = dma.hbm_to_vmem [thread:$0]  %s1, 128, %s98, [#allocation3]
    $region5: #{tpu_custom_call.1} parent=1 // pred_fallthru
      _
    // Predicated region
    $region6: #{tpu_custom_call.1} parent=1 // pred_check
      _
    $region7: #{tpu_custom_call.1} parent=1 // pred_check_branch
      %102 = sbr.rel (0) target = $region9
    $region8: #{tpu_custom_call.1} parent=1 // pred_region
      _
    $region9: #{tpu_custom_call.1} parent=1 // pred_fallthru
      _
    // Predicated region
    $region10: #{tpu_custom_call.1} parent=1 // pred_check
      _
    $region11: #{tpu_custom_call.1} parent=1 // pred_check_branch
      %104 = sbr.rel (0) target = $region13
    $region12: #{tpu_custom_call.1} parent=1 // pred_region
      %s106 = ssub.s32 128, 128
      %107 = vsyncadd [#allocation6], %s106
      %s109 = sshll.u32 [#allocation5], 4
      %s110 = int_to_ptr.vmem [resolvable:$true] %s109
      %112 = dma.hbm_to_vmem [thread:$0]  %s5, 128, %s110, [#allocation6]
    $region13: #{tpu_custom_call.1} parent=1 // pred_fallthru
      _
    // Predicated region
    $region14: #{tpu_custom_call.1} parent=1 // pred_check
      _
    $region15: #{tpu_custom_call.1} parent=1 // pred_check_branch
      %114 = sbr.rel (0) target = $region17
    $region16: #{tpu_custom_call.1} parent=1 // pred_region
      %s116 = ssub.s32 32, 32
      %117 = vsyncadd [#allocation6], %s116
      %s119 = sshll.u32 [#allocation7], 4
      %s120 = int_to_ptr.vmem [resolvable:$true] %s119
      %122 = dma.hbm_to_vmem [thread:$0]  %s7, 32, %s120, [#allocation6]
    $region17: #{tpu_custom_call.1} parent=1 // pred_fallthru
      _
    // Predicated region
    $region18: #{tpu_custom_call.1} parent=1 // pred_check
      _
    $region19: #{tpu_custom_call.1} parent=1 // pred_check_branch
      %124 = sbr.rel (0) target = $region21
    $region20: #{tpu_custom_call.1} parent=1 // pred_region
      %s126 = ssub.s32 128, 128
      %127 = vsyncadd [#allocation9], %s126
      %s128 = sshll.u32 [#allocation8], 4
      %s129 = int_to_ptr.vmem [resolvable:$true] %s128
      %134 = dma.hbm_to_vmem [thread:$0]  %s9, 128, %s129, [#allocation9], 64, 64, 4
    $region21: #{tpu_custom_call.1} parent=1 // pred_fallthru
      _
    // Predicated region
    $region22: #{tpu_custom_call.1} parent=1 // pred_check
      _
    $region23: #{tpu_custom_call.1} parent=1 // pred_check_branch
      %136 = sbr.rel (0) target = $region25
    $region24: #{tpu_custom_call.1} parent=1 // pred_region
      %s138 = ssub.s32 16, 16
      %139 = vsyncadd [#allocation9], %s138
      %s141 = sshll.u32 [#allocation10], 4
      %s142 = int_to_ptr.vmem [resolvable:$true] %s141
      %144 = dma.hbm_to_vmem [thread:$0]  %s11, 16, %s142, [#allocation9]
    $region25: #{tpu_custom_call.1} parent=1 // pred_fallthru
      _
    // Predicated region
    $region26: #{tpu_custom_call.1} parent=1 // pred_check
      _
    $region27: #{tpu_custom_call.1} parent=1 // pred_check_branch
      %146 = sbr.rel (0) target = $region29
    $region28: #{tpu_custom_call.1} parent=1 // pred_region
      %s148 = ssub.s32 1024, 1024
      %149 = vsyncadd [#allocation12], %s148
      %s150 = sshll.u32 [#allocation11], 4
      %s151 = int_to_ptr.vmem [resolvable:$true] %s150
      %156 = dma.hbm_to_vmem [thread:$0]  %s13, 1024, %s151, [#allocation12], 64, 64, 4
    $region29: #{tpu_custom_call.1} parent=1 // pred_fallthru
      _
    // Predicated region
    $region30: #{tpu_custom_call.1} parent=1 // pred_check
      _
    $region31: #{tpu_custom_call.1} parent=1 // pred_check_branch
      %158 = sbr.rel (0) target = $region33
    $region32: #{tpu_custom_call.1} parent=1 // pred_region
      %s160 = ssub.s32 64, 64
      %161 = vsyncadd [#allocation12], %s160
      %s163 = sshll.u32 [#allocation13], 4
      %s164 = int_to_ptr.vmem [resolvable:$true] %s163
      %166 = dma.hbm_to_vmem [thread:$0]  %s15, 64, %s164, [#allocation12]
    $region33: #{tpu_custom_call.1} parent=1 // pred_fallthru
      _
    // Predicated region
    $region34: #{tpu_custom_call.1} parent=1 // pred_check
      _
    $region35: #{tpu_custom_call.1} parent=1 // pred_check_branch
      %168 = sbr.rel (0) target = $region37
    $region36: #{tpu_custom_call.1} parent=1 // pred_region
      %s170 = ssub.s32 1024, 1024
      %171 = vsyncadd [#allocation15], %s170
      %s172 = sshll.u32 [#allocation14], 4
      %s173 = int_to_ptr.vmem [resolvable:$true] %s172
      %178 = dma.hbm_to_vmem [thread:$0]  %s17, 1024, %s173, [#allocation15], 64, 64, 4
    $region37: #{tpu_custom_call.1} parent=1 // pred_fallthru
      _
    // Predicated region
    $region38: #{tpu_custom_call.1} parent=1 // pred_check
      _
    $region39: #{tpu_custom_call.1} parent=1 // pred_check_branch
      %180 = sbr.rel (0) target = $region41
    $region40: #{tpu_custom_call.1} parent=1 // pred_region
      %s182 = ssub.s32 16, 16
      %183 = vsyncadd [#allocation15], %s182
      %s185 = sshll.u32 [#allocation16], 4
      %s186 = int_to_ptr.vmem [resolvable:$true] %s185
      %188 = dma.hbm_to_vmem [thread:$0]  %s19, 16, %s186, [#allocation15]
    $region41: #{tpu_custom_call.1} parent=1 // pred_fallthru
      _
    // Predicated region
    $region42: #{tpu_custom_call.1} parent=1 // pred_check
      _
    $region43: #{tpu_custom_call.1} parent=1 // pred_check_branch
      %190 = sbr.rel (0) target = $region45
    $region44: #{tpu_custom_call.1} parent=1 // pred_region
      %s192 = ssub.s32 16, 16
      %193 = vsyncadd [#allocation18], %s192
      %s195 = sshll.u32 [#allocation17], 4
      %s196 = int_to_ptr.vmem [resolvable:$true] %s195
      %198 = dma.hbm_to_vmem [thread:$0]  %s21, 16, %s196, [#allocation18]
    $region45: #{tpu_custom_call.1} parent=1 // pred_fallthru
      _
    // Predicated region
    $region46: #{tpu_custom_call.1} parent=1 // pred_check
      _
    $region47: #{tpu_custom_call.1} parent=1 // pred_check_branch
      %200 = sbr.rel (0) target = $region49
    $region48: #{tpu_custom_call.1} parent=1 // pred_region
      %s202 = ssub.s32 16, 16
      %203 = vsyncadd [#allocation18], %s202
      %s205 = sshll.u32 [#allocation19], 4
      %s206 = int_to_ptr.vmem [resolvable:$true] %s205
      %208 = dma.hbm_to_vmem [thread:$0]  %s23, 16, %s206, [#allocation18]
    $region49: #{tpu_custom_call.1} parent=1 // pred_fallthru
      _
    // Predicated region
    $region50: #{tpu_custom_call.1} parent=1 // pred_check
      _
    $region51: #{tpu_custom_call.1} parent=1 // pred_check_branch
      %210 = sbr.rel (0) target = $region53
    $region52: #{tpu_custom_call.1} parent=1 // pred_region
      %s212 = ssub.s32 3072, 3072
      %213 = vsyncadd [#allocation21], %s212
      %s214 = sshll.u32 [#allocation20], 4
      %s215 = int_to_ptr.vmem [resolvable:$true] %s214
      %220 = dma.hbm_to_vmem [thread:$0]  %s25, 3072, %s215, [#allocation21], 192, 192, 12
    $region53: #{tpu_custom_call.1} parent=1 // pred_fallthru
      _
    // Predicated region
    $region54: #{tpu_custom_call.1} parent=1 // pred_check
      _
    $region55: #{tpu_custom_call.1} parent=1 // pred_check_branch
      %222 = sbr.rel (0) target = $region57
    $region56: #{tpu_custom_call.1} parent=1 // pred_region
      %s224 = ssub.s32 3072, 3072
      %225 = vsyncadd [#allocation21], %s224
      %s226 = sshll.u32 [#allocation22], 4
      %s227 = int_to_ptr.vmem [resolvable:$true] %s226
      %232 = dma.hbm_to_vmem [thread:$0]  %s27, 3072, %s227, [#allocation21], 192, 192, 12
    $region57: #{tpu_custom_call.1} parent=1 // pred_fallthru
      _
    // Predicated region
    $region58: #{tpu_custom_call.1} parent=1 // pred_check
      _
    $region59: #{tpu_custom_call.1} parent=1 // pred_check_branch
      %234 = sbr.rel (0) target = $region61
    $region60: #{tpu_custom_call.1} parent=1 // pred_region
      %s236 = ssub.s32 48, 48
      %237 = vsyncadd [#allocation24], %s236
      %s239 = sshll.u32 [#allocation23], 4
      %s240 = int_to_ptr.vmem [resolvable:$true] %s239
      %242 = dma.hbm_to_vmem [thread:$0]  %s29, 48, %s240, [#allocation24]
    $region61: #{tpu_custom_call.1} parent=1 // pred_fallthru
      _
    // Predicated region
    $region62: #{tpu_custom_call.1} parent=1 // pred_check
      _
    $region63: #{tpu_custom_call.1} parent=1 // pred_check_branch
      %244 = sbr.rel (0) target = $region65
    $region64: #{tpu_custom_call.1} parent=1 // pred_region
      %s246 = ssub.s32 48, 48
      %247 = vsyncadd [#allocation24], %s246
      %s249 = sshll.u32 [#allocation25], 4
      %s250 = int_to_ptr.vmem [resolvable:$true] %s249
      %252 = dma.hbm_to_vmem [thread:$0]  %s31, 48, %s250, [#allocation24]
    $region65: #{tpu_custom_call.1} parent=1 // pred_fallthru
      _
    // Predicated region
    $region66: #{tpu_custom_call.1} parent=1 // pred_check
      _
    $region67: #{tpu_custom_call.1} parent=1 // pred_check_branch
      %254 = sbr.rel (0) target = $region69
    $region68: #{tpu_custom_call.1} parent=1 // pred_region
      %s256 = ssub.s32 1024, 1024
      %257 = vsyncadd [#allocation27], %s256
      %s258 = sshll.u32 [#allocation26], 4
      %s259 = int_to_ptr.vmem [resolvable:$true] %s258
      %264 = dma.hbm_to_vmem [thread:$0]  %s33, 1024, %s259, [#allocation27], 64, 64, 4
    $region69: #{tpu_custom_call.1} parent=1 // pred_fallthru
      _
    // Predicated region
    $region70: #{tpu_custom_call.1} parent=1 // pred_check
      _
    $region71: #{tpu_custom_call.1} parent=1 // pred_check_branch
      %266 = sbr.rel (0) target = $region73
    $region72: #{tpu_custom_call.1} parent=1 // pred_region
      %s268 = ssub.s32 16, 16
      %269 = vsyncadd [#allocation27], %s268
      %s271 = sshll.u32 [#allocation28], 4
      %s272 = int_to_ptr.vmem [resolvable:$true] %s271
      %274 = dma.hbm_to_vmem [thread:$0]  %s35, 16, %s272, [#allocation27]
    $region73: #{tpu_custom_call.1} parent=1 // pred_fallthru
      _
    // Predicated region
    $region74: #{tpu_custom_call.1} parent=1 // pred_check
      _
    $region75: #{tpu_custom_call.1} parent=1 // pred_check_branch
      %276 = sbr.rel (0) target = $region77
    $region76: #{tpu_custom_call.1} parent=1 // pred_region
      %s278 = ssub.s32 16, 16
      %279 = vsyncadd [#allocation30], %s278
      %s281 = sshll.u32 [#allocation29], 4
      %s282 = int_to_ptr.vmem [resolvable:$true] %s281
      %284 = dma.hbm_to_vmem [thread:$0]  %s37, 16, %s282, [#allocation30]
    $region77: #{tpu_custom_call.1} parent=1 // pred_fallthru
      _
    // Predicated region
    $region78: #{tpu_custom_call.1} parent=1 // pred_check
      _
    $region79: #{tpu_custom_call.1} parent=1 // pred_check_branch
      %286 = sbr.rel (0) target = $region81
    $region80: #{tpu_custom_call.1} parent=1 // pred_region
      %s288 = ssub.s32 16, 16
      %289 = vsyncadd [#allocation30], %s288
      %s291 = sshll.u32 [#allocation31], 4
      %s292 = int_to_ptr.vmem [resolvable:$true] %s291
      %294 = dma.hbm_to_vmem [thread:$0]  %s39, 16, %s292, [#allocation30]
    $region81: #{tpu_custom_call.1} parent=1 // pred_fallthru
      _
    // Predicated region
    $region82: #{tpu_custom_call.1} parent=1 // pred_check
      _
    $region83: #{tpu_custom_call.1} parent=1 // pred_check_branch
      %296 = sbr.rel (0) target = $region85
    $region84: #{tpu_custom_call.1} parent=1 // pred_region
      %s298 = ssub.s32 3072, 3072
      %299 = vsyncadd [#allocation33], %s298
      %s300 = sshll.u32 [#allocation32], 4
      %s301 = int_to_ptr.vmem [resolvable:$true] %s300
      %306 = dma.hbm_to_vmem [thread:$0]  %s41, 3072, %s301, [#allocation33], 192, 192, 12
    $region85: #{tpu_custom_call.1} parent=1 // pred_fallthru
      _
    // Predicated region
    $region86: #{tpu_custom_call.1} parent=1 // pred_check
      _
    $region87: #{tpu_custom_call.1} parent=1 // pred_check_branch
      %308 = sbr.rel (0) target = $region89
    $region88: #{tpu_custom_call.1} parent=1 // pred_region
      %s310 = ssub.s32 3072, 3072
      %311 = vsyncadd [#allocation33], %s310
      %s312 = sshll.u32 [#allocation34], 4
      %s313 = int_to_ptr.vmem [resolvable:$true] %s312
      %318 = dma.hbm_to_vmem [thread:$0]  %s43, 3072, %s313, [#allocation33], 192, 192, 12
    $region89: #{tpu_custom_call.1} parent=1 // pred_fallthru
      _
    // Predicated region
    $region90: #{tpu_custom_call.1} parent=1 // pred_check
      _
    $region91: #{tpu_custom_call.1} parent=1 // pred_check_branch
      %320 = sbr.rel (0) target = $region93
    $region92: #{tpu_custom_call.1} parent=1 // pred_region
      %s322 = ssub.s32 48, 48
      %323 = vsyncadd [#allocation36], %s322
      %s325 = sshll.u32 [#allocation35], 4
      %s326 = int_to_ptr.vmem [resolvable:$true] %s325
      %328 = dma.hbm_to_vmem [thread:$0]  %s45, 48, %s326, [#allocation36]
    $region93: #{tpu_custom_call.1} parent=1 // pred_fallthru
      _
    // Predicated region
    $region94: #{tpu_custom_call.1} parent=1 // pred_check
      _
    $region95: #{tpu_custom_call.1} parent=1 // pred_check_branch
      %330 = sbr.rel (0) target = $region97
    $region96: #{tpu_custom_call.1} parent=1 // pred_region
      %s332 = ssub.s32 48, 48
      %333 = vsyncadd [#allocation36], %s332
      %s335 = sshll.u32 [#allocation37], 4
      %s336 = int_to_ptr.vmem [resolvable:$true] %s335
      %338 = dma.hbm_to_vmem [thread:$0]  %s47, 48, %s336, [#allocation36]
    $region97: #{tpu_custom_call.1} parent=1 // pred_fallthru
      _
    // Predicated region
    $region98: #{tpu_custom_call.1} parent=1 // pred_check
      _
    $region99: #{tpu_custom_call.1} parent=1 // pred_check_branch
      %340 = sbr.rel (0) target = $region101
    $region100: #{tpu_custom_call.1} parent=1 // pred_region
      %s342 = ssub.s32 1024, 1024
      %343 = vsyncadd [#allocation39], %s342
      %s344 = sshll.u32 [#allocation38], 4
      %s345 = int_to_ptr.vmem [resolvable:$true] %s344
      %350 = dma.hbm_to_vmem [thread:$0]  %s49, 1024, %s345, [#allocation39], 64, 64, 4
    $region101: #{tpu_custom_call.1} parent=1 // pred_fallthru
      _
    // Predicated region
    $region102: #{tpu_custom_call.1} parent=1 // pred_check
      _
    $region103: #{tpu_custom_call.1} parent=1 // pred_check_branch
      %352 = sbr.rel (0) target = $region105
    $region104: #{tpu_custom_call.1} parent=1 // pred_region
      %s354 = ssub.s32 16, 16
      %355 = vsyncadd [#allocation39], %s354
      %s357 = sshll.u32 [#allocation40], 4
      %s358 = int_to_ptr.vmem [resolvable:$true] %s357
      %360 = dma.hbm_to_vmem [thread:$0]  %s51, 16, %s358, [#allocation39]
    $region105: #{tpu_custom_call.1} parent=1 // pred_fallthru
      _
    // Predicated region
    $region106: #{tpu_custom_call.1} parent=1 // pred_check
      _
    $region107: #{tpu_custom_call.1} parent=1 // pred_check_branch
      %362 = sbr.rel (0) target = $region109
    $region108: #{tpu_custom_call.1} parent=1 // pred_region
      %s364 = ssub.s32 16, 16
      %365 = vsyncadd [#allocation42], %s364
      %s367 = sshll.u32 [#allocation41], 4
      %s368 = int_to_ptr.vmem [resolvable:$true] %s367
      %370 = dma.hbm_to_vmem [thread:$0]  %s53, 16, %s368, [#allocation42]
    $region109: #{tpu_custom_call.1} parent=1 // pred_fallthru
      _
    // Predicated region
    $region110: #{tpu_custom_call.1} parent=1 // pred_check
      _
    $region111: #{tpu_custom_call.1} parent=1 // pred_check_branch
      %372 = sbr.rel (0) target = $region113
    $region112: #{tpu_custom_call.1} parent=1 // pred_region
      %s374 = ssub.s32 16, 16
      %375 = vsyncadd [#allocation42], %s374
      %s377 = sshll.u32 [#allocation43], 4
      %s378 = int_to_ptr.vmem [resolvable:$true] %s377
      %380 = dma.hbm_to_vmem [thread:$0]  %s55, 16, %s378, [#allocation42]
    $region113: #{tpu_custom_call.1} parent=1 // pred_fallthru
      _
    // Predicated region
    $region114: #{tpu_custom_call.1} parent=1 // pred_check
      _
    $region115: #{tpu_custom_call.1} parent=1 // pred_check_branch
      %382 = sbr.rel (0) target = $region117
    $region116: #{tpu_custom_call.1} parent=1 // pred_region
      %s384 = ssub.s32 3072, 3072
      %385 = vsyncadd [#allocation45], %s384
      %s386 = sshll.u32 [#allocation44], 4
      %s387 = int_to_ptr.vmem [resolvable:$true] %s386
      %392 = dma.hbm_to_vmem [thread:$0]  %s57, 3072, %s387, [#allocation45], 192, 192, 12
    $region117: #{tpu_custom_call.1} parent=1 // pred_fallthru
      _
    // Predicated region
    $region118: #{tpu_custom_call.1} parent=1 // pred_check
      _
    $region119: #{tpu_custom_call.1} parent=1 // pred_check_branch
      %394 = sbr.rel (0) target = $region121
    $region120: #{tpu_custom_call.1} parent=1 // pred_region
      _
    $region121: #{tpu_custom_call.1} parent=1 // pred_fallthru
      _
    // Predicated region
    $region122: #{tpu_custom_call.1} parent=1 // pred_check
      _
    $region123: #{tpu_custom_call.1} parent=1 // pred_check_branch
      %396 = sbr.rel (0) target = $region125
    $region124: #{tpu_custom_call.1} parent=1 // pred_region
      %s398 = ssub.s32 48, 48
      %399 = vsyncadd [#allocation45], %s398
      %s401 = sshll.u32 [#allocation46], 4
      %s402 = int_to_ptr.vmem [resolvable:$true] %s401
      %404 = dma.hbm_to_vmem [thread:$0]  %s61, 48, %s402, [#allocation45]
    $region125: #{tpu_custom_call.1} parent=1 // pred_fallthru
      _
    // Predicated region
    $region126: #{tpu_custom_call.1} parent=1 // pred_check
      _
    $region127: #{tpu_custom_call.1} parent=1 // pred_check_branch
      %406 = sbr.rel (0) target = $region129
    $region128: #{tpu_custom_call.1} parent=1 // pred_region
      %s408 = ssub.s32 48, 48
      %409 = vsyncadd [#allocation48], %s408
      %s411 = sshll.u32 [#allocation47], 4
      %s412 = int_to_ptr.vmem [resolvable:$true] %s411
      %414 = dma.hbm_to_vmem [thread:$0]  %s63, 48, %s412, [#allocation48]
    $region129: #{tpu_custom_call.1} parent=1 // pred_fallthru
      _
    // Predicated region
    $region130: #{tpu_custom_call.1} parent=1 // pred_check
      _
    $region131: #{tpu_custom_call.1} parent=1 // pred_check_branch
      %416 = sbr.rel (0) target = $region133
    $region132: #{tpu_custom_call.1} parent=1 // pred_region
      _
    $region133: #{tpu_custom_call.1} parent=1 // pred_fallthru
      _
    // Predicated region
    $region134: #{tpu_custom_call.1} parent=1 // pred_check
      _
    $region135: #{tpu_custom_call.1} parent=1 // pred_check_branch
      %418 = sbr.rel (0) target = $region137
    $region136: #{tpu_custom_call.1} parent=1 // pred_region
      _
    $region137: #{tpu_custom_call.1} parent=1 // pred_fallthru
      _
    // Predicated region
    $region138: #{tpu_custom_call.1} parent=1 // pred_check
      _
    $region139: #{tpu_custom_call.1} parent=1 // pred_check_branch
      %420 = sbr.rel (0) target = $region141
    $region140: #{tpu_custom_call.1} parent=1 // pred_region
      %421 = dma.done [#allocation3], 128
    $region141: #{tpu_custom_call.1} parent=1 // pred_fallthru
      _
    // Predicated region
    $region142: #{tpu_custom_call.1} parent=1 // pred_check
      _
    $region143: #{tpu_custom_call.1} parent=1 // pred_check_branch
      %423 = sbr.rel (0) target = $region145
    $region144: #{tpu_custom_call.1} parent=1 // pred_region
      %424 = dma.done [#allocation6], 128
    $region145: #{tpu_custom_call.1} parent=1 // pred_fallthru
      _
    // Predicated region
    $region146: #{tpu_custom_call.1} parent=1 // pred_check
      _
    $region147: #{tpu_custom_call.1} parent=1 // pred_check_branch
      %426 = sbr.rel (0) target = $region149
    $region148: #{tpu_custom_call.1} parent=1 // pred_region
      %427 = dma.done [#allocation6], 32
    $region149: #{tpu_custom_call.1} parent=1 // pred_fallthru
      _
    // Predicated region
    $region150: #{tpu_custom_call.1} parent=1 // pred_check
      _
    $region151: #{tpu_custom_call.1} parent=1 // pred_check_branch
      %429 = sbr.rel (0) target = $region153
    $region152: #{tpu_custom_call.1} parent=1 // pred_region
      %430 = dma.done [#allocation9], 128
    $region153: #{tpu_custom_call.1} parent=1 // pred_fallthru
      _
    // Predicated region
    $region154: #{tpu_custom_call.1} parent=1 // pred_check
      _
    $region155: #{tpu_custom_call.1} parent=1 // pred_check_branch
      %432 = sbr.rel (0) target = $region157
    $region156: #{tpu_custom_call.1} parent=1 // pred_region
      %433 = dma.done [#allocation9], 16
    $region157: #{tpu_custom_call.1} parent=1 // pred_fallthru
      _
    // Predicated region
    $region158: #{tpu_custom_call.1} parent=1 // pred_check
      _
    $region159: #{tpu_custom_call.1} parent=1 // pred_check_branch
      %435 = sbr.rel (0) target = $region161
    $region160: #{tpu_custom_call.1} parent=1 // pred_region
      %436 = dma.done [#allocation12], 1024
    $region161: #{tpu_custom_call.1} parent=1 // pred_fallthru
      _
    // Predicated region
    $region162: #{tpu_custom_call.1} parent=1 // pred_check
      _
    $region163: #{tpu_custom_call.1} parent=1 // pred_check_branch
      %438 = sbr.rel (0) target = $region165
    $region164: #{tpu_custom_call.1} parent=1 // pred_region
      %439 = dma.done [#allocation12], 64
    $region165: #{tpu_custom_call.1} parent=1 // pred_fallthru
      _
    // Predicated region
    $region166: #{tpu_custom_call.1} parent=1 // pred_check
      _
    $region167: #{tpu_custom_call.1} parent=1 // pred_check_branch
      %441 = sbr.rel (0) target = $region169
    $region168: #{tpu_custom_call.1} parent=1 // pred_region
      %442 = dma.done [#allocation15], 1024
    $region169: #{tpu_custom_call.1} parent=1 // pred_fallthru
      _
    // Predicated region
    $region170: #{tpu_custom_call.1} parent=1 // pred_check
      _
    $region171: #{tpu_custom_call.1} parent=1 // pred_check_branch
      %444 = sbr.rel (0) target = $region173
    $region172: #{tpu_custom_call.1} parent=1 // pred_region
      %445 = dma.done [#allocation15], 16
    $region173: #{tpu_custom_call.1} parent=1 // pred_fallthru
      _
    // Predicated region
    $region174: #{tpu_custom_call.1} parent=1 // pred_check
      _
    $region175: #{tpu_custom_call.1} parent=1 // pred_check_branch
      %447 = sbr.rel (0) target = $region177
    $region176: #{tpu_custom_call.1} parent=1 // pred_region
      %448 = dma.done [#allocation18], 16
    $region177: #{tpu_custom_call.1} parent=1 // pred_fallthru
      _
    // Predicated region
    $region178: #{tpu_custom_call.1} parent=1 // pred_check
      _
    $region179: #{tpu_custom_call.1} parent=1 // pred_check_branch
      %450 = sbr.rel (0) target = $region181
    $region180: #{tpu_custom_call.1} parent=1 // pred_region
      %451 = dma.done [#allocation18], 16
    $region181: #{tpu_custom_call.1} parent=1 // pred_fallthru
      _
    // Predicated region
    $region182: #{tpu_custom_call.1} parent=1 // pred_check
      _
    $region183: #{tpu_custom_call.1} parent=1 // pred_check_branch
      %453 = sbr.rel (0) target = $region185
    $region184: #{tpu_custom_call.1} parent=1 // pred_region
      %454 = dma.done [#allocation21], 3072
    $region185: #{tpu_custom_call.1} parent=1 // pred_fallthru
      _
    // Predicated region
    $region186: #{tpu_custom_call.1} parent=1 // pred_check
      _
    $region187: #{tpu_custom_call.1} parent=1 // pred_check_branch
      %456 = sbr.rel (0) target = $region189
    $region188: #{tpu_custom_call.1} parent=1 // pred_region
      %457 = dma.done [#allocation21], 3072
    $region189: #{tpu_custom_call.1} parent=1 // pred_fallthru
      _
    // Predicated region
    $region190: #{tpu_custom_call.1} parent=1 // pred_check
      _
    $region191: #{tpu_custom_call.1} parent=1 // pred_check_branch
      %459 = sbr.rel (0) target = $region193
    $region192: #{tpu_custom_call.1} parent=1 // pred_region
      %460 = dma.done [#allocation24], 48
    $region193: #{tpu_custom_call.1} parent=1 // pred_fallthru
      _
    // Predicated region
    $region194: #{tpu_custom_call.1} parent=1 // pred_check
      _
    $region195: #{tpu_custom_call.1} parent=1 // pred_check_branch
      %462 = sbr.rel (0) target = $region197
    $region196: #{tpu_custom_call.1} parent=1 // pred_region
      %463 = dma.done [#allocation24], 48
    $region197: #{tpu_custom_call.1} parent=1 // pred_fallthru
      _
    // Predicated region
    $region198: #{tpu_custom_call.1} parent=1 // pred_check
      _
    $region199: #{tpu_custom_call.1} parent=1 // pred_check_branch
      %465 = sbr.rel (0) target = $region201
    $region200: #{tpu_custom_call.1} parent=1 // pred_region
      %466 = dma.done [#allocation27], 1024
    $region201: #{tpu_custom_call.1} parent=1 // pred_fallthru
      _
    // Predicated region
    $region202: #{tpu_custom_call.1} parent=1 // pred_check
      _
    $region203: #{tpu_custom_call.1} parent=1 // pred_check_branch
      %468 = sbr.rel (0) target = $region205
    $region204: #{tpu_custom_call.1} parent=1 // pred_region
      %469 = dma.done [#allocation27], 16
    $region205: #{tpu_custom_call.1} parent=1 // pred_fallthru
      _
    // Predicated region
    $region206: #{tpu_custom_call.1} parent=1 // pred_check
      _
    $region207: #{tpu_custom_call.1} parent=1 // pred_check_branch
      %471 = sbr.rel (0) target = $region209
    $region208: #{tpu_custom_call.1} parent=1 // pred_region
      %472 = dma.done [#allocation30], 16
    $region209: #{tpu_custom_call.1} parent=1 // pred_fallthru
      _
    // Predicated region
    $region210: #{tpu_custom_call.1} parent=1 // pred_check
      _
    $region211: #{tpu_custom_call.1} parent=1 // pred_check_branch
      %474 = sbr.rel (0) target = $region213
    $region212: #{tpu_custom_call.1} parent=1 // pred_region
      %475 = dma.done [#allocation30], 16
    $region213: #{tpu_custom_call.1} parent=1 // pred_fallthru
      _
    // Predicated region
    $region214: #{tpu_custom_call.1} parent=1 // pred_check
      _
    $region215: #{tpu_custom_call.1} parent=1 // pred_check_branch
      %477 = sbr.rel (0) target = $region217
    $region216: #{tpu_custom_call.1} parent=1 // pred_region
      %478 = dma.done [#allocation33], 3072
    $region217: #{tpu_custom_call.1} parent=1 // pred_fallthru
      _
    // Predicated region
    $region218: #{tpu_custom_call.1} parent=1 // pred_check
      _
    $region219: #{tpu_custom_call.1} parent=1 // pred_check_branch
      %480 = sbr.rel (0) target = $region221
    $region220: #{tpu_custom_call.1} parent=1 // pred_region
      %481 = dma.done [#allocation33], 3072
    $region221: #{tpu_custom_call.1} parent=1 // pred_fallthru
      _
    // Predicated region
    $region222: #{tpu_custom_call.1} parent=1 // pred_check
      _
    $region223: #{tpu_custom_call.1} parent=1 // pred_check_branch
      %483 = sbr.rel (0) target = $region225
    $region224: #{tpu_custom_call.1} parent=1 // pred_region
      %484 = dma.done [#allocation36], 48
    $region225: #{tpu_custom_call.1} parent=1 // pred_fallthru
      _
    // Predicated region
    $region226: #{tpu_custom_call.1} parent=1 // pred_check
      _
    $region227: #{tpu_custom_call.1} parent=1 // pred_check_branch
      %486 = sbr.rel (0) target = $region229
    $region228: #{tpu_custom_call.1} parent=1 // pred_region
      %487 = dma.done [#allocation36], 48
    $region229: #{tpu_custom_call.1} parent=1 // pred_fallthru
      _
    // Predicated region
    $region230: #{tpu_custom_call.1} parent=1 // pred_check
      _
    $region231: #{tpu_custom_call.1} parent=1 // pred_check_branch
      %489 = sbr.rel (0) target = $region233
    $region232: #{tpu_custom_call.1} parent=1 // pred_region
      %490 = dma.done [#allocation39], 1024
    $region233: #{tpu_custom_call.1} parent=1 // pred_fallthru
      _
    // Predicated region
    $region234: #{tpu_custom_call.1} parent=1 // pred_check
      _
    $region235: #{tpu_custom_call.1} parent=1 // pred_check_branch
      %492 = sbr.rel (0) target = $region237
    $region236: #{tpu_custom_call.1} parent=1 // pred_region
      %493 = dma.done [#allocation39], 16
    $region237: #{tpu_custom_call.1} parent=1 // pred_fallthru
      _
    // Predicated region
    $region238: #{tpu_custom_call.1} parent=1 // pred_check
      _
    $region239: #{tpu_custom_call.1} parent=1 // pred_check_branch
      %495 = sbr.rel (0) target = $region241
    $region240: #{tpu_custom_call.1} parent=1 // pred_region
      %496 = dma.done [#allocation42], 16
    $region241: #{tpu_custom_call.1} parent=1 // pred_fallthru
      _
    // Predicated region
    $region242: #{tpu_custom_call.1} parent=1 // pred_check
      _
    $region243: #{tpu_custom_call.1} parent=1 // pred_check_branch
      %498 = sbr.rel (0) target = $region245
    $region244: #{tpu_custom_call.1} parent=1 // pred_region
      %499 = dma.done [#allocation42], 16
    $region245: #{tpu_custom_call.1} parent=1 // pred_fallthru
      _
    // Predicated region
    $region246: #{tpu_custom_call.1} parent=1 // pred_check
      _
    $region247: #{tpu_custom_call.1} parent=1 // pred_check_branch
      %501 = sbr.rel (0) target = $region249
    $region248: #{tpu_custom_call.1} parent=1 // pred_region
      %502 = dma.done [#allocation45], 3072
    $region249: #{tpu_custom_call.1} parent=1 // pred_fallthru
      _
    // Predicated region
    $region250: #{tpu_custom_call.1} parent=1 // pred_check
      _
    $region251: #{tpu_custom_call.1} parent=1 // pred_check_branch
      %504 = sbr.rel (0) target = $region253
    $region252: #{tpu_custom_call.1} parent=1 // pred_region
      %505 = dma.done [#allocation45], 48
    $region253: #{tpu_custom_call.1} parent=1 // pred_fallthru
      _
    // Predicated region
    $region254: #{tpu_custom_call.1} parent=1 // pred_check
      _
    $region255: #{tpu_custom_call.1} parent=1 // pred_check_branch
      %507 = sbr.rel (0) target = $region257
    $region256: #{tpu_custom_call.1} parent=1 // pred_region
      %508 = dma.done [#allocation48], 48
    $region257: #{tpu_custom_call.1} parent=1 // pred_fallthru
      _
    %v510 = vld [vmem:[#allocation5] sm:$0xff]
    %v511 = vld [vmem:[#allocation7] sm:$0x3]
    %v512 = vld [vmem:[#allocation2] sm:$0xff]
    %v513 = vld [vmem:[#allocation8] sm:$0xf]
    %v514 = vld [vmem:[#allocation8 + $0x4] sm:$0xf]
    %v515 = vpack.c.bf16 %v512, %v512
    %v516 = vld [vmem:[#allocation10] sm:$0x1]
    %v518 = vlaneseq
    %v519 = vshrl.u32 %v518, 7
    %v520 = vsub.s32 0, %v519
    %v521 = vrot.slane %v516, %v520
    %v525 = vunpack.c.l.b16 %v513
    %v526 = vunpack.c.l.b16 %v514
    %v527 = vpack.c.b16 %v526, %v525
    %vm529 = vcmask 130048
    %v531 = vsel %vm529, %v515, 0
    %533 = vmatprep.subr.bf16.mxu0 0
    %534 = vmatpush1.bf16.msra.mxu0 0
    %535 = vmatprep.subr.bf16.mxu0 0
    %536 = vmatpush1.bf16.msra.mxu0 0
    %537 = vmatprep.subr.bf16.mxu0 0
    %538 = vmatpush1.bf16.msra.mxu0 0
    %539 = vmatprep.subr.bf16.mxu0 0
    %540 = vmatpush1.bf16.msra.mxu0 0
    %541 = vmatprep.subr.bf16.mxu0 0
    %542 = vmatpush1.bf16.msra.mxu0 0
    %543 = vmatprep.subr.bf16.mxu0 0
    %544 = vmatpush1.bf16.msra.mxu0 0
    %545 = vmatprep.subr.bf16.mxu0 0
    %546 = vmatpush1.bf16.msra.mxu0 0
    %547 = vmatprep.subr.bf16.mxu0 0
    %548 = vmatpush1.bf16.msra.mxu0 %v527
    %549 = vmatprep.subr.bf16.mxu0 0
    %550 = vmatpush2.bf16.msra.mxu0 0
    %551 = vmatprep.subr.bf16.mxu0 0
    %552 = vmatpush2.bf16.msra.mxu0 0
    %553 = vmatprep.subr.bf16.mxu0 0
    %554 = vmatpush2.bf16.msra.mxu0 0
    %555 = vmatprep.subr.bf16.mxu0 0
    %556 = vmatpush2.bf16.msra.mxu0 0
    %557 = vmatprep.subr.bf16.mxu0 0
    %558 = vmatpush2.bf16.msra.mxu0 0
    %559 = vmatprep.subr.bf16.mxu0 0
    %560 = vmatpush2.bf16.msra.mxu0 0
    %561 = vmatprep.subr.bf16.mxu0 0
    %562 = vmatpush2.bf16.msra.mxu0 0
    %563 = vmatprep.subr.bf16.mxu0 0
    %564 = vmatpush2.bf16.msra.mxu0 0
    %565 = vmatprep.mubr.bf16.mxu0 0
    %566 = vmatmul.mubr.bf16.gmra.mxu0 %v531
    %v567 = vpop.f32.mrf.mxu0
    %v568 = vadd.f32 %v521, %v567
    %v569 = vpop.f32.mrf.mxu0
    %v570 = vpop.f32.mrf.mxu0
    %v571 = vpop.f32.mrf.mxu0
    %572 = vdwg.mxu0
    %vm573 = vcmp.gt.f32.partialorder %v568, 0.0
    %v574 = vmul.f32 %v568, 0.01
    %v575 = vsel %vm573, %v568, %v574
    %v576 = vld [vmem:[#allocation11] sm:$0xf]
    %v577 = vld [vmem:[#allocation11 + $0x4] sm:$0xf]
    %v578 = vld [vmem:[#allocation11 + $0x8] sm:$0xf]
    %v579 = vld [vmem:[#allocation11 + $0xc] sm:$0xf]
    %v580 = vld [vmem:[#allocation11 + $0x10] sm:$0xf]
    %v581 = vld [vmem:[#allocation11 + $0x14] sm:$0xf]
    %v582 = vld [vmem:[#allocation11 + $0x18] sm:$0xf]
    %v583 = vld [vmem:[#allocation11 + $0x1c] sm:$0xf]
    %v584 = vld [vmem:[#allocation11 + $0x20] sm:$0xf]
    %v585 = vld [vmem:[#allocation11 + $0x24] sm:$0xf]
    %v586 = vld [vmem:[#allocation11 + $0x28] sm:$0xf]
    %v587 = vld [vmem:[#allocation11 + $0x2c] sm:$0xf]
    %v588 = vld [vmem:[#allocation11 + $0x30] sm:$0xf]
    %v589 = vld [vmem:[#allocation11 + $0x34] sm:$0xf]
    %v590 = vld [vmem:[#allocation11 + $0x38] sm:$0xf]
    %v591 = vld [vmem:[#allocation11 + $0x3c] sm:$0xf]
    %v592 = vpack.c.bf16 %v575, %v575
    %v609 = vunpack.c.l.b16 %v576
    %v610 = vunpack.c.l.b16 %v577
    %v611 = vunpack.c.l.b16 %v578
    %v612 = vunpack.c.l.b16 %v579
    %v613 = vunpack.c.l.b16 %v580
    %v614 = vunpack.c.l.b16 %v581
    %v615 = vunpack.c.l.b16 %v582
    %v616 = vunpack.c.l.b16 %v583
    %v617 = vunpack.c.l.b16 %v584
    %v618 = vunpack.c.l.b16 %v585
    %v619 = vunpack.c.l.b16 %v586
    %v620 = vunpack.c.l.b16 %v587
    %v621 = vunpack.c.l.b16 %v588
    %v622 = vunpack.c.l.b16 %v589
    %v623 = vunpack.c.l.b16 %v590
    %v624 = vunpack.c.l.b16 %v591
    %v625 = vpack.c.b16 %v610, %v609
    %v626 = vpack.c.b16 %v612, %v611
    %v627 = vpack.c.b16 %v614, %v613
    %v628 = vpack.c.b16 %v616, %v615
    %v629 = vpack.c.b16 %v618, %v617
    %v630 = vpack.c.b16 %v620, %v619
    %v631 = vpack.c.b16 %v622, %v621
    %v632 = vpack.c.b16 %v624, %v623
    %641 = vmatprep.subr.bf16.mxu0 0
    %642 = vmatpush1.bf16.msra.mxu0 %v632
    %643 = vmatprep.subr.bf16.mxu0 0
    %644 = vmatpush1.bf16.msra.mxu0 %v631
    %645 = vmatprep.subr.bf16.mxu0 0
    %646 = vmatpush1.bf16.msra.mxu0 %v630
    %647 = vmatprep.subr.bf16.mxu0 0
    %648 = vmatpush1.bf16.msra.mxu0 %v629
    %649 = vmatprep.subr.bf16.mxu0 0
    %650 = vmatpush1.bf16.msra.mxu0 %v628
    %651 = vmatprep.subr.bf16.mxu0 0
    %652 = vmatpush1.bf16.msra.mxu0 %v627
    %653 = vmatprep.subr.bf16.mxu0 0
    %654 = vmatpush1.bf16.msra.mxu0 %v626
    %655 = vmatprep.subr.bf16.mxu0 0
    %656 = vmatpush1.bf16.msra.mxu0 %v625
    %657 = vmatprep.subr.bf16.mxu0 0
    %658 = vmatpush2.bf16.msra.mxu0 0
    %659 = vmatprep.subr.bf16.mxu0 0
    %660 = vmatpush2.bf16.msra.mxu0 0
    %661 = vmatprep.subr.bf16.mxu0 0
    %662 = vmatpush2.bf16.msra.mxu0 0
    %663 = vmatprep.subr.bf16.mxu0 0
    %664 = vmatpush2.bf16.msra.mxu0 0
    %665 = vmatprep.subr.bf16.mxu0 0
    %666 = vmatpush2.bf16.msra.mxu0 0
    %667 = vmatprep.subr.bf16.mxu0 0
    %668 = vmatpush2.bf16.msra.mxu0 0
    %669 = vmatprep.subr.bf16.mxu0 0
    %670 = vmatpush2.bf16.msra.mxu0 0
    %671 = vmatprep.subr.bf16.mxu0 0
    %672 = vmatpush2.bf16.msra.mxu0 0
    %673 = vmatprep.mubr.bf16.mxu0 0
    %674 = vmatmul.mubr.bf16.gmra.mxu0 %v592
    %v675 = vpop.f32.mrf.mxu0
    %v676 = vadd.f32 0.0, %v675
    %v677 = vpop.f32.mrf.mxu0
    %v678 = vpop.f32.mrf.mxu0
    %v679 = vpop.f32.mrf.mxu0
    %680 = vdwg.mxu0
    %v681 = vld [vmem:[%s3] sm:$0xff]
    %v682 = vld [vmem:[%s3 + $0x8] sm:$0xff]
    %v683 = vld [vmem:[%s3 + $0x10] sm:$0xff]
    %v684 = vld [vmem:[%s3 + $0x18] sm:$0xff]
    %v685 = vld [vmem:[%s3 + $0x20] sm:$0xff]
    %v686 = vld [vmem:[%s3 + $0x28] sm:$0xff]
    %v687 = vld [vmem:[%s3 + $0x30] sm:$0xff]
    %v688 = vld [vmem:[%s3 + $0x38] sm:$0xff]
    %v689 = vld [vmem:[#allocation13] sm:$0xf]
    %v690 = vpack.c.bf16 %v682, %v681
    %v691 = vpack.c.bf16 %v684, %v683
    %v692 = vpack.c.bf16 %v686, %v685
    %v693 = vpack.c.bf16 %v688, %v687
    %vm694 = vcmask 64512
    %v696 = vsel %vm694, %v690, 0
    %v699 = vsel %vm694, %v691, 0
    %v702 = vsel %vm694, %v692, 0
    %v705 = vsel %vm694, %v693, 0
    %vm707 = vcmask 1043456
    %v709 = vsel %vm707, %v689, 0
    %711 = vmatprep.subr.bf16.mxu0 0
    %712 = vmatpush1.bf16.msra.mxu0 0
    %713 = vmatprep.subr.bf16.mxu0 0
    %714 = vmatpush1.bf16.msra.mxu0 0
    %715 = vmatprep.subr.bf16.mxu0 0
    %716 = vmatpush1.bf16.msra.mxu0 0
    %717 = vmatprep.subr.bf16.mxu0 0
    %718 = vmatpush1.bf16.msra.mxu0 0
    %719 = vmatprep.subr.bf16.mxu0 0
    %720 = vmatpush1.bf16.msra.mxu0 0
    %721 = vmatprep.subr.bf16.mxu0 0
    %722 = vmatpush1.bf16.msra.mxu0 0
    %723 = vmatprep.subr.bf16.mxu0 0
    %724 = vmatpush1.bf16.msra.mxu0 0
    %725 = vmatprep.subr.bf16.mxu0 0
    %726 = vmatpush1.bf16.msra.mxu0 %v709
    %727 = vmatprep.subr.bf16.mxu0 0
    %728 = vmatpush2.bf16.msra.mxu0 0
    %729 = vmatprep.subr.bf16.mxu0 0
    %730 = vmatpush2.bf16.msra.mxu0 0
    %731 = vmatprep.subr.bf16.mxu0 0
    %732 = vmatpush2.bf16.msra.mxu0 0
    %733 = vmatprep.subr.bf16.mxu0 0
    %734 = vmatpush2.bf16.msra.mxu0 0
    %735 = vmatprep.subr.bf16.mxu0 0
    %736 = vmatpush2.bf16.msra.mxu0 0
    %737 = vmatprep.subr.bf16.mxu0 0
    %738 = vmatpush2.bf16.msra.mxu0 0
    %739 = vmatprep.subr.bf16.mxu0 0
    %740 = vmatpush2.bf16.msra.mxu0 0
    %741 = vmatprep.subr.bf16.mxu0 0
    %742 = vmatpush2.bf16.msra.mxu0 0
    %743 = vmatprep.mubr.bf16.mxu0 0
    %744 = vmatmul.mubr.bf16.gmra.mxu0 %v696
    %v745 = vpop.f32.mrf.mxu0
    %v746 = vadd.f32 0.0, %v745
    %v747 = vpop.f32.mrf.mxu0
    %v748 = vpop.f32.mrf.mxu0
    %v749 = vadd.f32 0.0, %v748
    %v750 = vpop.f32.mrf.mxu0
    %751 = vmatprep.mubr.bf16.mxu0 0
    %752 = vmatmul.mubr.bf16.gmra.mxu0 %v699
    %v753 = vpop.f32.mrf.mxu0
    %v754 = vadd.f32 0.0, %v753
    %v755 = vpop.f32.mrf.mxu0
    %v756 = vpop.f32.mrf.mxu0
    %v757 = vadd.f32 0.0, %v756
    %v758 = vpop.f32.mrf.mxu0
    %759 = vmatprep.mubr.bf16.mxu0 0
    %760 = vmatmul.mubr.bf16.gmra.mxu0 %v702
    %v761 = vpop.f32.mrf.mxu0
    %v762 = vadd.f32 0.0, %v761
    %v763 = vpop.f32.mrf.mxu0
    %v764 = vpop.f32.mrf.mxu0
    %v765 = vadd.f32 0.0, %v764
    %v766 = vpop.f32.mrf.mxu0
    %767 = vmatprep.mubr.bf16.mxu0 0
    %768 = vmatmul.mubr.bf16.gmra.mxu0 %v705
    %v769 = vpop.f32.mrf.mxu0
    %v770 = vadd.f32 0.0, %v769
    %v771 = vpop.f32.mrf.mxu0
    %v772 = vpop.f32.mrf.mxu0
    %v773 = vadd.f32 0.0, %v772
    %v774 = vpop.f32.mrf.mxu0
    %775 = vdwg.mxu0
    %v776 = vadd.f32 %v676, %v746
    %v777 = vadd.f32 %v676, %v749
    %v778 = vadd.f32 %v676, %v754
    %v779 = vadd.f32 %v676, %v757
    %v780 = vadd.f32 %v676, %v762
    %v781 = vadd.f32 %v676, %v765
    %v782 = vadd.f32 %v676, %v770
    %v783 = vadd.f32 %v676, %v773
    %vm784 = vcmp.gt.f32.partialorder %v776, 0.0
    %vm785 = vcmp.gt.f32.partialorder %v777, 0.0
    %vm786 = vcmp.gt.f32.partialorder %v778, 0.0
    %vm787 = vcmp.gt.f32.partialorder %v779, 0.0
    %vm788 = vcmp.gt.f32.partialorder %v780, 0.0
    %vm789 = vcmp.gt.f32.partialorder %v781, 0.0
    %vm790 = vcmp.gt.f32.partialorder %v782, 0.0
    %vm791 = vcmp.gt.f32.partialorder %v783, 0.0
    %v792 = vmul.f32 %v776, 0.01
    %v793 = vmul.f32 %v777, 0.01
    %v794 = vmul.f32 %v778, 0.01
    %v795 = vmul.f32 %v779, 0.01
    %v796 = vmul.f32 %v780, 0.01
    %v797 = vmul.f32 %v781, 0.01
    %v798 = vmul.f32 %v782, 0.01
    %v799 = vmul.f32 %v783, 0.01
    %v800 = vsel %vm784, %v776, %v792
    %v801 = vsel %vm785, %v777, %v793
    %v802 = vsel %vm786, %v778, %v794
    %v803 = vsel %vm787, %v779, %v795
    %v804 = vsel %vm788, %v780, %v796
    %v805 = vsel %vm789, %v781, %v797
    %v806 = vsel %vm790, %v782, %v798
    %v807 = vsel %vm791, %v783, %v799
    %v808 = vld [vmem:[#allocation16] sm:$0x1]
    %v810 = vlaneseq
    %v811 = vshrl.u32 %v810, 7
    %v812 = vsub.s32 0, %v811
    %v813 = vrot.slane %v808, %v812
    %v815 = vmul.f32 %v800, %v813
    %v816 = vmul.f32 %v801, %v813
    %v817 = vmul.f32 %v802, %v813
    %v818 = vmul.f32 %v803, %v813
    %v819 = vmul.f32 %v804, %v813
    %v820 = vmul.f32 %v805, %v813
    %v821 = vmul.f32 %v806, %v813
    %v822 = vmul.f32 %v807, %v813
    %823 = vadd.xlane.f32.xlu0 %v815
    %v824 = vpop.xlane.xlu0 %823
    %825 = vadd.xlane.f32.xlu0 %v816
    %v826 = vpop.xlane.xlu0 %825
    %827 = vadd.xlane.f32.xlu0 %v817
    %v828 = vpop.xlane.xlu0 %827
    %829 = vadd.xlane.f32.xlu0 %v818
    %v830 = vpop.xlane.xlu0 %829
    %831 = vadd.xlane.f32.xlu0 %v819
    %v832 = vpop.xlane.xlu0 %831
    %833 = vadd.xlane.f32.xlu0 %v820
    %v834 = vpop.xlane.xlu0 %833
    %835 = vadd.xlane.f32.xlu0 %v821
    %v836 = vpop.xlane.xlu0 %835
    %837 = vadd.xlane.f32.xlu0 %v822
    %v838 = vpop.xlane.xlu0 %837
    %v839 = vld [vmem:[#allocation17] sm:$0x1]
    %v841 = vlaneseq
    %v842 = vshrl.u32 %v841, 7
    %v843 = vsub.s32 0, %v842
    %v844 = vrot.slane %v839, %v843
    %v846 = vmul.f32 %v575, %v844
    %847 = vadd.xlane.f32.xlu0 %v846
    %v848 = vpop.xlane.xlu0 %847
    %v850 = vlaneseq
    %v851 = vshrl.u32 %v850, 7
    %v852 = vsub.s32 0, %v851
    %v853 = vrot.slane %v848, %v852
    %v854 = vlaneseq
    %v855 = vshrl.u32 %v854, 7
    %v856 = vsub.s32 1, %v855
    %v857 = vrot.slane %v848, %v856
    %v858 = vlaneseq
    %v859 = vshrl.u32 %v858, 7
    %v860 = vsub.s32 2, %v859
    %v861 = vrot.slane %v848, %v860
    %v862 = vlaneseq
    %v863 = vshrl.u32 %v862, 7
    %v864 = vsub.s32 3, %v863
    %v865 = vrot.slane %v848, %v864
    %v866 = vlaneseq
    %v867 = vshrl.u32 %v866, 7
    %v868 = vsub.s32 4, %v867
    %v869 = vrot.slane %v848, %v868
    %v870 = vlaneseq
    %v871 = vshrl.u32 %v870, 7
    %v872 = vsub.s32 5, %v871
    %v873 = vrot.slane %v848, %v872
    %v874 = vlaneseq
    %v875 = vshrl.u32 %v874, 7
    %v876 = vsub.s32 6, %v875
    %v877 = vrot.slane %v848, %v876
    %v878 = vlaneseq
    %v879 = vshrl.u32 %v878, 7
    %v880 = vsub.s32 7, %v879
    %v881 = vrot.slane %v848, %v880
    %v890 = vadd.f32 %v824, %v853
    %v891 = vadd.f32 %v826, %v857
    %v892 = vadd.f32 %v828, %v861
    %v893 = vadd.f32 %v830, %v865
    %v894 = vadd.f32 %v832, %v869
    %v895 = vadd.f32 %v834, %v873
    %v896 = vadd.f32 %v836, %v877
    %v897 = vadd.f32 %v838, %v881
    %vm898 = vcmp.gt.f32.partialorder %v890, 0.0
    %vm899 = vcmp.gt.f32.partialorder %v891, 0.0
    %vm900 = vcmp.gt.f32.partialorder %v892, 0.0
    %vm901 = vcmp.gt.f32.partialorder %v893, 0.0
    %vm902 = vcmp.gt.f32.partialorder %v894, 0.0
    %vm903 = vcmp.gt.f32.partialorder %v895, 0.0
    %vm904 = vcmp.gt.f32.partialorder %v896, 0.0
    %vm905 = vcmp.gt.f32.partialorder %v897, 0.0
    %v906 = vmul.f32 %v890, 0.01
    %v907 = vmul.f32 %v891, 0.01
    %v908 = vmul.f32 %v892, 0.01
    %v909 = vmul.f32 %v893, 0.01
    %v910 = vmul.f32 %v894, 0.01
    %v911 = vmul.f32 %v895, 0.01
    %v912 = vmul.f32 %v896, 0.01
    %v913 = vmul.f32 %v897, 0.01
    %v914 = vsel %vm898, %v890, %v906
    %v915 = vsel %vm899, %v891, %v907
    %v916 = vsel %vm900, %v892, %v908
    %v917 = vsel %vm901, %v893, %v909
    %v918 = vsel %vm902, %v894, %v910
    %v919 = vsel %vm903, %v895, %v911
    %v920 = vsel %vm904, %v896, %v912
    %v921 = vsel %vm905, %v897, %v913
    %vm922 = vcmp.gt.f32.partialorder %v510, 0.0
    %931 = vset.pattern.permute.xlu0 0
    %932 = vperm.xlu0 %931, %v914
    %v933 = vpop.permute.xlu0 %932
    %934 = vset.pattern.permute.xlu0 0
    %935 = vperm.xlu0 %934, %v915
    %v936 = vpop.permute.xlu0 %935
    %937 = vset.pattern.permute.xlu0 0
    %938 = vperm.xlu0 %937, %v916
    %v939 = vpop.permute.xlu0 %938
    %940 = vset.pattern.permute.xlu0 0
    %941 = vperm.xlu0 %940, %v917
    %v942 = vpop.permute.xlu0 %941
    %943 = vset.pattern.permute.xlu0 0
    %944 = vperm.xlu0 %943, %v918
    %v945 = vpop.permute.xlu0 %944
    %946 = vset.pattern.permute.xlu0 0
    %947 = vperm.xlu0 %946, %v919
    %v948 = vpop.permute.xlu0 %947
    %949 = vset.pattern.permute.xlu0 0
    %950 = vperm.xlu0 %949, %v920
    %v951 = vpop.permute.xlu0 %950
    %952 = vset.pattern.permute.xlu0 0
    %953 = vperm.xlu0 %952, %v921
    %v954 = vpop.permute.xlu0 %953
    %v955 = vlaneseq
    %v956 = vand.u32 %v955, 127
    %v957 = vlaneseq
    %v958 = vshrl.u32 %v957, 7
    %v959 = vsub.s32 %v956, %v958
    %v960 = vrot.slane %v933, %v959
    %v961 = vlaneseq
    %v962 = vshrl.u32 %v961, 7
    %v963 = vsub.s32 %v956, %v962
    %v964 = vrot.slane %v936, %v963
    %v965 = vlaneseq
    %v966 = vshrl.u32 %v965, 7
    %v967 = vsub.s32 %v956, %v966
    %v968 = vrot.slane %v939, %v967
    %v969 = vlaneseq
    %v970 = vshrl.u32 %v969, 7
    %v971 = vsub.s32 %v956, %v970
    %v972 = vrot.slane %v942, %v971
    %v973 = vlaneseq
    %v974 = vshrl.u32 %v973, 7
    %v975 = vsub.s32 %v956, %v974
    %v976 = vrot.slane %v945, %v975
    %v977 = vlaneseq
    %v978 = vshrl.u32 %v977, 7
    %v979 = vsub.s32 %v956, %v978
    %v980 = vrot.slane %v948, %v979
    %v981 = vlaneseq
    %v982 = vshrl.u32 %v981, 7
    %v983 = vsub.s32 %v956, %v982
    %v984 = vrot.slane %v951, %v983
    %v985 = vlaneseq
    %v986 = vshrl.u32 %v985, 7
    %v987 = vsub.s32 %v956, %v986
    %v988 = vrot.slane %v954, %v987
    %vm989 = vcmask 1041409
    %v990 = vsel %vm989, %v964, %v960
    %vm991 = vcmask 1042434
    %v992 = vsel %vm991, %v968, %v990
    %vm993 = vcmask 1043459
    %v994 = vsel %vm993, %v972, %v992
    %vm995 = vcmask 1044484
    %v996 = vsel %vm995, %v976, %v994
    %vm997 = vcmask 1045509
    %v998 = vsel %vm997, %v980, %v996
    %vm999 = vcmask 1046534
    %v1000 = vsel %vm999, %v984, %v998
    %vm1001 = vcmask 1047559
    %v1002 = vsel %vm1001, %v988, %v1000
    %v1004 = vsel %vm922, %v1002, -1e+30
    %v1005 = vsel %vm694, %v1004, -inf
    %1006 = vmax.xlane.f32.xlu0 %v1005
    %v1007 = vpop.xlane.xlu0 %1006
    %v1008 = vsub.f32 %v1004, %v1007
    %v1009 = vmul.f32 %v1008, 1.442695
    %v1010 = vpow.pop %v1009
    %v1011 = vsel %vm922, %v1010, 0.0
    %v1012 = vsel %vm694, %v1011, 0.0
    %1013 = vadd.xlane.f32.xlu0 %v1012
    %v1014 = vpop.xlane.xlu0 %1013
    %v1015 = vmax.f32 %v1014, 1e-16
    %v1016 = vrcp.pop %v1015
    %v1017 = vmul.f32 %v1011, %v1016
    %v1018 = vld [vmem:[#allocation14] sm:$0xf]
    %v1019 = vld [vmem:[#allocation14 + $0x4] sm:$0xf]
    %v1020 = vld [vmem:[#allocation14 + $0x8] sm:$0xf]
    %v1021 = vld [vmem:[#allocation14 + $0xc] sm:$0xf]
    %v1022 = vld [vmem:[#allocation14 + $0x10] sm:$0xf]
    %v1023 = vld [vmem:[#allocation14 + $0x14] sm:$0xf]
    %v1024 = vld [vmem:[#allocation14 + $0x18] sm:$0xf]
    %v1025 = vld [vmem:[#allocation14 + $0x1c] sm:$0xf]
    %v1026 = vld [vmem:[#allocation14 + $0x20] sm:$0xf]
    %v1027 = vld [vmem:[#allocation14 + $0x24] sm:$0xf]
    %v1028 = vld [vmem:[#allocation14 + $0x28] sm:$0xf]
    %v1029 = vld [vmem:[#allocation14 + $0x2c] sm:$0xf]
    %v1030 = vld [vmem:[#allocation14 + $0x30] sm:$0xf]
    %v1031 = vld [vmem:[#allocation14 + $0x34] sm:$0xf]
    %v1032 = vld [vmem:[#allocation14 + $0x38] sm:$0xf]
    %v1033 = vld [vmem:[#allocation14 + $0x3c] sm:$0xf]
    %v1050 = vunpack.c.l.b16 %v1018
    %v1051 = vunpack.c.l.b16 %v1019
    %v1052 = vunpack.c.l.b16 %v1020
    %v1053 = vunpack.c.l.b16 %v1021
    %v1054 = vunpack.c.l.b16 %v1022
    %v1055 = vunpack.c.l.b16 %v1023
    %v1056 = vunpack.c.l.b16 %v1024
    %v1057 = vunpack.c.l.b16 %v1025
    %v1058 = vunpack.c.l.b16 %v1026
    %v1059 = vunpack.c.l.b16 %v1027
    %v1060 = vunpack.c.l.b16 %v1028
    %v1061 = vunpack.c.l.b16 %v1029
    %v1062 = vunpack.c.l.b16 %v1030
    %v1063 = vunpack.c.l.b16 %v1031
    %v1064 = vunpack.c.l.b16 %v1032
    %v1065 = vunpack.c.l.b16 %v1033
    %v1066 = vpack.c.b16 %v1051, %v1050
    %v1067 = vpack.c.b16 %v1053, %v1052
    %v1068 = vpack.c.b16 %v1055, %v1054
    %v1069 = vpack.c.b16 %v1057, %v1056
    %v1070 = vpack.c.b16 %v1059, %v1058
    %v1071 = vpack.c.b16 %v1061, %v1060
    %v1072 = vpack.c.b16 %v1063, %v1062
    %v1073 = vpack.c.b16 %v1065, %v1064
    %1082 = vmatprep.subr.bf16.mxu0 0
    %1083 = vmatpush1.bf16.msra.mxu0 %v1073
    %1084 = vmatprep.subr.bf16.mxu0 0
    %1085 = vmatpush1.bf16.msra.mxu0 %v1072
    %1086 = vmatprep.subr.bf16.mxu0 0
    %1087 = vmatpush1.bf16.msra.mxu0 %v1071
    %1088 = vmatprep.subr.bf16.mxu0 0
    %1089 = vmatpush1.bf16.msra.mxu0 %v1070
    %1090 = vmatprep.subr.bf16.mxu0 0
    %1091 = vmatpush1.bf16.msra.mxu0 %v1069
    %1092 = vmatprep.subr.bf16.mxu0 0
    %1093 = vmatpush1.bf16.msra.mxu0 %v1068
    %1094 = vmatprep.subr.bf16.mxu0 0
    %1095 = vmatpush1.bf16.msra.mxu0 %v1067
    %1096 = vmatprep.subr.bf16.mxu0 0
    %1097 = vmatpush1.bf16.msra.mxu0 %v1066
    %1098 = vmatprep.subr.bf16.mxu0 0
    %1099 = vmatpush2.bf16.msra.mxu0 0
    %1100 = vmatprep.subr.bf16.mxu0 0
    %1101 = vmatpush2.bf16.msra.mxu0 0
    %1102 = vmatprep.subr.bf16.mxu0 0
    %1103 = vmatpush2.bf16.msra.mxu0 0
    %1104 = vmatprep.subr.bf16.mxu0 0
    %1105 = vmatpush2.bf16.msra.mxu0 0
    %1106 = vmatprep.subr.bf16.mxu0 0
    %1107 = vmatpush2.bf16.msra.mxu0 0
    %1108 = vmatprep.subr.bf16.mxu0 0
    %1109 = vmatpush2.bf16.msra.mxu0 0
    %1110 = vmatprep.subr.bf16.mxu0 0
    %1111 = vmatpush2.bf16.msra.mxu0 0
    %1112 = vmatprep.subr.bf16.mxu0 0
    %1113 = vmatpush2.bf16.msra.mxu0 0
    %1114 = vmatprep.mubr.bf16.mxu0 0
    %1115 = vmatmul.mubr.bf16.gmra.mxu0 %v592
    %v1116 = vpop.f32.mrf.mxu0
    %v1117 = vadd.f32 0.0, %v1116
    %v1118 = vpop.f32.mrf.mxu0
    %v1119 = vpop.f32.mrf.mxu0
    %v1120 = vpop.f32.mrf.mxu0
    %1121 = vdwg.mxu0
    %v1122 = vpack.c.bf16 %v1017, %v1017
    %v1123 = vpack.c.bf16 %v1117, %v1117
    %v1124 = vld [vmem:[#allocation19] sm:$0x1]
    %v1126 = vlaneseq
    %v1127 = vshrl.u32 %v1126, 7
    %v1128 = vsub.s32 0, %v1127
    %v1129 = vrot.slane %v1124, %v1128
    %v1132 = vsel %vm694, %v1122, 0
    %v1135 = vsel %vm707, %v1123, 0
    %1137 = vmatprep.subr.bf16.mxu0 0
    %1138 = vmatpush1.bf16.msra.mxu0 0
    %1139 = vmatprep.subr.bf16.mxu0 0
    %1140 = vmatpush1.bf16.msra.mxu0 0
    %1141 = vmatprep.subr.bf16.mxu0 0
    %1142 = vmatpush1.bf16.msra.mxu0 0
    %1143 = vmatprep.subr.bf16.mxu0 0
    %1144 = vmatpush1.bf16.msra.mxu0 0
    %1145 = vmatprep.subr.bf16.mxu0 0
    %1146 = vmatpush1.bf16.msra.mxu0 0
    %1147 = vmatprep.subr.bf16.mxu0 0
    %1148 = vmatpush1.bf16.msra.mxu0 0
    %1149 = vmatprep.subr.bf16.mxu0 0
    %1150 = vmatpush1.bf16.msra.mxu0 0
    %1151 = vmatprep.subr.bf16.mxu0 0
    %1152 = vmatpush1.bf16.msra.mxu0 %v1135
    %1153 = vmatprep.subr.bf16.mxu0 0
    %1154 = vmatpush2.bf16.msra.mxu0 0
    %1155 = vmatprep.subr.bf16.mxu0 0
    %1156 = vmatpush2.bf16.msra.mxu0 0
    %1157 = vmatprep.subr.bf16.mxu0 0
    %1158 = vmatpush2.bf16.msra.mxu0 0
    %1159 = vmatprep.subr.bf16.mxu0 0
    %1160 = vmatpush2.bf16.msra.mxu0 0
    %1161 = vmatprep.subr.bf16.mxu0 0
    %1162 = vmatpush2.bf16.msra.mxu0 0
    %1163 = vmatprep.subr.bf16.mxu0 0
    %1164 = vmatpush2.bf16.msra.mxu0 0
    %1165 = vmatprep.subr.bf16.mxu0 0
    %1166 = vmatpush2.bf16.msra.mxu0 0
    %1167 = vmatprep.subr.bf16.mxu0 0
    %1168 = vmatpush2.bf16.msra.mxu0 0
    %1169 = vmatprep.mubr.bf16.mxu0 0
    %1170 = vmatmul.mubr.bf16.gmra.mxu0 %v1132
    %v1171 = vpop.f32.mrf.mxu0
    %v1172 = vadd.f32 %v1129, %v1171
    %v1173 = vpop.f32.mrf.mxu0
    %v1174 = vpop.f32.mrf.mxu0
    %v1175 = vpop.f32.mrf.mxu0
    %1176 = vdwg.mxu0
    %vm1177 = vcmp.gt.f32.partialorder %v1172, 0.0
    %v1178 = vmin.f32 %v1172, 0.0
    %v1179 = vmul.f32 %v1178, 1.442695
    %v1180 = vpow.pop %v1179
    %v1181 = vsub.f32 %v1180, 1.0
    %v1182 = vsel %vm1177, %v1172, %v1181
    %v1183 = vld [vmem:[#allocation20] sm:$0xff]
    %v1184 = vld [vmem:[#allocation20 + $0x8] sm:$0xf]
    %v1185 = vld [vmem:[#allocation20 + $0xc] sm:$0xff]
    %v1186 = vld [vmem:[#allocation20 + $0x14] sm:$0xf]
    %v1187 = vld [vmem:[#allocation20 + $0x18] sm:$0xff]
    %v1188 = vld [vmem:[#allocation20 + $0x20] sm:$0xf]
    %v1189 = vld [vmem:[#allocation20 + $0x24] sm:$0xff]
    %v1190 = vld [vmem:[#allocation20 + $0x2c] sm:$0xf]
    %v1191 = vld [vmem:[#allocation20 + $0x30] sm:$0xff]
    %v1192 = vld [vmem:[#allocation20 + $0x38] sm:$0xf]
    %v1193 = vld [vmem:[#allocation20 + $0x3c] sm:$0xff]
    %v1194 = vld [vmem:[#allocation20 + $0x44] sm:$0xf]
    %v1195 = vld [vmem:[#allocation20 + $0x48] sm:$0xff]
    %v1196 = vld [vmem:[#allocation20 + $0x50] sm:$0xf]
    %v1197 = vld [vmem:[#allocation20 + $0x54] sm:$0xff]
    %v1198 = vld [vmem:[#allocation20 + $0x5c] sm:$0xf]
    %v1199 = vld [vmem:[#allocation20 + $0x60] sm:$0xff]
    %v1200 = vld [vmem:[#allocation20 + $0x68] sm:$0xf]
    %v1201 = vld [vmem:[#allocation20 + $0x6c] sm:$0xff]
    %v1202 = vld [vmem:[#allocation20 + $0x74] sm:$0xf]
    %v1203 = vld [vmem:[#allocation20 + $0x78] sm:$0xff]
    %v1204 = vld [vmem:[#allocation20 + $0x80] sm:$0xf]
    %v1205 = vld [vmem:[#allocation20 + $0x84] sm:$0xff]
    %v1206 = vld [vmem:[#allocation20 + $0x8c] sm:$0xf]
    %v1207 = vld [vmem:[#allocation20 + $0x90] sm:$0xff]
    %v1208 = vld [vmem:[#allocation20 + $0x98] sm:$0xf]
    %v1209 = vld [vmem:[#allocation20 + $0x9c] sm:$0xff]
    %v1210 = vld [vmem:[#allocation20 + $0xa4] sm:$0xf]
    %v1211 = vld [vmem:[#allocation20 + $0xa8] sm:$0xff]
    %v1212 = vld [vmem:[#allocation20 + $0xb0] sm:$0xf]
    %v1213 = vld [vmem:[#allocation20 + $0xb4] sm:$0xff]
    %v1214 = vld [vmem:[#allocation20 + $0xbc] sm:$0xf]
    %v1215 = vld [vmem:[#allocation22] sm:$0xff]
    %v1216 = vld [vmem:[#allocation22 + $0x8] sm:$0xf]
    %v1217 = vld [vmem:[#allocation22 + $0xc] sm:$0xff]
    %v1218 = vld [vmem:[#allocation22 + $0x14] sm:$0xf]
    %v1219 = vld [vmem:[#allocation22 + $0x18] sm:$0xff]
    %v1220 = vld [vmem:[#allocation22 + $0x20] sm:$0xf]
    %v1221 = vld [vmem:[#allocation22 + $0x24] sm:$0xff]
    %v1222 = vld [vmem:[#allocation22 + $0x2c] sm:$0xf]
    %v1223 = vld [vmem:[#allocation22 + $0x30] sm:$0xff]
    %v1224 = vld [vmem:[#allocation22 + $0x38] sm:$0xf]
    %v1225 = vld [vmem:[#allocation22 + $0x3c] sm:$0xff]
    %v1226 = vld [vmem:[#allocation22 + $0x44] sm:$0xf]
    %v1227 = vld [vmem:[#allocation22 + $0x48] sm:$0xff]
    %v1228 = vld [vmem:[#allocation22 + $0x50] sm:$0xf]
    %v1229 = vld [vmem:[#allocation22 + $0x54] sm:$0xff]
    %v1230 = vld [vmem:[#allocation22 + $0x5c] sm:$0xf]
    %v1231 = vld [vmem:[#allocation22 + $0x60] sm:$0xff]
    %v1232 = vld [vmem:[#allocation22 + $0x68] sm:$0xf]
    %v1233 = vld [vmem:[#allocation22 + $0x6c] sm:$0xff]
    %v1234 = vld [vmem:[#allocation22 + $0x74] sm:$0xf]
    %v1235 = vld [vmem:[#allocation22 + $0x78] sm:$0xff]
    %v1236 = vld [vmem:[#allocation22 + $0x80] sm:$0xf]
    %v1237 = vld [vmem:[#allocation22 + $0x84] sm:$0xff]
    %v1238 = vld [vmem:[#allocation22 + $0x8c] sm:$0xf]
    %v1239 = vld [vmem:[#allocation22 + $0x90] sm:$0xff]
    %v1240 = vld [vmem:[#allocation22 + $0x98] sm:$0xf]
    %v1241 = vld [vmem:[#allocation22 + $0x9c] sm:$0xff]
    %v1242 = vld [vmem:[#allocation22 + $0xa4] sm:$0xf]
    %v1243 = vld [vmem:[#allocation22 + $0xa8] sm:$0xff]
    %v1244 = vld [vmem:[#allocation22 + $0xb0] sm:$0xf]
    %v1245 = vld [vmem:[#allocation22 + $0xb4] sm:$0xff]
    %v1246 = vld [vmem:[#allocation22 + $0xbc] sm:$0xf]
    %v1247 = vld [vmem:[#allocation23] sm:$0x7]
    %v1248 = vld [vmem:[#allocation25] sm:$0x7]
    %v1249 = vpack.c.bf16 %v1182, %v1182
    %v1251 = vlaneseq
    %v1252 = vshrl.u32 %v1251, 7
    %v1253 = vsub.s32 0, %v1252
    %v1254 = vrot.slane %v1247, %v1253
    %v1255 = vlaneseq
    %v1256 = vshrl.u32 %v1255, 7
    %v1257 = vsub.s32 1, %v1256
    %v1258 = vrot.slane %v1247, %v1257
    %v1259 = vlaneseq
    %v1260 = vshrl.u32 %v1259, 7
    %v1261 = vsub.s32 2, %v1260
    %v1262 = vrot.slane %v1247, %v1261
    %v1298 = vunpack.c.l.b16 %v1183
    %v1299 = vunpack.c.h.b16 %v1183
    %v1300 = vunpack.c.l.b16 %v1184
    %v1301 = vunpack.c.l.b16 %v1185
    %v1302 = vunpack.c.h.b16 %v1185
    %v1303 = vunpack.c.l.b16 %v1186
    %v1304 = vunpack.c.l.b16 %v1187
    %v1305 = vunpack.c.h.b16 %v1187
    %v1306 = vunpack.c.l.b16 %v1188
    %v1307 = vunpack.c.l.b16 %v1189
    %v1308 = vunpack.c.h.b16 %v1189
    %v1309 = vunpack.c.l.b16 %v1190
    %v1310 = vunpack.c.l.b16 %v1191
    %v1311 = vunpack.c.h.b16 %v1191
    %v1312 = vunpack.c.l.b16 %v1192
    %v1313 = vunpack.c.l.b16 %v1193
    %v1314 = vunpack.c.h.b16 %v1193
    %v1315 = vunpack.c.l.b16 %v1194
    %v1316 = vunpack.c.l.b16 %v1195
    %v1317 = vunpack.c.h.b16 %v1195
    %v1318 = vunpack.c.l.b16 %v1196
    %v1319 = vunpack.c.l.b16 %v1197
    %v1320 = vunpack.c.h.b16 %v1197
    %v1321 = vunpack.c.l.b16 %v1198
    %v1322 = vunpack.c.l.b16 %v1199
    %v1323 = vunpack.c.h.b16 %v1199
    %v1324 = vunpack.c.l.b16 %v1200
    %v1325 = vunpack.c.l.b16 %v1201
    %v1326 = vunpack.c.h.b16 %v1201
    %v1327 = vunpack.c.l.b16 %v1202
    %v1328 = vunpack.c.l.b16 %v1203
    %v1329 = vunpack.c.h.b16 %v1203
    %v1330 = vunpack.c.l.b16 %v1204
    %v1331 = vunpack.c.l.b16 %v1205
    %v1332 = vunpack.c.h.b16 %v1205
    %v1333 = vunpack.c.l.b16 %v1206
    %v1334 = vunpack.c.l.b16 %v1207
    %v1335 = vunpack.c.h.b16 %v1207
    %v1336 = vunpack.c.l.b16 %v1208
    %v1337 = vunpack.c.l.b16 %v1209
    %v1338 = vunpack.c.h.b16 %v1209
    %v1339 = vunpack.c.l.b16 %v1210
    %v1340 = vunpack.c.l.b16 %v1211
    %v1341 = vunpack.c.h.b16 %v1211
    %v1342 = vunpack.c.l.b16 %v1212
    %v1343 = vunpack.c.l.b16 %v1213
    %v1344 = vunpack.c.h.b16 %v1213
    %v1345 = vunpack.c.l.b16 %v1214
    %v1346 = vpack.c.b16 %v1301, %v1298
    %v1347 = vpack.c.b16 %v1302, %v1299
    %v1348 = vpack.c.b16 %v1303, %v1300
    %v1349 = vpack.c.b16 %v1307, %v1304
    %v1350 = vpack.c.b16 %v1308, %v1305
    %v1351 = vpack.c.b16 %v1309, %v1306
    %v1352 = vpack.c.b16 %v1313, %v1310
    %v1353 = vpack.c.b16 %v1314, %v1311
    %v1354 = vpack.c.b16 %v1315, %v1312
    %v1355 = vpack.c.b16 %v1319, %v1316
    %v1356 = vpack.c.b16 %v1320, %v1317
    %v1357 = vpack.c.b16 %v1321, %v1318
    %v1358 = vpack.c.b16 %v1325, %v1322
    %v1359 = vpack.c.b16 %v1326, %v1323
    %v1360 = vpack.c.b16 %v1327, %v1324
    %v1361 = vpack.c.b16 %v1331, %v1328
    %v1362 = vpack.c.b16 %v1332, %v1329
    %v1363 = vpack.c.b16 %v1333, %v1330
    %v1364 = vpack.c.b16 %v1337, %v1334
    %v1365 = vpack.c.b16 %v1338, %v1335
    %v1366 = vpack.c.b16 %v1339, %v1336
    %v1367 = vpack.c.b16 %v1343, %v1340
    %v1368 = vpack.c.b16 %v1344, %v1341
    %v1369 = vpack.c.b16 %v1345, %v1342
    %1394 = vmatprep.subr.bf16.mxu0 %v1368
    %1395 = vmatpush1.bf16.msra.mxu0 %v1367
    %1396 = vmatprep.subr.bf16.mxu0 %v1365
    %1397 = vmatpush1.bf16.msra.mxu0 %v1364
    %1398 = vmatprep.subr.bf16.mxu0 %v1362
    %1399 = vmatpush1.bf16.msra.mxu0 %v1361
    %1400 = vmatprep.subr.bf16.mxu0 %v1359
    %1401 = vmatpush1.bf16.msra.mxu0 %v1358
    %1402 = vmatprep.subr.bf16.mxu0 %v1356
    %1403 = vmatpush1.bf16.msra.mxu0 %v1355
    %1404 = vmatprep.subr.bf16.mxu0 %v1353
    %1405 = vmatpush1.bf16.msra.mxu0 %v1352
    %1406 = vmatprep.subr.bf16.mxu0 %v1350
    %1407 = vmatpush1.bf16.msra.mxu0 %v1349
    %1408 = vmatprep.subr.bf16.mxu0 %v1347
    %1409 = vmatpush1.bf16.msra.mxu0 %v1346
    %1410 = vmatprep.subr.bf16.mxu0 0
    %1411 = vmatpush2.bf16.msra.mxu0 0
    %1412 = vmatprep.subr.bf16.mxu0 0
    %1413 = vmatpush2.bf16.msra.mxu0 0
    %1414 = vmatprep.subr.bf16.mxu0 0
    %1415 = vmatpush2.bf16.msra.mxu0 0
    %1416 = vmatprep.subr.bf16.mxu0 0
    %1417 = vmatpush2.bf16.msra.mxu0 0
    %1418 = vmatprep.subr.bf16.mxu0 0
    %1419 = vmatpush2.bf16.msra.mxu0 0
    %1420 = vmatprep.subr.bf16.mxu0 0
    %1421 = vmatpush2.bf16.msra.mxu0 0
    %1422 = vmatprep.subr.bf16.mxu0 0
    %1423 = vmatpush2.bf16.msra.mxu0 0
    %1424 = vmatprep.subr.bf16.mxu0 0
    %1425 = vmatpush2.bf16.msra.mxu0 0
    %1426 = vmatprep.mubr.bf16.mxu0 0
    %1427 = vmatmul.mubr.bf16.gmra.mxu0 %v1249
    %v1428 = vpop.f32.mrf.mxu0
    %v1429 = vadd.f32 %v1254, %v1428
    %v1430 = vpop.f32.mrf.mxu0
    %v1431 = vadd.f32 %v1258, %v1430
    %v1432 = vpop.f32.mrf.mxu0
    %v1433 = vpop.f32.mrf.mxu0
    %1434 = vdwg.mxu0
    %1435 = vmatprep.subr.bf16.mxu0 0
    %1436 = vmatpush1.bf16.msra.mxu0 %v1369
    %1437 = vmatprep.subr.bf16.mxu0 0
    %1438 = vmatpush1.bf16.msra.mxu0 %v1366
    %1439 = vmatprep.subr.bf16.mxu0 0
    %1440 = vmatpush1.bf16.msra.mxu0 %v1363
    %1441 = vmatprep.subr.bf16.mxu0 0
    %1442 = vmatpush1.bf16.msra.mxu0 %v1360
    %1443 = vmatprep.subr.bf16.mxu0 0
    %1444 = vmatpush1.bf16.msra.mxu0 %v1357
    %1445 = vmatprep.subr.bf16.mxu0 0
    %1446 = vmatpush1.bf16.msra.mxu0 %v1354
    %1447 = vmatprep.subr.bf16.mxu0 0
    %1448 = vmatpush1.bf16.msra.mxu0 %v1351
    %1449 = vmatprep.subr.bf16.mxu0 0
    %1450 = vmatpush1.bf16.msra.mxu0 %v1348
    %1451 = vmatprep.subr.bf16.mxu0 0
    %1452 = vmatpush2.bf16.msra.mxu0 0
    %1453 = vmatprep.subr.bf16.mxu0 0
    %1454 = vmatpush2.bf16.msra.mxu0 0
    %1455 = vmatprep.subr.bf16.mxu0 0
    %1456 = vmatpush2.bf16.msra.mxu0 0
    %1457 = vmatprep.subr.bf16.mxu0 0
    %1458 = vmatpush2.bf16.msra.mxu0 0
    %1459 = vmatprep.subr.bf16.mxu0 0
    %1460 = vmatpush2.bf16.msra.mxu0 0
    %1461 = vmatprep.subr.bf16.mxu0 0
    %1462 = vmatpush2.bf16.msra.mxu0 0
    %1463 = vmatprep.subr.bf16.mxu0 0
    %1464 = vmatpush2.bf16.msra.mxu0 0
    %1465 = vmatprep.subr.bf16.mxu0 0
    %1466 = vmatpush2.bf16.msra.mxu0 0
    %1467 = vmatprep.mubr.bf16.mxu0 0
    %1468 = vmatmul.mubr.bf16.gmra.mxu0 %v1249
    %v1469 = vpop.f32.mrf.mxu0
    %v1470 = vadd.f32 %v1262, %v1469
    %v1471 = vpop.f32.mrf.mxu0
    %v1472 = vpop.f32.mrf.mxu0
    %v1473 = vpop.f32.mrf.mxu0
    %1474 = vdwg.mxu0
    %v1476 = vlaneseq
    %v1477 = vshrl.u32 %v1476, 7
    %v1478 = vsub.s32 0, %v1477
    %v1479 = vrot.slane %v1248, %v1478
    %v1480 = vlaneseq
    %v1481 = vshrl.u32 %v1480, 7
    %v1482 = vsub.s32 1, %v1481
    %v1483 = vrot.slane %v1248, %v1482
    %v1484 = vlaneseq
    %v1485 = vshrl.u32 %v1484, 7
    %v1486 = vsub.s32 2, %v1485
    %v1487 = vrot.slane %v1248, %v1486
    %v1523 = vunpack.c.l.b16 %v1215
    %v1524 = vunpack.c.h.b16 %v1215
    %v1525 = vunpack.c.l.b16 %v1216
    %v1526 = vunpack.c.l.b16 %v1217
    %v1527 = vunpack.c.h.b16 %v1217
    %v1528 = vunpack.c.l.b16 %v1218
    %v1529 = vunpack.c.l.b16 %v1219
    %v1530 = vunpack.c.h.b16 %v1219
    %v1531 = vunpack.c.l.b16 %v1220
    %v1532 = vunpack.c.l.b16 %v1221
    %v1533 = vunpack.c.h.b16 %v1221
    %v1534 = vunpack.c.l.b16 %v1222
    %v1535 = vunpack.c.l.b16 %v1223
    %v1536 = vunpack.c.h.b16 %v1223
    %v1537 = vunpack.c.l.b16 %v1224
    %v1538 = vunpack.c.l.b16 %v1225
    %v1539 = vunpack.c.h.b16 %v1225
    %v1540 = vunpack.c.l.b16 %v1226
    %v1541 = vunpack.c.l.b16 %v1227
    %v1542 = vunpack.c.h.b16 %v1227
    %v1543 = vunpack.c.l.b16 %v1228
    %v1544 = vunpack.c.l.b16 %v1229
    %v1545 = vunpack.c.h.b16 %v1229
    %v1546 = vunpack.c.l.b16 %v1230
    %v1547 = vunpack.c.l.b16 %v1231
    %v1548 = vunpack.c.h.b16 %v1231
    %v1549 = vunpack.c.l.b16 %v1232
    %v1550 = vunpack.c.l.b16 %v1233
    %v1551 = vunpack.c.h.b16 %v1233
    %v1552 = vunpack.c.l.b16 %v1234
    %v1553 = vunpack.c.l.b16 %v1235
    %v1554 = vunpack.c.h.b16 %v1235
    %v1555 = vunpack.c.l.b16 %v1236
    %v1556 = vunpack.c.l.b16 %v1237
    %v1557 = vunpack.c.h.b16 %v1237
    %v1558 = vunpack.c.l.b16 %v1238
    %v1559 = vunpack.c.l.b16 %v1239
    %v1560 = vunpack.c.h.b16 %v1239
    %v1561 = vunpack.c.l.b16 %v1240
    %v1562 = vunpack.c.l.b16 %v1241
    %v1563 = vunpack.c.h.b16 %v1241
    %v1564 = vunpack.c.l.b16 %v1242
    %v1565 = vunpack.c.l.b16 %v1243
    %v1566 = vunpack.c.h.b16 %v1243
    %v1567 = vunpack.c.l.b16 %v1244
    %v1568 = vunpack.c.l.b16 %v1245
    %v1569 = vunpack.c.h.b16 %v1245
    %v1570 = vunpack.c.l.b16 %v1246
    %v1571 = vpack.c.b16 %v1526, %v1523
    %v1572 = vpack.c.b16 %v1527, %v1524
    %v1573 = vpack.c.b16 %v1528, %v1525
    %v1574 = vpack.c.b16 %v1532, %v1529
    %v1575 = vpack.c.b16 %v1533, %v1530
    %v1576 = vpack.c.b16 %v1534, %v1531
    %v1577 = vpack.c.b16 %v1538, %v1535
    %v1578 = vpack.c.b16 %v1539, %v1536
    %v1579 = vpack.c.b16 %v1540, %v1537
    %v1580 = vpack.c.b16 %v1544, %v1541
    %v1581 = vpack.c.b16 %v1545, %v1542
    %v1582 = vpack.c.b16 %v1546, %v1543
    %v1583 = vpack.c.b16 %v1550, %v1547
    %v1584 = vpack.c.b16 %v1551, %v1548
    %v1585 = vpack.c.b16 %v1552, %v1549
    %v1586 = vpack.c.b16 %v1556, %v1553
    %v1587 = vpack.c.b16 %v1557, %v1554
    %v1588 = vpack.c.b16 %v1558, %v1555
    %v1589 = vpack.c.b16 %v1562, %v1559
    %v1590 = vpack.c.b16 %v1563, %v1560
    %v1591 = vpack.c.b16 %v1564, %v1561
    %v1592 = vpack.c.b16 %v1568, %v1565
    %v1593 = vpack.c.b16 %v1569, %v1566
    %v1594 = vpack.c.b16 %v1570, %v1567
    %1619 = vmatprep.subr.bf16.mxu0 %v1593
    %1620 = vmatpush1.bf16.msra.mxu0 %v1592
    %1621 = vmatprep.subr.bf16.mxu0 %v1590
    %1622 = vmatpush1.bf16.msra.mxu0 %v1589
    %1623 = vmatprep.subr.bf16.mxu0 %v1587
    %1624 = vmatpush1.bf16.msra.mxu0 %v1586
    %1625 = vmatprep.subr.bf16.mxu0 %v1584
    %1626 = vmatpush1.bf16.msra.mxu0 %v1583
    %1627 = vmatprep.subr.bf16.mxu0 %v1581
    %1628 = vmatpush1.bf16.msra.mxu0 %v1580
    %1629 = vmatprep.subr.bf16.mxu0 %v1578
    %1630 = vmatpush1.bf16.msra.mxu0 %v1577
    %1631 = vmatprep.subr.bf16.mxu0 %v1575
    %1632 = vmatpush1.bf16.msra.mxu0 %v1574
    %1633 = vmatprep.subr.bf16.mxu0 %v1572
    %1634 = vmatpush1.bf16.msra.mxu0 %v1571
    %1635 = vmatprep.subr.bf16.mxu0 0
    %1636 = vmatpush2.bf16.msra.mxu0 0
    %1637 = vmatprep.subr.bf16.mxu0 0
    %1638 = vmatpush2.bf16.msra.mxu0 0
    %1639 = vmatprep.subr.bf16.mxu0 0
    %1640 = vmatpush2.bf16.msra.mxu0 0
    %1641 = vmatprep.subr.bf16.mxu0 0
    %1642 = vmatpush2.bf16.msra.mxu0 0
    %1643 = vmatprep.subr.bf16.mxu0 0
    %1644 = vmatpush2.bf16.msra.mxu0 0
    %1645 = vmatprep.subr.bf16.mxu0 0
    %1646 = vmatpush2.bf16.msra.mxu0 0
    %1647 = vmatprep.subr.bf16.mxu0 0
    %1648 = vmatpush2.bf16.msra.mxu0 0
    %1649 = vmatprep.subr.bf16.mxu0 0
    %1650 = vmatpush2.bf16.msra.mxu0 0
    %1651 = vmatprep.mubr.bf16.mxu0 0
    %1652 = vmatmul.mubr.bf16.gmra.mxu0 %v592
    %v1653 = vpop.f32.mrf.mxu0
    %v1654 = vadd.f32 %v1479, %v1653
    %v1655 = vpop.f32.mrf.mxu0
    %v1656 = vadd.f32 %v1483, %v1655
    %v1657 = vpop.f32.mrf.mxu0
    %v1658 = vpop.f32.mrf.mxu0
    %1659 = vdwg.mxu0
    %1660 = vmatprep.subr.bf16.mxu0 0
    %1661 = vmatpush1.bf16.msra.mxu0 %v1594
    %1662 = vmatprep.subr.bf16.mxu0 0
    %1663 = vmatpush1.bf16.msra.mxu0 %v1591
    %1664 = vmatprep.subr.bf16.mxu0 0
    %1665 = vmatpush1.bf16.msra.mxu0 %v1588
    %1666 = vmatprep.subr.bf16.mxu0 0
    %1667 = vmatpush1.bf16.msra.mxu0 %v1585
    %1668 = vmatprep.subr.bf16.mxu0 0
    %1669 = vmatpush1.bf16.msra.mxu0 %v1582
    %1670 = vmatprep.subr.bf16.mxu0 0
    %1671 = vmatpush1.bf16.msra.mxu0 %v1579
    %1672 = vmatprep.subr.bf16.mxu0 0
    %1673 = vmatpush1.bf16.msra.mxu0 %v1576
    %1674 = vmatprep.subr.bf16.mxu0 0
    %1675 = vmatpush1.bf16.msra.mxu0 %v1573
    %1676 = vmatprep.subr.bf16.mxu0 0
    %1677 = vmatpush2.bf16.msra.mxu0 0
    %1678 = vmatprep.subr.bf16.mxu0 0
    %1679 = vmatpush2.bf16.msra.mxu0 0
    %1680 = vmatprep.subr.bf16.mxu0 0
    %1681 = vmatpush2.bf16.msra.mxu0 0
    %1682 = vmatprep.subr.bf16.mxu0 0
    %1683 = vmatpush2.bf16.msra.mxu0 0
    %1684 = vmatprep.subr.bf16.mxu0 0
    %1685 = vmatpush2.bf16.msra.mxu0 0
    %1686 = vmatprep.subr.bf16.mxu0 0
    %1687 = vmatpush2.bf16.msra.mxu0 0
    %1688 = vmatprep.subr.bf16.mxu0 0
    %1689 = vmatpush2.bf16.msra.mxu0 0
    %1690 = vmatprep.subr.bf16.mxu0 0
    %1691 = vmatpush2.bf16.msra.mxu0 0
    %1692 = vmatprep.mubr.bf16.mxu0 0
    %1693 = vmatmul.mubr.bf16.gmra.mxu0 %v592
    %v1694 = vpop.f32.mrf.mxu0
    %v1695 = vadd.f32 %v1487, %v1694
    %v1696 = vpop.f32.mrf.mxu0
    %v1697 = vpop.f32.mrf.mxu0
    %v1698 = vpop.f32.mrf.mxu0
    %1699 = vdwg.mxu0
    %v1700 = vadd.f32 %v1429, %v1654
    %v1701 = vxor.u32 %v1700, 2147483648
    %v1702 = vmul.f32 %v1701, 1.442695
    %v1703 = vpow.pop %v1702
    %v1704 = vadd.f32 %v1703, 1.0
    %v1705 = vrcp.pop %v1704
    %v1706 = vmul.f32 1.0, %v1705
    %v1707 = vadd.f32 %v1431, %v1656
    %v1708 = vxor.u32 %v1707, 2147483648
    %v1709 = vmul.f32 %v1708, 1.442695
    %v1710 = vpow.pop %v1709
    %v1711 = vadd.f32 %v1710, 1.0
    %v1712 = vrcp.pop %v1711
    %v1713 = vmul.f32 1.0, %v1712
    %v1714 = vmul.f32 %v1706, %v1695
    %v1715 = vadd.f32 %v1470, %v1714
    %v1716 = vtanh.pop %v1715
    %v1717 = vsub.f32 1.0, %v1713
    %v1718 = vmul.f32 %v1717, %v1716
    %v1719 = vmul.f32 %v1713, %v575
    %v1720 = vadd.f32 %v1718, %v1719
    %v1721 = vmax.f32 %v1720, 0.0
    %v1722 = vld [vmem:[#allocation26] sm:$0xf]
    %v1723 = vld [vmem:[#allocation26 + $0x4] sm:$0xf]
    %v1724 = vld [vmem:[#allocation26 + $0x8] sm:$0xf]
    %v1725 = vld [vmem:[#allocation26 + $0xc] sm:$0xf]
    %v1726 = vld [vmem:[#allocation26 + $0x10] sm:$0xf]
    %v1727 = vld [vmem:[#allocation26 + $0x14] sm:$0xf]
    %v1728 = vld [vmem:[#allocation26 + $0x18] sm:$0xf]
    %v1729 = vld [vmem:[#allocation26 + $0x1c] sm:$0xf]
    %v1730 = vld [vmem:[#allocation26 + $0x20] sm:$0xf]
    %v1731 = vld [vmem:[#allocation26 + $0x24] sm:$0xf]
    %v1732 = vld [vmem:[#allocation26 + $0x28] sm:$0xf]
    %v1733 = vld [vmem:[#allocation26 + $0x2c] sm:$0xf]
    %v1734 = vld [vmem:[#allocation26 + $0x30] sm:$0xf]
    %v1735 = vld [vmem:[#allocation26 + $0x34] sm:$0xf]
    %v1736 = vld [vmem:[#allocation26 + $0x38] sm:$0xf]
    %v1737 = vld [vmem:[#allocation26 + $0x3c] sm:$0xf]
    %v1738 = vld [vmem:[#allocation28] sm:$0x1]
    %v1739 = vld [vmem:[#allocation29] sm:$0x1]
    %v1740 = vld [vmem:[#allocation31] sm:$0x1]
    %v1741 = vpack.c.bf16 %v1721, %v1721
    %v1758 = vunpack.c.l.b16 %v1722
    %v1759 = vunpack.c.l.b16 %v1723
    %v1760 = vunpack.c.l.b16 %v1724
    %v1761 = vunpack.c.l.b16 %v1725
    %v1762 = vunpack.c.l.b16 %v1726
    %v1763 = vunpack.c.l.b16 %v1727
    %v1764 = vunpack.c.l.b16 %v1728
    %v1765 = vunpack.c.l.b16 %v1729
    %v1766 = vunpack.c.l.b16 %v1730
    %v1767 = vunpack.c.l.b16 %v1731
    %v1768 = vunpack.c.l.b16 %v1732
    %v1769 = vunpack.c.l.b16 %v1733
    %v1770 = vunpack.c.l.b16 %v1734
    %v1771 = vunpack.c.l.b16 %v1735
    %v1772 = vunpack.c.l.b16 %v1736
    %v1773 = vunpack.c.l.b16 %v1737
    %v1774 = vpack.c.b16 %v1759, %v1758
    %v1775 = vpack.c.b16 %v1761, %v1760
    %v1776 = vpack.c.b16 %v1763, %v1762
    %v1777 = vpack.c.b16 %v1765, %v1764
    %v1778 = vpack.c.b16 %v1767, %v1766
    %v1779 = vpack.c.b16 %v1769, %v1768
    %v1780 = vpack.c.b16 %v1771, %v1770
    %v1781 = vpack.c.b16 %v1773, %v1772
    %1790 = vmatprep.subr.bf16.mxu0 0
    %1791 = vmatpush1.bf16.msra.mxu0 %v1781
    %1792 = vmatprep.subr.bf16.mxu0 0
    %1793 = vmatpush1.bf16.msra.mxu0 %v1780
    %1794 = vmatprep.subr.bf16.mxu0 0
    %1795 = vmatpush1.bf16.msra.mxu0 %v1779
    %1796 = vmatprep.subr.bf16.mxu0 0
    %1797 = vmatpush1.bf16.msra.mxu0 %v1778
    %1798 = vmatprep.subr.bf16.mxu0 0
    %1799 = vmatpush1.bf16.msra.mxu0 %v1777
    %1800 = vmatprep.subr.bf16.mxu0 0
    %1801 = vmatpush1.bf16.msra.mxu0 %v1776
    %1802 = vmatprep.subr.bf16.mxu0 0
    %1803 = vmatpush1.bf16.msra.mxu0 %v1775
    %1804 = vmatprep.subr.bf16.mxu0 0
    %1805 = vmatpush1.bf16.msra.mxu0 %v1774
    %1806 = vmatprep.subr.bf16.mxu0 0
    %1807 = vmatpush2.bf16.msra.mxu0 0
    %1808 = vmatprep.subr.bf16.mxu0 0
    %1809 = vmatpush2.bf16.msra.mxu0 0
    %1810 = vmatprep.subr.bf16.mxu0 0
    %1811 = vmatpush2.bf16.msra.mxu0 0
    %1812 = vmatprep.subr.bf16.mxu0 0
    %1813 = vmatpush2.bf16.msra.mxu0 0
    %1814 = vmatprep.subr.bf16.mxu0 0
    %1815 = vmatpush2.bf16.msra.mxu0 0
    %1816 = vmatprep.subr.bf16.mxu0 0
    %1817 = vmatpush2.bf16.msra.mxu0 0
    %1818 = vmatprep.subr.bf16.mxu0 0
    %1819 = vmatpush2.bf16.msra.mxu0 0
    %1820 = vmatprep.subr.bf16.mxu0 0
    %1821 = vmatpush2.bf16.msra.mxu0 0
    %1822 = vmatprep.mubr.bf16.mxu0 0
    %1823 = vmatmul.mubr.bf16.gmra.mxu0 %v1741
    %v1824 = vpop.f32.mrf.mxu0
    %v1825 = vadd.f32 0.0, %v1824
    %v1826 = vpop.f32.mrf.mxu0
    %v1827 = vpop.f32.mrf.mxu0
    %v1828 = vpop.f32.mrf.mxu0
    %1829 = vdwg.mxu0
    %1830 = vmatprep.subr.mxu0 0.0
    %1831 = vmatpush1.xpose.msra.mxu0 0.0
    %1832 = vmatprep.subr.mxu0 0.0
    %1833 = vmatpush1.xpose.msra.mxu0 0.0
    %1834 = vmatprep.subr.mxu0 0.0
    %1835 = vmatpush1.xpose.msra.mxu0 0.0
    %1836 = vmatprep.subr.mxu0 0.0
    %1837 = vmatpush1.xpose.msra.mxu0 0.0
    %1838 = vmatprep.subr.mxu0 0.0
    %1839 = vmatpush1.xpose.msra.mxu0 0.0
    %1840 = vmatprep.subr.mxu0 0.0
    %1841 = vmatpush1.xpose.msra.mxu0 0.0
    %1842 = vmatprep.subr.mxu0 0.0
    %1843 = vmatpush1.xpose.msra.mxu0 0.0
    %1844 = vmatprep.subr.mxu0 0.0
    %1845 = vmatpush1.xpose.msra.mxu0 0.0
    %1846 = vmatprep.subr.mxu0 0.0
    %1847 = vmatpush1.xpose.msra.mxu0 0.0
    %1848 = vmatprep.subr.mxu0 0.0
    %1849 = vmatpush1.xpose.msra.mxu0 0.0
    %1850 = vmatprep.subr.mxu0 0.0
    %1851 = vmatpush1.xpose.msra.mxu0 0.0
    %1852 = vmatprep.subr.mxu0 0.0
    %1853 = vmatpush1.xpose.msra.mxu0 0.0
    %1854 = vmatprep.subr.mxu0 0.0
    %1855 = vmatpush1.xpose.msra.mxu0 0.0
    %1856 = vmatprep.subr.mxu0 0.0
    %1857 = vmatpush1.xpose.msra.mxu0 0.0
    %1858 = vmatprep.subr.mxu0 0.0
    %1859 = vmatpush1.xpose.msra.mxu0 0.0
    %1860 = vmatprep.subr.mxu0 0.0
    %1861 = vmatpush1.xpose.msra.mxu0 %v1721
    %1862 = vmatprep.subr.mxu0 0.0
    %1863 = vmatpush2.xpose.msra.mxu0 0.0
    %1864 = vmatprep.subr.mxu0 0.0
    %1865 = vmatpush2.xpose.msra.mxu0 0.0
    %1866 = vmatprep.subr.mxu0 0.0
    %1867 = vmatpush2.xpose.msra.mxu0 0.0
    %1868 = vmatprep.subr.mxu0 0.0
    %1869 = vmatpush2.xpose.msra.mxu0 0.0
    %1870 = vmatprep.subr.mxu0 0.0
    %1871 = vmatpush2.xpose.msra.mxu0 0.0
    %1872 = vmatprep.subr.mxu0 0.0
    %1873 = vmatpush2.xpose.msra.mxu0 0.0
    %1874 = vmatprep.subr.mxu0 0.0
    %1875 = vmatpush2.xpose.msra.mxu0 0.0
    %1876 = vmatprep.subr.mxu0 0.0
    %1877 = vmatpush2.xpose.msra.mxu0 0.0
    %1878 = vmatprep.subr.mxu0 0.0
    %1879 = vmatpush2.xpose.msra.mxu0 0.0
    %1880 = vmatprep.subr.mxu0 0.0
    %1881 = vmatpush2.xpose.msra.mxu0 0.0
    %1882 = vmatprep.subr.mxu0 0.0
    %1883 = vmatpush2.xpose.msra.mxu0 0.0
    %1884 = vmatprep.subr.mxu0 0.0
    %1885 = vmatpush2.xpose.msra.mxu0 0.0
    %1886 = vmatprep.subr.mxu0 0.0
    %1887 = vmatpush2.xpose.msra.mxu0 0.0
    %1888 = vmatprep.subr.mxu0 0.0
    %1889 = vmatpush2.xpose.msra.mxu0 0.0
    %1890 = vmatprep.subr.mxu0 0.0
    %1891 = vmatpush2.xpose.msra.mxu0 0.0
    %1892 = vmatprep.subr.mxu0 0.0
    %1893 = vmatpush2.xpose.msra.mxu0 0.0
    %1894 = vmatprep.mubr.f32.mxu0 0.0
    %1895 = vmatmul.mubr.f32.gmra.mxu0 %v1738
    %v1896 = vpop.f32.mrf.mxu0
    %v1897 = vadd.f32 0.0, %v1896
    %v1898 = vpop.f32.mrf.mxu0
    %1899 = vdwg.mxu0
    %v1901 = vlaneseq
    %v1902 = vshrl.u32 %v1901, 7
    %v1903 = vsub.s32 0, %v1902
    %v1904 = vrot.slane %v1739, %v1903
    %v1906 = vmul.f32 %v1721, %v1904
    %1907 = vadd.xlane.f32.xlu0 %v1906
    %v1908 = vpop.xlane.xlu0 %1907
    %v1909 = vlaneseq
    %v1910 = vshrl.u32 %v1909, 7
    %v1911 = vsub.s32 0, %v1910
    %v1912 = vrot.slane %v1897, %v1911
    %v1913 = vadd.f32 %v1908, %v1912
    %vm1914 = vcmp.gt.f32.partialorder %v1913, 0.0
    %v1915 = vmul.f32 %v1913, 0.01
    %v1916 = vsel %vm1914, %v1913, %v1915
    %v1917 = vsel %vm922, %v1916, -1e+30
    %v1918 = vsel %vm694, %v1917, -inf
    %1919 = vmax.xlane.f32.xlu0 %v1918
    %v1920 = vpop.xlane.xlu0 %1919
    %v1921 = vsub.f32 %v1917, %v1920
    %v1922 = vmul.f32 %v1921, 1.442695
    %v1923 = vpow.pop %v1922
    %v1924 = vsel %vm922, %v1923, 0.0
    %v1925 = vsel %vm694, %v1924, 0.0
    %1926 = vadd.xlane.f32.xlu0 %v1925
    %v1927 = vpop.xlane.xlu0 %1926
    %v1928 = vmax.f32 %v1927, 1e-16
    %v1929 = vrcp.pop %v1928
    %v1930 = vmul.f32 %v1924, %v1929
    %v1931 = vpack.c.bf16 %v1930, %v1930
    %v1932 = vpack.c.bf16 %v1825, %v1825
    %v1934 = vlaneseq
    %v1935 = vshrl.u32 %v1934, 7
    %v1936 = vsub.s32 0, %v1935
    %v1937 = vrot.slane %v1740, %v1936
    %v1940 = vsel %vm694, %v1931, 0
    %v1943 = vsel %vm707, %v1932, 0
    %1945 = vmatprep.subr.bf16.mxu0 0
    %1946 = vmatpush1.bf16.msra.mxu0 0
    %1947 = vmatprep.subr.bf16.mxu0 0
    %1948 = vmatpush1.bf16.msra.mxu0 0
    %1949 = vmatprep.subr.bf16.mxu0 0
    %1950 = vmatpush1.bf16.msra.mxu0 0
    %1951 = vmatprep.subr.bf16.mxu0 0
    %1952 = vmatpush1.bf16.msra.mxu0 0
    %1953 = vmatprep.subr.bf16.mxu0 0
    %1954 = vmatpush1.bf16.msra.mxu0 0
    %1955 = vmatprep.subr.bf16.mxu0 0
    %1956 = vmatpush1.bf16.msra.mxu0 0
    %1957 = vmatprep.subr.bf16.mxu0 0
    %1958 = vmatpush1.bf16.msra.mxu0 0
    %1959 = vmatprep.subr.bf16.mxu0 0
    %1960 = vmatpush1.bf16.msra.mxu0 %v1943
    %1961 = vmatprep.subr.bf16.mxu0 0
    %1962 = vmatpush2.bf16.msra.mxu0 0
    %1963 = vmatprep.subr.bf16.mxu0 0
    %1964 = vmatpush2.bf16.msra.mxu0 0
    %1965 = vmatprep.subr.bf16.mxu0 0
    %1966 = vmatpush2.bf16.msra.mxu0 0
    %1967 = vmatprep.subr.bf16.mxu0 0
    %1968 = vmatpush2.bf16.msra.mxu0 0
    %1969 = vmatprep.subr.bf16.mxu0 0
    %1970 = vmatpush2.bf16.msra.mxu0 0
    %1971 = vmatprep.subr.bf16.mxu0 0
    %1972 = vmatpush2.bf16.msra.mxu0 0
    %1973 = vmatprep.subr.bf16.mxu0 0
    %1974 = vmatpush2.bf16.msra.mxu0 0
    %1975 = vmatprep.subr.bf16.mxu0 0
    %1976 = vmatpush2.bf16.msra.mxu0 0
    %1977 = vmatprep.mubr.bf16.mxu0 0
    %1978 = vmatmul.mubr.bf16.gmra.mxu0 %v1940
    %v1979 = vpop.f32.mrf.mxu0
    %v1980 = vadd.f32 %v1937, %v1979
    %v1981 = vpop.f32.mrf.mxu0
    %v1982 = vpop.f32.mrf.mxu0
    %v1983 = vpop.f32.mrf.mxu0
    %1984 = vdwg.mxu0
    %vm1985 = vcmp.gt.f32.partialorder %v1980, 0.0
    %v1986 = vmin.f32 %v1980, 0.0
    %v1987 = vmul.f32 %v1986, 1.442695
    %v1988 = vpow.pop %v1987
    %v1989 = vsub.f32 %v1988, 1.0
    %v1990 = vsel %vm1985, %v1980, %v1989
    %v1991 = vld [vmem:[#allocation32] sm:$0xff]
    %v1992 = vld [vmem:[#allocation32 + $0x8] sm:$0xf]
    %v1993 = vld [vmem:[#allocation32 + $0xc] sm:$0xff]
    %v1994 = vld [vmem:[#allocation32 + $0x14] sm:$0xf]
    %v1995 = vld [vmem:[#allocation32 + $0x18] sm:$0xff]
    %v1996 = vld [vmem:[#allocation32 + $0x20] sm:$0xf]
    %v1997 = vld [vmem:[#allocation32 + $0x24] sm:$0xff]
    %v1998 = vld [vmem:[#allocation32 + $0x2c] sm:$0xf]
    %v1999 = vld [vmem:[#allocation32 + $0x30] sm:$0xff]
    %v2000 = vld [vmem:[#allocation32 + $0x38] sm:$0xf]
    %v2001 = vld [vmem:[#allocation32 + $0x3c] sm:$0xff]
    %v2002 = vld [vmem:[#allocation32 + $0x44] sm:$0xf]
    %v2003 = vld [vmem:[#allocation32 + $0x48] sm:$0xff]
    %v2004 = vld [vmem:[#allocation32 + $0x50] sm:$0xf]
    %v2005 = vld [vmem:[#allocation32 + $0x54] sm:$0xff]
    %v2006 = vld [vmem:[#allocation32 + $0x5c] sm:$0xf]
    %v2007 = vld [vmem:[#allocation32 + $0x60] sm:$0xff]
    %v2008 = vld [vmem:[#allocation32 + $0x68] sm:$0xf]
    %v2009 = vld [vmem:[#allocation32 + $0x6c] sm:$0xff]
    %v2010 = vld [vmem:[#allocation32 + $0x74] sm:$0xf]
    %v2011 = vld [vmem:[#allocation32 + $0x78] sm:$0xff]
    %v2012 = vld [vmem:[#allocation32 + $0x80] sm:$0xf]
    %v2013 = vld [vmem:[#allocation32 + $0x84] sm:$0xff]
    %v2014 = vld [vmem:[#allocation32 + $0x8c] sm:$0xf]
    %v2015 = vld [vmem:[#allocation32 + $0x90] sm:$0xff]
    %v2016 = vld [vmem:[#allocation32 + $0x98] sm:$0xf]
    %v2017 = vld [vmem:[#allocation32 + $0x9c] sm:$0xff]
    %v2018 = vld [vmem:[#allocation32 + $0xa4] sm:$0xf]
    %v2019 = vld [vmem:[#allocation32 + $0xa8] sm:$0xff]
    %v2020 = vld [vmem:[#allocation32 + $0xb0] sm:$0xf]
    %v2021 = vld [vmem:[#allocation32 + $0xb4] sm:$0xff]
    %v2022 = vld [vmem:[#allocation32 + $0xbc] sm:$0xf]
    %v2023 = vld [vmem:[#allocation34] sm:$0xff]
    %v2024 = vld [vmem:[#allocation34 + $0x8] sm:$0xf]
    %v2025 = vld [vmem:[#allocation34 + $0xc] sm:$0xff]
    %v2026 = vld [vmem:[#allocation34 + $0x14] sm:$0xf]
    %v2027 = vld [vmem:[#allocation34 + $0x18] sm:$0xff]
    %v2028 = vld [vmem:[#allocation34 + $0x20] sm:$0xf]
    %v2029 = vld [vmem:[#allocation34 + $0x24] sm:$0xff]
    %v2030 = vld [vmem:[#allocation34 + $0x2c] sm:$0xf]
    %v2031 = vld [vmem:[#allocation34 + $0x30] sm:$0xff]
    %v2032 = vld [vmem:[#allocation34 + $0x38] sm:$0xf]
    %v2033 = vld [vmem:[#allocation34 + $0x3c] sm:$0xff]
    %v2034 = vld [vmem:[#allocation34 + $0x44] sm:$0xf]
    %v2035 = vld [vmem:[#allocation34 + $0x48] sm:$0xff]
    %v2036 = vld [vmem:[#allocation34 + $0x50] sm:$0xf]
    %v2037 = vld [vmem:[#allocation34 + $0x54] sm:$0xff]
    %v2038 = vld [vmem:[#allocation34 + $0x5c] sm:$0xf]
    %v2039 = vld [vmem:[#allocation34 + $0x60] sm:$0xff]
    %v2040 = vld [vmem:[#allocation34 + $0x68] sm:$0xf]
    %v2041 = vld [vmem:[#allocation34 + $0x6c] sm:$0xff]
    %v2042 = vld [vmem:[#allocation34 + $0x74] sm:$0xf]
    %v2043 = vld [vmem:[#allocation34 + $0x78] sm:$0xff]
    %v2044 = vld [vmem:[#allocation34 + $0x80] sm:$0xf]
    %v2045 = vld [vmem:[#allocation34 + $0x84] sm:$0xff]
    %v2046 = vld [vmem:[#allocation34 + $0x8c] sm:$0xf]
    %v2047 = vld [vmem:[#allocation34 + $0x90] sm:$0xff]
    %v2048 = vld [vmem:[#allocation34 + $0x98] sm:$0xf]
    %v2049 = vld [vmem:[#allocation34 + $0x9c] sm:$0xff]
    %v2050 = vld [vmem:[#allocation34 + $0xa4] sm:$0xf]
    %v2051 = vld [vmem:[#allocation34 + $0xa8] sm:$0xff]
    %v2052 = vld [vmem:[#allocation34 + $0xb0] sm:$0xf]
    %v2053 = vld [vmem:[#allocation34 + $0xb4] sm:$0xff]
    %v2054 = vld [vmem:[#allocation34 + $0xbc] sm:$0xf]
    %v2055 = vld [vmem:[#allocation35] sm:$0x7]
    %v2056 = vld [vmem:[#allocation37] sm:$0x7]
    %v2057 = vpack.c.bf16 %v1990, %v1990
    %v2059 = vlaneseq
    %v2060 = vshrl.u32 %v2059, 7
    %v2061 = vsub.s32 0, %v2060
    %v2062 = vrot.slane %v2055, %v2061
    %v2063 = vlaneseq
    %v2064 = vshrl.u32 %v2063, 7
    %v2065 = vsub.s32 1, %v2064
    %v2066 = vrot.slane %v2055, %v2065
    %v2067 = vlaneseq
    %v2068 = vshrl.u32 %v2067, 7
    %v2069 = vsub.s32 2, %v2068
    %v2070 = vrot.slane %v2055, %v2069
    %v2106 = vunpack.c.l.b16 %v1991
    %v2107 = vunpack.c.h.b16 %v1991
    %v2108 = vunpack.c.l.b16 %v1992
    %v2109 = vunpack.c.l.b16 %v1993
    %v2110 = vunpack.c.h.b16 %v1993
    %v2111 = vunpack.c.l.b16 %v1994
    %v2112 = vunpack.c.l.b16 %v1995
    %v2113 = vunpack.c.h.b16 %v1995
    %v2114 = vunpack.c.l.b16 %v1996
    %v2115 = vunpack.c.l.b16 %v1997
    %v2116 = vunpack.c.h.b16 %v1997
    %v2117 = vunpack.c.l.b16 %v1998
    %v2118 = vunpack.c.l.b16 %v1999
    %v2119 = vunpack.c.h.b16 %v1999
    %v2120 = vunpack.c.l.b16 %v2000
    %v2121 = vunpack.c.l.b16 %v2001
    %v2122 = vunpack.c.h.b16 %v2001
    %v2123 = vunpack.c.l.b16 %v2002
    %v2124 = vunpack.c.l.b16 %v2003
    %v2125 = vunpack.c.h.b16 %v2003
    %v2126 = vunpack.c.l.b16 %v2004
    %v2127 = vunpack.c.l.b16 %v2005
    %v2128 = vunpack.c.h.b16 %v2005
    %v2129 = vunpack.c.l.b16 %v2006
    %v2130 = vunpack.c.l.b16 %v2007
    %v2131 = vunpack.c.h.b16 %v2007
    %v2132 = vunpack.c.l.b16 %v2008
    %v2133 = vunpack.c.l.b16 %v2009
    %v2134 = vunpack.c.h.b16 %v2009
    %v2135 = vunpack.c.l.b16 %v2010
    %v2136 = vunpack.c.l.b16 %v2011
    %v2137 = vunpack.c.h.b16 %v2011
    %v2138 = vunpack.c.l.b16 %v2012
    %v2139 = vunpack.c.l.b16 %v2013
    %v2140 = vunpack.c.h.b16 %v2013
    %v2141 = vunpack.c.l.b16 %v2014
    %v2142 = vunpack.c.l.b16 %v2015
    %v2143 = vunpack.c.h.b16 %v2015
    %v2144 = vunpack.c.l.b16 %v2016
    %v2145 = vunpack.c.l.b16 %v2017
    %v2146 = vunpack.c.h.b16 %v2017
    %v2147 = vunpack.c.l.b16 %v2018
    %v2148 = vunpack.c.l.b16 %v2019
    %v2149 = vunpack.c.h.b16 %v2019
    %v2150 = vunpack.c.l.b16 %v2020
    %v2151 = vunpack.c.l.b16 %v2021
    %v2152 = vunpack.c.h.b16 %v2021
    %v2153 = vunpack.c.l.b16 %v2022
    %v2154 = vpack.c.b16 %v2109, %v2106
    %v2155 = vpack.c.b16 %v2110, %v2107
    %v2156 = vpack.c.b16 %v2111, %v2108
    %v2157 = vpack.c.b16 %v2115, %v2112
    %v2158 = vpack.c.b16 %v2116, %v2113
    %v2159 = vpack.c.b16 %v2117, %v2114
    %v2160 = vpack.c.b16 %v2121, %v2118
    %v2161 = vpack.c.b16 %v2122, %v2119
    %v2162 = vpack.c.b16 %v2123, %v2120
    %v2163 = vpack.c.b16 %v2127, %v2124
    %v2164 = vpack.c.b16 %v2128, %v2125
    %v2165 = vpack.c.b16 %v2129, %v2126
    %v2166 = vpack.c.b16 %v2133, %v2130
    %v2167 = vpack.c.b16 %v2134, %v2131
    %v2168 = vpack.c.b16 %v2135, %v2132
    %v2169 = vpack.c.b16 %v2139, %v2136
    %v2170 = vpack.c.b16 %v2140, %v2137
    %v2171 = vpack.c.b16 %v2141, %v2138
    %v2172 = vpack.c.b16 %v2145, %v2142
    %v2173 = vpack.c.b16 %v2146, %v2143
    %v2174 = vpack.c.b16 %v2147, %v2144
    %v2175 = vpack.c.b16 %v2151, %v2148
    %v2176 = vpack.c.b16 %v2152, %v2149
    %v2177 = vpack.c.b16 %v2153, %v2150
    %2202 = vmatprep.subr.bf16.mxu0 %v2176
    %2203 = vmatpush1.bf16.msra.mxu0 %v2175
    %2204 = vmatprep.subr.bf16.mxu0 %v2173
    %2205 = vmatpush1.bf16.msra.mxu0 %v2172
    %2206 = vmatprep.subr.bf16.mxu0 %v2170
    %2207 = vmatpush1.bf16.msra.mxu0 %v2169
    %2208 = vmatprep.subr.bf16.mxu0 %v2167
    %2209 = vmatpush1.bf16.msra.mxu0 %v2166
    %2210 = vmatprep.subr.bf16.mxu0 %v2164
    %2211 = vmatpush1.bf16.msra.mxu0 %v2163
    %2212 = vmatprep.subr.bf16.mxu0 %v2161
    %2213 = vmatpush1.bf16.msra.mxu0 %v2160
    %2214 = vmatprep.subr.bf16.mxu0 %v2158
    %2215 = vmatpush1.bf16.msra.mxu0 %v2157
    %2216 = vmatprep.subr.bf16.mxu0 %v2155
    %2217 = vmatpush1.bf16.msra.mxu0 %v2154
    %2218 = vmatprep.subr.bf16.mxu0 0
    %2219 = vmatpush2.bf16.msra.mxu0 0
    %2220 = vmatprep.subr.bf16.mxu0 0
    %2221 = vmatpush2.bf16.msra.mxu0 0
    %2222 = vmatprep.subr.bf16.mxu0 0
    %2223 = vmatpush2.bf16.msra.mxu0 0
    %2224 = vmatprep.subr.bf16.mxu0 0
    %2225 = vmatpush2.bf16.msra.mxu0 0
    %2226 = vmatprep.subr.bf16.mxu0 0
    %2227 = vmatpush2.bf16.msra.mxu0 0
    %2228 = vmatprep.subr.bf16.mxu0 0
    %2229 = vmatpush2.bf16.msra.mxu0 0
    %2230 = vmatprep.subr.bf16.mxu0 0
    %2231 = vmatpush2.bf16.msra.mxu0 0
    %2232 = vmatprep.subr.bf16.mxu0 0
    %2233 = vmatpush2.bf16.msra.mxu0 0
    %2234 = vmatprep.mubr.bf16.mxu0 0
    %2235 = vmatmul.mubr.bf16.gmra.mxu0 %v2057
    %v2236 = vpop.f32.mrf.mxu0
    %v2237 = vadd.f32 %v2062, %v2236
    %v2238 = vpop.f32.mrf.mxu0
    %v2239 = vadd.f32 %v2066, %v2238
    %v2240 = vpop.f32.mrf.mxu0
    %v2241 = vpop.f32.mrf.mxu0
    %2242 = vdwg.mxu0
    %2243 = vmatprep.subr.bf16.mxu0 0
    %2244 = vmatpush1.bf16.msra.mxu0 %v2177
    %2245 = vmatprep.subr.bf16.mxu0 0
    %2246 = vmatpush1.bf16.msra.mxu0 %v2174
    %2247 = vmatprep.subr.bf16.mxu0 0
    %2248 = vmatpush1.bf16.msra.mxu0 %v2171
    %2249 = vmatprep.subr.bf16.mxu0 0
    %2250 = vmatpush1.bf16.msra.mxu0 %v2168
    %2251 = vmatprep.subr.bf16.mxu0 0
    %2252 = vmatpush1.bf16.msra.mxu0 %v2165
    %2253 = vmatprep.subr.bf16.mxu0 0
    %2254 = vmatpush1.bf16.msra.mxu0 %v2162
    %2255 = vmatprep.subr.bf16.mxu0 0
    %2256 = vmatpush1.bf16.msra.mxu0 %v2159
    %2257 = vmatprep.subr.bf16.mxu0 0
    %2258 = vmatpush1.bf16.msra.mxu0 %v2156
    %2259 = vmatprep.subr.bf16.mxu0 0
    %2260 = vmatpush2.bf16.msra.mxu0 0
    %2261 = vmatprep.subr.bf16.mxu0 0
    %2262 = vmatpush2.bf16.msra.mxu0 0
    %2263 = vmatprep.subr.bf16.mxu0 0
    %2264 = vmatpush2.bf16.msra.mxu0 0
    %2265 = vmatprep.subr.bf16.mxu0 0
    %2266 = vmatpush2.bf16.msra.mxu0 0
    %2267 = vmatprep.subr.bf16.mxu0 0
    %2268 = vmatpush2.bf16.msra.mxu0 0
    %2269 = vmatprep.subr.bf16.mxu0 0
    %2270 = vmatpush2.bf16.msra.mxu0 0
    %2271 = vmatprep.subr.bf16.mxu0 0
    %2272 = vmatpush2.bf16.msra.mxu0 0
    %2273 = vmatprep.subr.bf16.mxu0 0
    %2274 = vmatpush2.bf16.msra.mxu0 0
    %2275 = vmatprep.mubr.bf16.mxu0 0
    %2276 = vmatmul.mubr.bf16.gmra.mxu0 %v2057
    %v2277 = vpop.f32.mrf.mxu0
    %v2278 = vadd.f32 %v2070, %v2277
    %v2279 = vpop.f32.mrf.mxu0
    %v2280 = vpop.f32.mrf.mxu0
    %v2281 = vpop.f32.mrf.mxu0
    %2282 = vdwg.mxu0
    %v2284 = vlaneseq
    %v2285 = vshrl.u32 %v2284, 7
    %v2286 = vsub.s32 0, %v2285
    %v2287 = vrot.slane %v2056, %v2286
    %v2288 = vlaneseq
    %v2289 = vshrl.u32 %v2288, 7
    %v2290 = vsub.s32 1, %v2289
    %v2291 = vrot.slane %v2056, %v2290
    %v2292 = vlaneseq
    %v2293 = vshrl.u32 %v2292, 7
    %v2294 = vsub.s32 2, %v2293
    %v2295 = vrot.slane %v2056, %v2294
    %v2331 = vunpack.c.l.b16 %v2023
    %v2332 = vunpack.c.h.b16 %v2023
    %v2333 = vunpack.c.l.b16 %v2024
    %v2334 = vunpack.c.l.b16 %v2025
    %v2335 = vunpack.c.h.b16 %v2025
    %v2336 = vunpack.c.l.b16 %v2026
    %v2337 = vunpack.c.l.b16 %v2027
    %v2338 = vunpack.c.h.b16 %v2027
    %v2339 = vunpack.c.l.b16 %v2028
    %v2340 = vunpack.c.l.b16 %v2029
    %v2341 = vunpack.c.h.b16 %v2029
    %v2342 = vunpack.c.l.b16 %v2030
    %v2343 = vunpack.c.l.b16 %v2031
    %v2344 = vunpack.c.h.b16 %v2031
    %v2345 = vunpack.c.l.b16 %v2032
    %v2346 = vunpack.c.l.b16 %v2033
    %v2347 = vunpack.c.h.b16 %v2033
    %v2348 = vunpack.c.l.b16 %v2034
    %v2349 = vunpack.c.l.b16 %v2035
    %v2350 = vunpack.c.h.b16 %v2035
    %v2351 = vunpack.c.l.b16 %v2036
    %v2352 = vunpack.c.l.b16 %v2037
    %v2353 = vunpack.c.h.b16 %v2037
    %v2354 = vunpack.c.l.b16 %v2038
    %v2355 = vunpack.c.l.b16 %v2039
    %v2356 = vunpack.c.h.b16 %v2039
    %v2357 = vunpack.c.l.b16 %v2040
    %v2358 = vunpack.c.l.b16 %v2041
    %v2359 = vunpack.c.h.b16 %v2041
    %v2360 = vunpack.c.l.b16 %v2042
    %v2361 = vunpack.c.l.b16 %v2043
    %v2362 = vunpack.c.h.b16 %v2043
    %v2363 = vunpack.c.l.b16 %v2044
    %v2364 = vunpack.c.l.b16 %v2045
    %v2365 = vunpack.c.h.b16 %v2045
    %v2366 = vunpack.c.l.b16 %v2046
    %v2367 = vunpack.c.l.b16 %v2047
    %v2368 = vunpack.c.h.b16 %v2047
    %v2369 = vunpack.c.l.b16 %v2048
    %v2370 = vunpack.c.l.b16 %v2049
    %v2371 = vunpack.c.h.b16 %v2049
    %v2372 = vunpack.c.l.b16 %v2050
    %v2373 = vunpack.c.l.b16 %v2051
    %v2374 = vunpack.c.h.b16 %v2051
    %v2375 = vunpack.c.l.b16 %v2052
    %v2376 = vunpack.c.l.b16 %v2053
    %v2377 = vunpack.c.h.b16 %v2053
    %v2378 = vunpack.c.l.b16 %v2054
    %v2379 = vpack.c.b16 %v2334, %v2331
    %v2380 = vpack.c.b16 %v2335, %v2332
    %v2381 = vpack.c.b16 %v2336, %v2333
    %v2382 = vpack.c.b16 %v2340, %v2337
    %v2383 = vpack.c.b16 %v2341, %v2338
    %v2384 = vpack.c.b16 %v2342, %v2339
    %v2385 = vpack.c.b16 %v2346, %v2343
    %v2386 = vpack.c.b16 %v2347, %v2344
    %v2387 = vpack.c.b16 %v2348, %v2345
    %v2388 = vpack.c.b16 %v2352, %v2349
    %v2389 = vpack.c.b16 %v2353, %v2350
    %v2390 = vpack.c.b16 %v2354, %v2351
    %v2391 = vpack.c.b16 %v2358, %v2355
    %v2392 = vpack.c.b16 %v2359, %v2356
    %v2393 = vpack.c.b16 %v2360, %v2357
    %v2394 = vpack.c.b16 %v2364, %v2361
    %v2395 = vpack.c.b16 %v2365, %v2362
    %v2396 = vpack.c.b16 %v2366, %v2363
    %v2397 = vpack.c.b16 %v2370, %v2367
    %v2398 = vpack.c.b16 %v2371, %v2368
    %v2399 = vpack.c.b16 %v2372, %v2369
    %v2400 = vpack.c.b16 %v2376, %v2373
    %v2401 = vpack.c.b16 %v2377, %v2374
    %v2402 = vpack.c.b16 %v2378, %v2375
    %2427 = vmatprep.subr.bf16.mxu0 %v2401
    %2428 = vmatpush1.bf16.msra.mxu0 %v2400
    %2429 = vmatprep.subr.bf16.mxu0 %v2398
    %2430 = vmatpush1.bf16.msra.mxu0 %v2397
    %2431 = vmatprep.subr.bf16.mxu0 %v2395
    %2432 = vmatpush1.bf16.msra.mxu0 %v2394
    %2433 = vmatprep.subr.bf16.mxu0 %v2392
    %2434 = vmatpush1.bf16.msra.mxu0 %v2391
    %2435 = vmatprep.subr.bf16.mxu0 %v2389
    %2436 = vmatpush1.bf16.msra.mxu0 %v2388
    %2437 = vmatprep.subr.bf16.mxu0 %v2386
    %2438 = vmatpush1.bf16.msra.mxu0 %v2385
    %2439 = vmatprep.subr.bf16.mxu0 %v2383
    %2440 = vmatpush1.bf16.msra.mxu0 %v2382
    %2441 = vmatprep.subr.bf16.mxu0 %v2380
    %2442 = vmatpush1.bf16.msra.mxu0 %v2379
    %2443 = vmatprep.subr.bf16.mxu0 0
    %2444 = vmatpush2.bf16.msra.mxu0 0
    %2445 = vmatprep.subr.bf16.mxu0 0
    %2446 = vmatpush2.bf16.msra.mxu0 0
    %2447 = vmatprep.subr.bf16.mxu0 0
    %2448 = vmatpush2.bf16.msra.mxu0 0
    %2449 = vmatprep.subr.bf16.mxu0 0
    %2450 = vmatpush2.bf16.msra.mxu0 0
    %2451 = vmatprep.subr.bf16.mxu0 0
    %2452 = vmatpush2.bf16.msra.mxu0 0
    %2453 = vmatprep.subr.bf16.mxu0 0
    %2454 = vmatpush2.bf16.msra.mxu0 0
    %2455 = vmatprep.subr.bf16.mxu0 0
    %2456 = vmatpush2.bf16.msra.mxu0 0
    %2457 = vmatprep.subr.bf16.mxu0 0
    %2458 = vmatpush2.bf16.msra.mxu0 0
    %2459 = vmatprep.mubr.bf16.mxu0 0
    %2460 = vmatmul.mubr.bf16.gmra.mxu0 %v1741
    %v2461 = vpop.f32.mrf.mxu0
    %v2462 = vadd.f32 %v2287, %v2461
    %v2463 = vpop.f32.mrf.mxu0
    %v2464 = vadd.f32 %v2291, %v2463
    %v2465 = vpop.f32.mrf.mxu0
    %v2466 = vpop.f32.mrf.mxu0
    %2467 = vdwg.mxu0
    %2468 = vmatprep.subr.bf16.mxu0 0
    %2469 = vmatpush1.bf16.msra.mxu0 %v2402
    %2470 = vmatprep.subr.bf16.mxu0 0
    %2471 = vmatpush1.bf16.msra.mxu0 %v2399
    %2472 = vmatprep.subr.bf16.mxu0 0
    %2473 = vmatpush1.bf16.msra.mxu0 %v2396
    %2474 = vmatprep.subr.bf16.mxu0 0
    %2475 = vmatpush1.bf16.msra.mxu0 %v2393
    %2476 = vmatprep.subr.bf16.mxu0 0
    %2477 = vmatpush1.bf16.msra.mxu0 %v2390
    %2478 = vmatprep.subr.bf16.mxu0 0
    %2479 = vmatpush1.bf16.msra.mxu0 %v2387
    %2480 = vmatprep.subr.bf16.mxu0 0
    %2481 = vmatpush1.bf16.msra.mxu0 %v2384
    %2482 = vmatprep.subr.bf16.mxu0 0
    %2483 = vmatpush1.bf16.msra.mxu0 %v2381
    %2484 = vmatprep.subr.bf16.mxu0 0
    %2485 = vmatpush2.bf16.msra.mxu0 0
    %2486 = vmatprep.subr.bf16.mxu0 0
    %2487 = vmatpush2.bf16.msra.mxu0 0
    %2488 = vmatprep.subr.bf16.mxu0 0
    %2489 = vmatpush2.bf16.msra.mxu0 0
    %2490 = vmatprep.subr.bf16.mxu0 0
    %2491 = vmatpush2.bf16.msra.mxu0 0
    %2492 = vmatprep.subr.bf16.mxu0 0
    %2493 = vmatpush2.bf16.msra.mxu0 0
    %2494 = vmatprep.subr.bf16.mxu0 0
    %2495 = vmatpush2.bf16.msra.mxu0 0
    %2496 = vmatprep.subr.bf16.mxu0 0
    %2497 = vmatpush2.bf16.msra.mxu0 0
    %2498 = vmatprep.subr.bf16.mxu0 0
    %2499 = vmatpush2.bf16.msra.mxu0 0
    %2500 = vmatprep.mubr.bf16.mxu0 0
    %2501 = vmatmul.mubr.bf16.gmra.mxu0 %v1741
    %v2502 = vpop.f32.mrf.mxu0
    %v2503 = vadd.f32 %v2295, %v2502
    %v2504 = vpop.f32.mrf.mxu0
    %v2505 = vpop.f32.mrf.mxu0
    %v2506 = vpop.f32.mrf.mxu0
    %2507 = vdwg.mxu0
    %v2508 = vadd.f32 %v2237, %v2462
    %v2509 = vxor.u32 %v2508, 2147483648
    %v2510 = vmul.f32 %v2509, 1.442695
    %v2511 = vpow.pop %v2510
    %v2512 = vadd.f32 %v2511, 1.0
    %v2513 = vrcp.pop %v2512
    %v2514 = vmul.f32 1.0, %v2513
    %v2515 = vadd.f32 %v2239, %v2464
    %v2516 = vxor.u32 %v2515, 2147483648
    %v2517 = vmul.f32 %v2516, 1.442695
    %v2518 = vpow.pop %v2517
    %v2519 = vadd.f32 %v2518, 1.0
    %v2520 = vrcp.pop %v2519
    %v2521 = vmul.f32 1.0, %v2520
    %v2522 = vmul.f32 %v2514, %v2503
    %v2523 = vadd.f32 %v2278, %v2522
    %v2524 = vtanh.pop %v2523
    %v2525 = vsub.f32 1.0, %v2521
    %v2526 = vmul.f32 %v2525, %v2524
    %v2527 = vmul.f32 %v2521, %v1721
    %v2528 = vadd.f32 %v2526, %v2527
    %v2529 = vmax.f32 %v2528, 0.0
    %v2530 = vpack.c.bf16 %v511, %v511
    %v2531 = vpack.c.bf16 %v2529, %v2529
    %v2533 = vsel %vm694, %v2530, 0
    %v2536 = vsel %vm707, %v2531, 0
    %2538 = vmatprep.subr.bf16.mxu0 0
    %2539 = vmatpush1.bf16.msra.mxu0 0
    %2540 = vmatprep.subr.bf16.mxu0 0
    %2541 = vmatpush1.bf16.msra.mxu0 0
    %2542 = vmatprep.subr.bf16.mxu0 0
    %2543 = vmatpush1.bf16.msra.mxu0 0
    %2544 = vmatprep.subr.bf16.mxu0 0
    %2545 = vmatpush1.bf16.msra.mxu0 0
    %2546 = vmatprep.subr.bf16.mxu0 0
    %2547 = vmatpush1.bf16.msra.mxu0 0
    %2548 = vmatprep.subr.bf16.mxu0 0
    %2549 = vmatpush1.bf16.msra.mxu0 0
    %2550 = vmatprep.subr.bf16.mxu0 0
    %2551 = vmatpush1.bf16.msra.mxu0 0
    %2552 = vmatprep.subr.bf16.mxu0 0
    %2553 = vmatpush1.bf16.msra.mxu0 %v2536
    %2554 = vmatprep.subr.bf16.mxu0 0
    %2555 = vmatpush2.bf16.msra.mxu0 0
    %2556 = vmatprep.subr.bf16.mxu0 0
    %2557 = vmatpush2.bf16.msra.mxu0 0
    %2558 = vmatprep.subr.bf16.mxu0 0
    %2559 = vmatpush2.bf16.msra.mxu0 0
    %2560 = vmatprep.subr.bf16.mxu0 0
    %2561 = vmatpush2.bf16.msra.mxu0 0
    %2562 = vmatprep.subr.bf16.mxu0 0
    %2563 = vmatpush2.bf16.msra.mxu0 0
    %2564 = vmatprep.subr.bf16.mxu0 0
    %2565 = vmatpush2.bf16.msra.mxu0 0
    %2566 = vmatprep.subr.bf16.mxu0 0
    %2567 = vmatpush2.bf16.msra.mxu0 0
    %2568 = vmatprep.subr.bf16.mxu0 0
    %2569 = vmatpush2.bf16.msra.mxu0 0
    %2570 = vmatprep.mubr.bf16.mxu0 0
    %2571 = vmatmul.mubr.bf16.gmra.mxu0 %v2533
    %v2572 = vpop.f32.mrf.mxu0
    %v2573 = vadd.f32 0.0, %v2572
    %v2574 = vpop.f32.mrf.mxu0
    %v2575 = vpop.f32.mrf.mxu0
    %v2576 = vpop.f32.mrf.mxu0
    %2577 = vdwg.mxu0
    %v2578 = vmax.f32 %v2573, 0.0
    %v2579 = vld [vmem:[#allocation38] sm:$0xf]
    %v2580 = vld [vmem:[#allocation38 + $0x4] sm:$0xf]
    %v2581 = vld [vmem:[#allocation38 + $0x8] sm:$0xf]
    %v2582 = vld [vmem:[#allocation38 + $0xc] sm:$0xf]
    %v2583 = vld [vmem:[#allocation38 + $0x10] sm:$0xf]
    %v2584 = vld [vmem:[#allocation38 + $0x14] sm:$0xf]
    %v2585 = vld [vmem:[#allocation38 + $0x18] sm:$0xf]
    %v2586 = vld [vmem:[#allocation38 + $0x1c] sm:$0xf]
    %v2587 = vld [vmem:[#allocation38 + $0x20] sm:$0xf]
    %v2588 = vld [vmem:[#allocation38 + $0x24] sm:$0xf]
    %v2589 = vld [vmem:[#allocation38 + $0x28] sm:$0xf]
    %v2590 = vld [vmem:[#allocation38 + $0x2c] sm:$0xf]
    %v2591 = vld [vmem:[#allocation38 + $0x30] sm:$0xf]
    %v2592 = vld [vmem:[#allocation38 + $0x34] sm:$0xf]
    %v2593 = vld [vmem:[#allocation38 + $0x38] sm:$0xf]
    %v2594 = vld [vmem:[#allocation38 + $0x3c] sm:$0xf]
    %v2595 = vld [vmem:[#allocation40] sm:$0x1]
    %v2596 = vld [vmem:[#allocation41] sm:$0x1]
    %v2597 = vld [vmem:[#allocation43] sm:$0x1]
    %v2598 = vld [vmem:[#allocation44] sm:$0xff]
    %v2599 = vld [vmem:[#allocation44 + $0x8] sm:$0xf]
    %v2600 = vld [vmem:[#allocation44 + $0xc] sm:$0xff]
    %v2601 = vld [vmem:[#allocation44 + $0x14] sm:$0xf]
    %v2602 = vld [vmem:[#allocation44 + $0x18] sm:$0xff]
    %v2603 = vld [vmem:[#allocation44 + $0x20] sm:$0xf]
    %v2604 = vld [vmem:[#allocation44 + $0x24] sm:$0xff]
    %v2605 = vld [vmem:[#allocation44 + $0x2c] sm:$0xf]
    %v2606 = vld [vmem:[#allocation44 + $0x30] sm:$0xff]
    %v2607 = vld [vmem:[#allocation44 + $0x38] sm:$0xf]
    %v2608 = vld [vmem:[#allocation44 + $0x3c] sm:$0xff]
    %v2609 = vld [vmem:[#allocation44 + $0x44] sm:$0xf]
    %v2610 = vld [vmem:[#allocation44 + $0x48] sm:$0xff]
    %v2611 = vld [vmem:[#allocation44 + $0x50] sm:$0xf]
    %v2612 = vld [vmem:[#allocation44 + $0x54] sm:$0xff]
    %v2613 = vld [vmem:[#allocation44 + $0x5c] sm:$0xf]
    %v2614 = vld [vmem:[#allocation44 + $0x60] sm:$0xff]
    %v2615 = vld [vmem:[#allocation44 + $0x68] sm:$0xf]
    %v2616 = vld [vmem:[#allocation44 + $0x6c] sm:$0xff]
    %v2617 = vld [vmem:[#allocation44 + $0x74] sm:$0xf]
    %v2618 = vld [vmem:[#allocation44 + $0x78] sm:$0xff]
    %v2619 = vld [vmem:[#allocation44 + $0x80] sm:$0xf]
    %v2620 = vld [vmem:[#allocation44 + $0x84] sm:$0xff]
    %v2621 = vld [vmem:[#allocation44 + $0x8c] sm:$0xf]
    %v2622 = vld [vmem:[#allocation44 + $0x90] sm:$0xff]
    %v2623 = vld [vmem:[#allocation44 + $0x98] sm:$0xf]
    %v2624 = vld [vmem:[#allocation44 + $0x9c] sm:$0xff]
    %v2625 = vld [vmem:[#allocation44 + $0xa4] sm:$0xf]
    %v2626 = vld [vmem:[#allocation44 + $0xa8] sm:$0xff]
    %v2627 = vld [vmem:[#allocation44 + $0xb0] sm:$0xf]
    %v2628 = vld [vmem:[#allocation44 + $0xb4] sm:$0xff]
    %v2629 = vld [vmem:[#allocation44 + $0xbc] sm:$0xf]
    %v2630 = vld [vmem:[%s59] sm:$0xff]
    %v2631 = vld [vmem:[%s59 + $0x8] sm:$0xf]
    %v2632 = vld [vmem:[%s59 + $0xc] sm:$0xff]
    %v2633 = vld [vmem:[%s59 + $0x14] sm:$0xf]
    %v2634 = vld [vmem:[%s59 + $0x18] sm:$0xff]
    %v2635 = vld [vmem:[%s59 + $0x20] sm:$0xf]
    %v2636 = vld [vmem:[%s59 + $0x24] sm:$0xff]
    %v2637 = vld [vmem:[%s59 + $0x2c] sm:$0xf]
    %v2638 = vld [vmem:[%s59 + $0x30] sm:$0xff]
    %v2639 = vld [vmem:[%s59 + $0x38] sm:$0xf]
    %v2640 = vld [vmem:[%s59 + $0x3c] sm:$0xff]
    %v2641 = vld [vmem:[%s59 + $0x44] sm:$0xf]
    %v2642 = vld [vmem:[%s59 + $0x48] sm:$0xff]
    %v2643 = vld [vmem:[%s59 + $0x50] sm:$0xf]
    %v2644 = vld [vmem:[%s59 + $0x54] sm:$0xff]
    %v2645 = vld [vmem:[%s59 + $0x5c] sm:$0xf]
    %v2646 = vld [vmem:[%s59 + $0x60] sm:$0xff]
    %v2647 = vld [vmem:[%s59 + $0x68] sm:$0xf]
    %v2648 = vld [vmem:[%s59 + $0x6c] sm:$0xff]
    %v2649 = vld [vmem:[%s59 + $0x74] sm:$0xf]
    %v2650 = vld [vmem:[%s59 + $0x78] sm:$0xff]
    %v2651 = vld [vmem:[%s59 + $0x80] sm:$0xf]
    %v2652 = vld [vmem:[%s59 + $0x84] sm:$0xff]
    %v2653 = vld [vmem:[%s59 + $0x8c] sm:$0xf]
    %v2654 = vld [vmem:[%s59 + $0x90] sm:$0xff]
    %v2655 = vld [vmem:[%s59 + $0x98] sm:$0xf]
    %v2656 = vld [vmem:[%s59 + $0x9c] sm:$0xff]
    %v2657 = vld [vmem:[%s59 + $0xa4] sm:$0xf]
    %v2658 = vld [vmem:[%s59 + $0xa8] sm:$0xff]
    %v2659 = vld [vmem:[%s59 + $0xb0] sm:$0xf]
    %v2660 = vld [vmem:[%s59 + $0xb4] sm:$0xff]
    %v2661 = vld [vmem:[%s59 + $0xbc] sm:$0xf]
    %v2662 = vld [vmem:[#allocation46] sm:$0x7]
    %v2663 = vld [vmem:[#allocation47] sm:$0x7]
    loop: start=0, step=1, limit=2
    $region258: #{tpu_custom_call.1} parent=1 // loop_pre_header
      _
    $region259: #{tpu_custom_call.1} parent=1 // loop_header
      %s2665 = sphi 0, %s2669
      %p2666 = scmp.ge.s32.totalorder %s2665, 2
      %v2670 = vphi %v2578, %v3397
    $region260: #{tpu_custom_call.1} parent=1 // loop_header_branch
      %2668 = sbr.rel (%p2666) target = $region264
    $region261: #{tpu_custom_call.1} parent=1 // loop_body
      %v2687 = vunpack.c.l.b16 %v2579
      %v2688 = vunpack.c.l.b16 %v2580
      %v2689 = vunpack.c.l.b16 %v2581
      %v2690 = vunpack.c.l.b16 %v2582
      %v2691 = vunpack.c.l.b16 %v2583
      %v2692 = vunpack.c.l.b16 %v2584
      %v2693 = vunpack.c.l.b16 %v2585
      %v2694 = vunpack.c.l.b16 %v2586
      %v2695 = vunpack.c.l.b16 %v2587
      %v2696 = vunpack.c.l.b16 %v2588
      %v2697 = vunpack.c.l.b16 %v2589
      %v2698 = vunpack.c.l.b16 %v2590
      %v2699 = vunpack.c.l.b16 %v2591
      %v2700 = vunpack.c.l.b16 %v2592
      %v2701 = vunpack.c.l.b16 %v2593
      %v2702 = vunpack.c.l.b16 %v2594
      %v2703 = vpack.c.b16 %v2688, %v2687
      %v2704 = vpack.c.b16 %v2690, %v2689
      %v2705 = vpack.c.b16 %v2692, %v2691
      %v2706 = vpack.c.b16 %v2694, %v2693
      %v2707 = vpack.c.b16 %v2696, %v2695
      %v2708 = vpack.c.b16 %v2698, %v2697
      %v2709 = vpack.c.b16 %v2700, %v2699
      %v2710 = vpack.c.b16 %v2702, %v2701
      %2719 = vmatprep.subr.bf16.mxu0 0
      %2720 = vmatpush1.bf16.msra.mxu0 %v2710
      %2721 = vmatprep.subr.bf16.mxu0 0
      %2722 = vmatpush1.bf16.msra.mxu0 %v2709
      %2723 = vmatprep.subr.bf16.mxu0 0
      %2724 = vmatpush1.bf16.msra.mxu0 %v2708
      %2725 = vmatprep.subr.bf16.mxu0 0
      %2726 = vmatpush1.bf16.msra.mxu0 %v2707
      %2727 = vmatprep.subr.bf16.mxu0 0
      %2728 = vmatpush1.bf16.msra.mxu0 %v2706
      %2729 = vmatprep.subr.bf16.mxu0 0
      %2730 = vmatpush1.bf16.msra.mxu0 %v2705
      %2731 = vmatprep.subr.bf16.mxu0 0
      %2732 = vmatpush1.bf16.msra.mxu0 %v2704
      %2733 = vmatprep.subr.bf16.mxu0 0
      %2734 = vmatpush1.bf16.msra.mxu0 %v2703
      %2735 = vmatprep.subr.bf16.mxu0 0
      %2736 = vmatpush2.bf16.msra.mxu0 0
      %2737 = vmatprep.subr.bf16.mxu0 0
      %2738 = vmatpush2.bf16.msra.mxu0 0
      %2739 = vmatprep.subr.bf16.mxu0 0
      %2740 = vmatpush2.bf16.msra.mxu0 0
      %2741 = vmatprep.subr.bf16.mxu0 0
      %2742 = vmatpush2.bf16.msra.mxu0 0
      %2743 = vmatprep.subr.bf16.mxu0 0
      %2744 = vmatpush2.bf16.msra.mxu0 0
      %2745 = vmatprep.subr.bf16.mxu0 0
      %2746 = vmatpush2.bf16.msra.mxu0 0
      %2747 = vmatprep.subr.bf16.mxu0 0
      %2748 = vmatpush2.bf16.msra.mxu0 0
      %2749 = vmatprep.subr.bf16.mxu0 0
      %2750 = vmatpush2.bf16.msra.mxu0 0
      %2751 = vmatprep.mubr.bf16.mxu0 0
      %2752 = vmatmul.mubr.bf16.gmra.mxu0 %v2531
      %v2753 = vpop.f32.mrf.mxu0
      %v2754 = vadd.f32 0.0, %v2753
      %v2755 = vpop.f32.mrf.mxu0
      %v2756 = vpop.f32.mrf.mxu0
      %v2757 = vpop.f32.mrf.mxu0
      %2758 = vdwg.mxu0
      %2759 = vmatprep.subr.mxu0 0.0
      %2760 = vmatpush1.xpose.msra.mxu0 0.0
      %2761 = vmatprep.subr.mxu0 0.0
      %2762 = vmatpush1.xpose.msra.mxu0 0.0
      %2763 = vmatprep.subr.mxu0 0.0
      %2764 = vmatpush1.xpose.msra.mxu0 0.0
      %2765 = vmatprep.subr.mxu0 0.0
      %2766 = vmatpush1.xpose.msra.mxu0 0.0
      %2767 = vmatprep.subr.mxu0 0.0
      %2768 = vmatpush1.xpose.msra.mxu0 0.0
      %2769 = vmatprep.subr.mxu0 0.0
      %2770 = vmatpush1.xpose.msra.mxu0 0.0
      %2771 = vmatprep.subr.mxu0 0.0
      %2772 = vmatpush1.xpose.msra.mxu0 0.0
      %2773 = vmatprep.subr.mxu0 0.0
      %2774 = vmatpush1.xpose.msra.mxu0 0.0
      %2775 = vmatprep.subr.mxu0 0.0
      %2776 = vmatpush1.xpose.msra.mxu0 0.0
      %2777 = vmatprep.subr.mxu0 0.0
      %2778 = vmatpush1.xpose.msra.mxu0 0.0
      %2779 = vmatprep.subr.mxu0 0.0
      %2780 = vmatpush1.xpose.msra.mxu0 0.0
      %2781 = vmatprep.subr.mxu0 0.0
      %2782 = vmatpush1.xpose.msra.mxu0 0.0
      %2783 = vmatprep.subr.mxu0 0.0
      %2784 = vmatpush1.xpose.msra.mxu0 0.0
      %2785 = vmatprep.subr.mxu0 0.0
      %2786 = vmatpush1.xpose.msra.mxu0 0.0
      %2787 = vmatprep.subr.mxu0 0.0
      %2788 = vmatpush1.xpose.msra.mxu0 0.0
      %2789 = vmatprep.subr.mxu0 0.0
      %2790 = vmatpush1.xpose.msra.mxu0 %v2529
      %2791 = vmatprep.subr.mxu0 0.0
      %2792 = vmatpush2.xpose.msra.mxu0 0.0
      %2793 = vmatprep.subr.mxu0 0.0
      %2794 = vmatpush2.xpose.msra.mxu0 0.0
      %2795 = vmatprep.subr.mxu0 0.0
      %2796 = vmatpush2.xpose.msra.mxu0 0.0
      %2797 = vmatprep.subr.mxu0 0.0
      %2798 = vmatpush2.xpose.msra.mxu0 0.0
      %2799 = vmatprep.subr.mxu0 0.0
      %2800 = vmatpush2.xpose.msra.mxu0 0.0
      %2801 = vmatprep.subr.mxu0 0.0
      %2802 = vmatpush2.xpose.msra.mxu0 0.0
      %2803 = vmatprep.subr.mxu0 0.0
      %2804 = vmatpush2.xpose.msra.mxu0 0.0
      %2805 = vmatprep.subr.mxu0 0.0
      %2806 = vmatpush2.xpose.msra.mxu0 0.0
      %2807 = vmatprep.subr.mxu0 0.0
      %2808 = vmatpush2.xpose.msra.mxu0 0.0
      %2809 = vmatprep.subr.mxu0 0.0
      %2810 = vmatpush2.xpose.msra.mxu0 0.0
      %2811 = vmatprep.subr.mxu0 0.0
      %2812 = vmatpush2.xpose.msra.mxu0 0.0
      %2813 = vmatprep.subr.mxu0 0.0
      %2814 = vmatpush2.xpose.msra.mxu0 0.0
      %2815 = vmatprep.subr.mxu0 0.0
      %2816 = vmatpush2.xpose.msra.mxu0 0.0
      %2817 = vmatprep.subr.mxu0 0.0
      %2818 = vmatpush2.xpose.msra.mxu0 0.0
      %2819 = vmatprep.subr.mxu0 0.0
      %2820 = vmatpush2.xpose.msra.mxu0 0.0
      %2821 = vmatprep.subr.mxu0 0.0
      %2822 = vmatpush2.xpose.msra.mxu0 0.0
      %2823 = vmatprep.mubr.f32.mxu0 0.0
      %2824 = vmatmul.mubr.f32.gmra.mxu0 %v2595
      %v2825 = vpop.f32.mrf.mxu0
      %v2826 = vadd.f32 0.0, %v2825
      %v2827 = vpop.f32.mrf.mxu0
      %2828 = vdwg.mxu0
      %v2830 = vlaneseq
      %v2831 = vshrl.u32 %v2830, 7
      %v2832 = vsub.s32 0, %v2831
      %v2833 = vrot.slane %v2596, %v2832
      %v2835 = vmul.f32 %v2670, %v2833
      %vm2836 = vcmask 1041408
      %v2837 = vsel %vm2836, %v2835, 0.0
      %2838 = vadd.xlane.f32.xlu0 %v2837
      %v2839 = vpop.xlane.xlu0 %2838
      %v2840 = vlaneseq
      %v2841 = vshrl.u32 %v2840, 7
      %v2842 = vsub.s32 0, %v2841
      %v2843 = vrot.slane %v2826, %v2842
      %v2844 = vadd.f32 %v2839, %v2843
      %vm2845 = vcmp.gt.f32.partialorder %v2844, 0.0
      %v2846 = vmul.f32 %v2844, 0.01
      %v2847 = vsel %vm2845, %v2844, %v2846
      %vm2848 = vcmp.gt.f32.partialorder %v511, 0.0
      %v2849 = vsel %vm2848, %v2847, -1e+30
      %vm2850 = vcmask 58368
      %v2851 = vsel %vm2850, %v2849, -inf
      %2852 = vmax.xlane.f32.xlu0 %v2851
      %v2853 = vpop.xlane.xlu0 %2852
      %v2854 = vsub.f32 %v2849, %v2853
      %v2855 = vmul.f32 %v2854, 1.442695
      %v2856 = vpow.pop %v2855
      %v2857 = vsel %vm2848, %v2856, 0.0
      %v2858 = vsel %vm2850, %v2857, 0.0
      %2859 = vadd.xlane.f32.xlu0 %v2858
      %v2860 = vpop.xlane.xlu0 %2859
      %v2861 = vmax.f32 %v2860, 1e-16
      %v2862 = vrcp.pop %v2861
      %v2863 = vmul.f32 %v2857, %v2862
      %v2864 = vpack.c.bf16 %v2863, %v2863
      %v2865 = vpack.c.bf16 %v2754, %v2754
      %v2867 = vlaneseq
      %v2868 = vshrl.u32 %v2867, 7
      %v2869 = vsub.s32 0, %v2868
      %v2870 = vrot.slane %v2597, %v2869
      %v2873 = vsel %vm694, %v2864, 0
      %v2876 = vsel %vm707, %v2865, 0
      %2878 = vmatprep.subr.bf16.mxu0 0
      %2879 = vmatpush1.bf16.msra.mxu0 0
      %2880 = vmatprep.subr.bf16.mxu0 0
      %2881 = vmatpush1.bf16.msra.mxu0 0
      %2882 = vmatprep.subr.bf16.mxu0 0
      %2883 = vmatpush1.bf16.msra.mxu0 0
      %2884 = vmatprep.subr.bf16.mxu0 0
      %2885 = vmatpush1.bf16.msra.mxu0 0
      %2886 = vmatprep.subr.bf16.mxu0 0
      %2887 = vmatpush1.bf16.msra.mxu0 0
      %2888 = vmatprep.subr.bf16.mxu0 0
      %2889 = vmatpush1.bf16.msra.mxu0 0
      %2890 = vmatprep.subr.bf16.mxu0 0
      %2891 = vmatpush1.bf16.msra.mxu0 0
      %2892 = vmatprep.subr.bf16.mxu0 0
      %2893 = vmatpush1.bf16.msra.mxu0 %v2876
      %2894 = vmatprep.subr.bf16.mxu0 0
      %2895 = vmatpush2.bf16.msra.mxu0 0
      %2896 = vmatprep.subr.bf16.mxu0 0
      %2897 = vmatpush2.bf16.msra.mxu0 0
      %2898 = vmatprep.subr.bf16.mxu0 0
      %2899 = vmatpush2.bf16.msra.mxu0 0
      %2900 = vmatprep.subr.bf16.mxu0 0
      %2901 = vmatpush2.bf16.msra.mxu0 0
      %2902 = vmatprep.subr.bf16.mxu0 0
      %2903 = vmatpush2.bf16.msra.mxu0 0
      %2904 = vmatprep.subr.bf16.mxu0 0
      %2905 = vmatpush2.bf16.msra.mxu0 0
      %2906 = vmatprep.subr.bf16.mxu0 0
      %2907 = vmatpush2.bf16.msra.mxu0 0
      %2908 = vmatprep.subr.bf16.mxu0 0
      %2909 = vmatpush2.bf16.msra.mxu0 0
      %2910 = vmatprep.mubr.bf16.mxu0 0
      %2911 = vmatmul.mubr.bf16.gmra.mxu0 %v2873
      %v2912 = vpop.f32.mrf.mxu0
      %v2913 = vadd.f32 %v2870, %v2912
      %v2914 = vpop.f32.mrf.mxu0
      %v2915 = vpop.f32.mrf.mxu0
      %v2916 = vpop.f32.mrf.mxu0
      %2917 = vdwg.mxu0
      %vm2918 = vcmp.gt.f32.partialorder %v2913, 0.0
      %v2919 = vmin.f32 %v2913, 0.0
      %v2920 = vmul.f32 %v2919, 1.442695
      %v2921 = vpow.pop %v2920
      %v2922 = vsub.f32 %v2921, 1.0
      %v2923 = vsel %vm2918, %v2913, %v2922
      %v2924 = vpack.c.bf16 %v2923, %v2923
      %v2926 = vlaneseq
      %v2927 = vshrl.u32 %v2926, 7
      %v2928 = vsub.s32 0, %v2927
      %v2929 = vrot.slane %v2662, %v2928
      %v2930 = vlaneseq
      %v2931 = vshrl.u32 %v2930, 7
      %v2932 = vsub.s32 1, %v2931
      %v2933 = vrot.slane %v2662, %v2932
      %v2934 = vlaneseq
      %v2935 = vshrl.u32 %v2934, 7
      %v2936 = vsub.s32 2, %v2935
      %v2937 = vrot.slane %v2662, %v2936
      %v2973 = vunpack.c.l.b16 %v2598
      %v2974 = vunpack.c.h.b16 %v2598
      %v2975 = vunpack.c.l.b16 %v2599
      %v2976 = vunpack.c.l.b16 %v2600
      %v2977 = vunpack.c.h.b16 %v2600
      %v2978 = vunpack.c.l.b16 %v2601
      %v2979 = vunpack.c.l.b16 %v2602
      %v2980 = vunpack.c.h.b16 %v2602
      %v2981 = vunpack.c.l.b16 %v2603
      %v2982 = vunpack.c.l.b16 %v2604
      %v2983 = vunpack.c.h.b16 %v2604
      %v2984 = vunpack.c.l.b16 %v2605
      %v2985 = vunpack.c.l.b16 %v2606
      %v2986 = vunpack.c.h.b16 %v2606
      %v2987 = vunpack.c.l.b16 %v2607
      %v2988 = vunpack.c.l.b16 %v2608
      %v2989 = vunpack.c.h.b16 %v2608
      %v2990 = vunpack.c.l.b16 %v2609
      %v2991 = vunpack.c.l.b16 %v2610
      %v2992 = vunpack.c.h.b16 %v2610
      %v2993 = vunpack.c.l.b16 %v2611
      %v2994 = vunpack.c.l.b16 %v2612
      %v2995 = vunpack.c.h.b16 %v2612
      %v2996 = vunpack.c.l.b16 %v2613
      %v2997 = vunpack.c.l.b16 %v2614
      %v2998 = vunpack.c.h.b16 %v2614
      %v2999 = vunpack.c.l.b16 %v2615
      %v3000 = vunpack.c.l.b16 %v2616
      %v3001 = vunpack.c.h.b16 %v2616
      %v3002 = vunpack.c.l.b16 %v2617
      %v3003 = vunpack.c.l.b16 %v2618
      %v3004 = vunpack.c.h.b16 %v2618
      %v3005 = vunpack.c.l.b16 %v2619
      %v3006 = vunpack.c.l.b16 %v2620
      %v3007 = vunpack.c.h.b16 %v2620
      %v3008 = vunpack.c.l.b16 %v2621
      %v3009 = vunpack.c.l.b16 %v2622
      %v3010 = vunpack.c.h.b16 %v2622
      %v3011 = vunpack.c.l.b16 %v2623
      %v3012 = vunpack.c.l.b16 %v2624
      %v3013 = vunpack.c.h.b16 %v2624
      %v3014 = vunpack.c.l.b16 %v2625
      %v3015 = vunpack.c.l.b16 %v2626
      %v3016 = vunpack.c.h.b16 %v2626
      %v3017 = vunpack.c.l.b16 %v2627
      %v3018 = vunpack.c.l.b16 %v2628
      %v3019 = vunpack.c.h.b16 %v2628
      %v3020 = vunpack.c.l.b16 %v2629
      %v3021 = vpack.c.b16 %v2976, %v2973
      %v3022 = vpack.c.b16 %v2977, %v2974
      %v3023 = vpack.c.b16 %v2978, %v2975
      %v3024 = vpack.c.b16 %v2982, %v2979
      %v3025 = vpack.c.b16 %v2983, %v2980
      %v3026 = vpack.c.b16 %v2984, %v2981
      %v3027 = vpack.c.b16 %v2988, %v2985
      %v3028 = vpack.c.b16 %v2989, %v2986
      %v3029 = vpack.c.b16 %v2990, %v2987
      %v3030 = vpack.c.b16 %v2994, %v2991
      %v3031 = vpack.c.b16 %v2995, %v2992
      %v3032 = vpack.c.b16 %v2996, %v2993
      %v3033 = vpack.c.b16 %v3000, %v2997
      %v3034 = vpack.c.b16 %v3001, %v2998
      %v3035 = vpack.c.b16 %v3002, %v2999
      %v3036 = vpack.c.b16 %v3006, %v3003
      %v3037 = vpack.c.b16 %v3007, %v3004
      %v3038 = vpack.c.b16 %v3008, %v3005
      %v3039 = vpack.c.b16 %v3012, %v3009
      %v3040 = vpack.c.b16 %v3013, %v3010
      %v3041 = vpack.c.b16 %v3014, %v3011
      %v3042 = vpack.c.b16 %v3018, %v3015
      %v3043 = vpack.c.b16 %v3019, %v3016
      %v3044 = vpack.c.b16 %v3020, %v3017
      %3069 = vmatprep.subr.bf16.mxu0 %v3043
      %3070 = vmatpush1.bf16.msra.mxu0 %v3042
      %3071 = vmatprep.subr.bf16.mxu0 %v3040
      %3072 = vmatpush1.bf16.msra.mxu0 %v3039
      %3073 = vmatprep.subr.bf16.mxu0 %v3037
      %3074 = vmatpush1.bf16.msra.mxu0 %v3036
      %3075 = vmatprep.subr.bf16.mxu0 %v3034
      %3076 = vmatpush1.bf16.msra.mxu0 %v3033
      %3077 = vmatprep.subr.bf16.mxu0 %v3031
      %3078 = vmatpush1.bf16.msra.mxu0 %v3030
      %3079 = vmatprep.subr.bf16.mxu0 %v3028
      %3080 = vmatpush1.bf16.msra.mxu0 %v3027
      %3081 = vmatprep.subr.bf16.mxu0 %v3025
      %3082 = vmatpush1.bf16.msra.mxu0 %v3024
      %3083 = vmatprep.subr.bf16.mxu0 %v3022
      %3084 = vmatpush1.bf16.msra.mxu0 %v3021
      %3085 = vmatprep.subr.bf16.mxu0 0
      %3086 = vmatpush2.bf16.msra.mxu0 0
      %3087 = vmatprep.subr.bf16.mxu0 0
      %3088 = vmatpush2.bf16.msra.mxu0 0
      %3089 = vmatprep.subr.bf16.mxu0 0
      %3090 = vmatpush2.bf16.msra.mxu0 0
      %3091 = vmatprep.subr.bf16.mxu0 0
      %3092 = vmatpush2.bf16.msra.mxu0 0
      %3093 = vmatprep.subr.bf16.mxu0 0
      %3094 = vmatpush2.bf16.msra.mxu0 0
      %3095 = vmatprep.subr.bf16.mxu0 0
      %3096 = vmatpush2.bf16.msra.mxu0 0
      %3097 = vmatprep.subr.bf16.mxu0 0
      %3098 = vmatpush2.bf16.msra.mxu0 0
      %3099 = vmatprep.subr.bf16.mxu0 0
      %3100 = vmatpush2.bf16.msra.mxu0 0
      %3101 = vmatprep.mubr.bf16.mxu0 0
      %3102 = vmatmul.mubr.bf16.gmra.mxu0 %v2924
      %v3103 = vpop.f32.mrf.mxu0
      %v3104 = vadd.f32 %v2929, %v3103
      %v3105 = vpop.f32.mrf.mxu0
      %v3106 = vadd.f32 %v2933, %v3105
      %v3107 = vpop.f32.mrf.mxu0
      %v3108 = vpop.f32.mrf.mxu0
      %3109 = vdwg.mxu0
      %3110 = vmatprep.subr.bf16.mxu0 0
      %3111 = vmatpush1.bf16.msra.mxu0 %v3044
      %3112 = vmatprep.subr.bf16.mxu0 0
      %3113 = vmatpush1.bf16.msra.mxu0 %v3041
      %3114 = vmatprep.subr.bf16.mxu0 0
      %3115 = vmatpush1.bf16.msra.mxu0 %v3038
      %3116 = vmatprep.subr.bf16.mxu0 0
      %3117 = vmatpush1.bf16.msra.mxu0 %v3035
      %3118 = vmatprep.subr.bf16.mxu0 0
      %3119 = vmatpush1.bf16.msra.mxu0 %v3032
      %3120 = vmatprep.subr.bf16.mxu0 0
      %3121 = vmatpush1.bf16.msra.mxu0 %v3029
      %3122 = vmatprep.subr.bf16.mxu0 0
      %3123 = vmatpush1.bf16.msra.mxu0 %v3026
      %3124 = vmatprep.subr.bf16.mxu0 0
      %3125 = vmatpush1.bf16.msra.mxu0 %v3023
      %3126 = vmatprep.subr.bf16.mxu0 0
      %3127 = vmatpush2.bf16.msra.mxu0 0
      %3128 = vmatprep.subr.bf16.mxu0 0
      %3129 = vmatpush2.bf16.msra.mxu0 0
      %3130 = vmatprep.subr.bf16.mxu0 0
      %3131 = vmatpush2.bf16.msra.mxu0 0
      %3132 = vmatprep.subr.bf16.mxu0 0
      %3133 = vmatpush2.bf16.msra.mxu0 0
      %3134 = vmatprep.subr.bf16.mxu0 0
      %3135 = vmatpush2.bf16.msra.mxu0 0
      %3136 = vmatprep.subr.bf16.mxu0 0
      %3137 = vmatpush2.bf16.msra.mxu0 0
      %3138 = vmatprep.subr.bf16.mxu0 0
      %3139 = vmatpush2.bf16.msra.mxu0 0
      %3140 = vmatprep.subr.bf16.mxu0 0
      %3141 = vmatpush2.bf16.msra.mxu0 0
      %3142 = vmatprep.mubr.bf16.mxu0 0
      %3143 = vmatmul.mubr.bf16.gmra.mxu0 %v2924
      %v3144 = vpop.f32.mrf.mxu0
      %v3145 = vadd.f32 %v2937, %v3144
      %v3146 = vpop.f32.mrf.mxu0
      %v3147 = vpop.f32.mrf.mxu0
      %v3148 = vpop.f32.mrf.mxu0
      %3149 = vdwg.mxu0
      %v3150 = vpack.c.bf16 %v2670, %v2670
      %v3152 = vlaneseq
      %v3153 = vshrl.u32 %v3152, 7
      %v3154 = vsub.s32 0, %v3153
      %v3155 = vrot.slane %v2663, %v3154
      %v3156 = vlaneseq
      %v3157 = vshrl.u32 %v3156, 7
      %v3158 = vsub.s32 1, %v3157
      %v3159 = vrot.slane %v2663, %v3158
      %v3160 = vlaneseq
      %v3161 = vshrl.u32 %v3160, 7
      %v3162 = vsub.s32 2, %v3161
      %v3163 = vrot.slane %v2663, %v3162
      %v3199 = vunpack.c.l.b16 %v2630
      %v3200 = vunpack.c.h.b16 %v2630
      %v3201 = vunpack.c.l.b16 %v2631
      %v3202 = vunpack.c.l.b16 %v2632
      %v3203 = vunpack.c.h.b16 %v2632
      %v3204 = vunpack.c.l.b16 %v2633
      %v3205 = vunpack.c.l.b16 %v2634
      %v3206 = vunpack.c.h.b16 %v2634
      %v3207 = vunpack.c.l.b16 %v2635
      %v3208 = vunpack.c.l.b16 %v2636
      %v3209 = vunpack.c.h.b16 %v2636
      %v3210 = vunpack.c.l.b16 %v2637
      %v3211 = vunpack.c.l.b16 %v2638
      %v3212 = vunpack.c.h.b16 %v2638
      %v3213 = vunpack.c.l.b16 %v2639
      %v3214 = vunpack.c.l.b16 %v2640
      %v3215 = vunpack.c.h.b16 %v2640
      %v3216 = vunpack.c.l.b16 %v2641
      %v3217 = vunpack.c.l.b16 %v2642
      %v3218 = vunpack.c.h.b16 %v2642
      %v3219 = vunpack.c.l.b16 %v2643
      %v3220 = vunpack.c.l.b16 %v2644
      %v3221 = vunpack.c.h.b16 %v2644
      %v3222 = vunpack.c.l.b16 %v2645
      %v3223 = vunpack.c.l.b16 %v2646
      %v3224 = vunpack.c.h.b16 %v2646
      %v3225 = vunpack.c.l.b16 %v2647
      %v3226 = vunpack.c.l.b16 %v2648
      %v3227 = vunpack.c.h.b16 %v2648
      %v3228 = vunpack.c.l.b16 %v2649
      %v3229 = vunpack.c.l.b16 %v2650
      %v3230 = vunpack.c.h.b16 %v2650
      %v3231 = vunpack.c.l.b16 %v2651
      %v3232 = vunpack.c.l.b16 %v2652
      %v3233 = vunpack.c.h.b16 %v2652
      %v3234 = vunpack.c.l.b16 %v2653
      %v3235 = vunpack.c.l.b16 %v2654
      %v3236 = vunpack.c.h.b16 %v2654
      %v3237 = vunpack.c.l.b16 %v2655
      %v3238 = vunpack.c.l.b16 %v2656
      %v3239 = vunpack.c.h.b16 %v2656
      %v3240 = vunpack.c.l.b16 %v2657
      %v3241 = vunpack.c.l.b16 %v2658
      %v3242 = vunpack.c.h.b16 %v2658
      %v3243 = vunpack.c.l.b16 %v2659
      %v3244 = vunpack.c.l.b16 %v2660
      %v3245 = vunpack.c.h.b16 %v2660
      %v3246 = vunpack.c.l.b16 %v2661
      %v3247 = vpack.c.b16 %v3202, %v3199
      %v3248 = vpack.c.b16 %v3203, %v3200
      %v3249 = vpack.c.b16 %v3204, %v3201
      %v3250 = vpack.c.b16 %v3208, %v3205
      %v3251 = vpack.c.b16 %v3209, %v3206
      %v3252 = vpack.c.b16 %v3210, %v3207
      %v3253 = vpack.c.b16 %v3214, %v3211
      %v3254 = vpack.c.b16 %v3215, %v3212
      %v3255 = vpack.c.b16 %v3216, %v3213
      %v3256 = vpack.c.b16 %v3220, %v3217
      %v3257 = vpack.c.b16 %v3221, %v3218
      %v3258 = vpack.c.b16 %v3222, %v3219
      %v3259 = vpack.c.b16 %v3226, %v3223
      %v3260 = vpack.c.b16 %v3227, %v3224
      %v3261 = vpack.c.b16 %v3228, %v3225
      %v3262 = vpack.c.b16 %v3232, %v3229
      %v3263 = vpack.c.b16 %v3233, %v3230
      %v3264 = vpack.c.b16 %v3234, %v3231
      %v3265 = vpack.c.b16 %v3238, %v3235
      %v3266 = vpack.c.b16 %v3239, %v3236
      %v3267 = vpack.c.b16 %v3240, %v3237
      %v3268 = vpack.c.b16 %v3244, %v3241
      %v3269 = vpack.c.b16 %v3245, %v3242
      %v3270 = vpack.c.b16 %v3246, %v3243
      %3295 = vmatprep.subr.bf16.mxu0 %v3269
      %3296 = vmatpush1.bf16.msra.mxu0 %v3268
      %3297 = vmatprep.subr.bf16.mxu0 %v3266
      %3298 = vmatpush1.bf16.msra.mxu0 %v3265
      %3299 = vmatprep.subr.bf16.mxu0 %v3263
      %3300 = vmatpush1.bf16.msra.mxu0 %v3262
      %3301 = vmatprep.subr.bf16.mxu0 %v3260
      %3302 = vmatpush1.bf16.msra.mxu0 %v3259
      %3303 = vmatprep.subr.bf16.mxu0 %v3257
      %3304 = vmatpush1.bf16.msra.mxu0 %v3256
      %3305 = vmatprep.subr.bf16.mxu0 %v3254
      %3306 = vmatpush1.bf16.msra.mxu0 %v3253
      %3307 = vmatprep.subr.bf16.mxu0 %v3251
      %3308 = vmatpush1.bf16.msra.mxu0 %v3250
      %3309 = vmatprep.subr.bf16.mxu0 %v3248
      %3310 = vmatpush1.bf16.msra.mxu0 %v3247
      %3311 = vmatprep.subr.bf16.mxu0 0
      %3312 = vmatpush2.bf16.msra.mxu0 0
      %3313 = vmatprep.subr.bf16.mxu0 0
      %3314 = vmatpush2.bf16.msra.mxu0 0
      %3315 = vmatprep.subr.bf16.mxu0 0
      %3316 = vmatpush2.bf16.msra.mxu0 0
      %3317 = vmatprep.subr.bf16.mxu0 0
      %3318 = vmatpush2.bf16.msra.mxu0 0
      %3319 = vmatprep.subr.bf16.mxu0 0
      %3320 = vmatpush2.bf16.msra.mxu0 0
      %3321 = vmatprep.subr.bf16.mxu0 0
      %3322 = vmatpush2.bf16.msra.mxu0 0
      %3323 = vmatprep.subr.bf16.mxu0 0
      %3324 = vmatpush2.bf16.msra.mxu0 0
      %3325 = vmatprep.subr.bf16.mxu0 0
      %3326 = vmatpush2.bf16.msra.mxu0 0
      %3327 = vmatprep.mubr.bf16.mxu0 0
      %3328 = vmatmul.mubr.bf16.gmra.mxu0 %v3150
      %v3329 = vpop.f32.mrf.mxu0
      %v3330 = vadd.f32 %v3155, %v3329
      %v3331 = vpop.f32.mrf.mxu0
      %v3332 = vadd.f32 %v3159, %v3331
      %v3333 = vpop.f32.mrf.mxu0
      %v3334 = vpop.f32.mrf.mxu0
      %3335 = vdwg.mxu0
      %3336 = vmatprep.subr.bf16.mxu0 0
      %3337 = vmatpush1.bf16.msra.mxu0 %v3270
      %3338 = vmatprep.subr.bf16.mxu0 0
      %3339 = vmatpush1.bf16.msra.mxu0 %v3267
      %3340 = vmatprep.subr.bf16.mxu0 0
      %3341 = vmatpush1.bf16.msra.mxu0 %v3264
      %3342 = vmatprep.subr.bf16.mxu0 0
      %3343 = vmatpush1.bf16.msra.mxu0 %v3261
      %3344 = vmatprep.subr.bf16.mxu0 0
      %3345 = vmatpush1.bf16.msra.mxu0 %v3258
      %3346 = vmatprep.subr.bf16.mxu0 0
      %3347 = vmatpush1.bf16.msra.mxu0 %v3255
      %3348 = vmatprep.subr.bf16.mxu0 0
      %3349 = vmatpush1.bf16.msra.mxu0 %v3252
      %3350 = vmatprep.subr.bf16.mxu0 0
      %3351 = vmatpush1.bf16.msra.mxu0 %v3249
      %3352 = vmatprep.subr.bf16.mxu0 0
      %3353 = vmatpush2.bf16.msra.mxu0 0
      %3354 = vmatprep.subr.bf16.mxu0 0
      %3355 = vmatpush2.bf16.msra.mxu0 0
      %3356 = vmatprep.subr.bf16.mxu0 0
      %3357 = vmatpush2.bf16.msra.mxu0 0
      %3358 = vmatprep.subr.bf16.mxu0 0
      %3359 = vmatpush2.bf16.msra.mxu0 0
      %3360 = vmatprep.subr.bf16.mxu0 0
      %3361 = vmatpush2.bf16.msra.mxu0 0
      %3362 = vmatprep.subr.bf16.mxu0 0
      %3363 = vmatpush2.bf16.msra.mxu0 0
      %3364 = vmatprep.subr.bf16.mxu0 0
      %3365 = vmatpush2.bf16.msra.mxu0 0
      %3366 = vmatprep.subr.bf16.mxu0 0
      %3367 = vmatpush2.bf16.msra.mxu0 0
      %3368 = vmatprep.mubr.bf16.mxu0 0
      %3369 = vmatmul.mubr.bf16.gmra.mxu0 %v3150
      %v3370 = vpop.f32.mrf.mxu0
      %v3371 = vadd.f32 %v3163, %v3370
      %v3372 = vpop.f32.mrf.mxu0
      %v3373 = vpop.f32.mrf.mxu0
      %v3374 = vpop.f32.mrf.mxu0
      %3375 = vdwg.mxu0
      %v3376 = vadd.f32 %v3104, %v3330
      %v3377 = vxor.u32 %v3376, 2147483648
      %v3378 = vmul.f32 %v3377, 1.442695
      %v3379 = vpow.pop %v3378
      %v3380 = vadd.f32 %v3379, 1.0
      %v3381 = vrcp.pop %v3380
      %v3382 = vmul.f32 1.0, %v3381
      %v3383 = vadd.f32 %v3106, %v3332
      %v3384 = vxor.u32 %v3383, 2147483648
      %v3385 = vmul.f32 %v3384, 1.442695
      %v3386 = vpow.pop %v3385
      %v3387 = vadd.f32 %v3386, 1.0
      %v3388 = vrcp.pop %v3387
      %v3389 = vmul.f32 1.0, %v3388
      %v3390 = vmul.f32 %v3382, %v3371
      %v3391 = vadd.f32 %v3145, %v3390
      %v3392 = vtanh.pop %v3391
      %v3393 = vsub.f32 1.0, %v3389
      %v3394 = vmul.f32 %v3393, %v3392
      %v3395 = vmul.f32 %v3389, %v2670
      %v3396 = vadd.f32 %v3394, %v3395
      %v3397 = vmax.f32 %v3396, 0.0
    $region262: #{tpu_custom_call.1} parent=1 // loop_footer
      %s2669 = sadd.s32 1, %s2665
    $region263: #{tpu_custom_call.1} parent=1 // loop_footer_branch
      %2664 = sbr.rel target = $region259
    $region264: #{tpu_custom_call.1} parent=1 // loop_exit
      _
    %v3398 = vld [vmem:[%s65] sm:$0xf]
    %v3399 = vld [vmem:[%s65 + $0x4] sm:$0xf]
    %v3400 = vld [vmem:[%s65 + $0x8] sm:$0xf]
    %v3401 = vld [vmem:[%s65 + $0xc] sm:$0xf]
    %v3402 = vld [vmem:[%s65 + $0x10] sm:$0xf]
    %v3403 = vld [vmem:[%s65 + $0x14] sm:$0xf]
    %v3404 = vld [vmem:[%s65 + $0x18] sm:$0xf]
    %v3405 = vld [vmem:[%s65 + $0x1c] sm:$0xf]
    %v3406 = vld [vmem:[%s65 + $0x20] sm:$0xf]
    %v3407 = vld [vmem:[%s65 + $0x24] sm:$0xf]
    %v3408 = vld [vmem:[%s65 + $0x28] sm:$0xf]
    %v3409 = vld [vmem:[%s65 + $0x2c] sm:$0xf]
    %v3410 = vld [vmem:[%s65 + $0x30] sm:$0xf]
    %v3411 = vld [vmem:[%s65 + $0x34] sm:$0xf]
    %v3412 = vld [vmem:[%s65 + $0x38] sm:$0xf]
    %v3413 = vld [vmem:[%s65 + $0x3c] sm:$0xf]
    %v3414 = vpack.c.bf16 %v2670, %v2670
    %v3415 = vld [vmem:[%s67] sm:$0x1]
    %v3417 = vlaneseq
    %v3418 = vshrl.u32 %v3417, 7
    %v3419 = vsub.s32 0, %v3418
    %v3420 = vrot.slane %v3415, %v3419
    %v3438 = vunpack.c.l.b16 %v3398
    %v3439 = vunpack.c.l.b16 %v3399
    %v3440 = vunpack.c.l.b16 %v3400
    %v3441 = vunpack.c.l.b16 %v3401
    %v3442 = vunpack.c.l.b16 %v3402
    %v3443 = vunpack.c.l.b16 %v3403
    %v3444 = vunpack.c.l.b16 %v3404
    %v3445 = vunpack.c.l.b16 %v3405
    %v3446 = vunpack.c.l.b16 %v3406
    %v3447 = vunpack.c.l.b16 %v3407
    %v3448 = vunpack.c.l.b16 %v3408
    %v3449 = vunpack.c.l.b16 %v3409
    %v3450 = vunpack.c.l.b16 %v3410
    %v3451 = vunpack.c.l.b16 %v3411
    %v3452 = vunpack.c.l.b16 %v3412
    %v3453 = vunpack.c.l.b16 %v3413
    %v3454 = vpack.c.b16 %v3439, %v3438
    %v3455 = vpack.c.b16 %v3441, %v3440
    %v3456 = vpack.c.b16 %v3443, %v3442
    %v3457 = vpack.c.b16 %v3445, %v3444
    %v3458 = vpack.c.b16 %v3447, %v3446
    %v3459 = vpack.c.b16 %v3449, %v3448
    %v3460 = vpack.c.b16 %v3451, %v3450
    %v3461 = vpack.c.b16 %v3453, %v3452
    %3470 = vmatprep.subr.bf16.mxu0 0
    %3471 = vmatpush1.bf16.msra.mxu0 %v3461
    %3472 = vmatprep.subr.bf16.mxu0 0
    %3473 = vmatpush1.bf16.msra.mxu0 %v3460
    %3474 = vmatprep.subr.bf16.mxu0 0
    %3475 = vmatpush1.bf16.msra.mxu0 %v3459
    %3476 = vmatprep.subr.bf16.mxu0 0
    %3477 = vmatpush1.bf16.msra.mxu0 %v3458
    %3478 = vmatprep.subr.bf16.mxu0 0
    %3479 = vmatpush1.bf16.msra.mxu0 %v3457
    %3480 = vmatprep.subr.bf16.mxu0 0
    %3481 = vmatpush1.bf16.msra.mxu0 %v3456
    %3482 = vmatprep.subr.bf16.mxu0 0
    %3483 = vmatpush1.bf16.msra.mxu0 %v3455
    %3484 = vmatprep.subr.bf16.mxu0 0
    %3485 = vmatpush1.bf16.msra.mxu0 %v3454
    %3486 = vmatprep.subr.bf16.mxu0 0
    %3487 = vmatpush2.bf16.msra.mxu0 0
    %3488 = vmatprep.subr.bf16.mxu0 0
    %3489 = vmatpush2.bf16.msra.mxu0 0
    %3490 = vmatprep.subr.bf16.mxu0 0
    %3491 = vmatpush2.bf16.msra.mxu0 0
    %3492 = vmatprep.subr.bf16.mxu0 0
    %3493 = vmatpush2.bf16.msra.mxu0 0
    %3494 = vmatprep.subr.bf16.mxu0 0
    %3495 = vmatpush2.bf16.msra.mxu0 0
    %3496 = vmatprep.subr.bf16.mxu0 0
    %3497 = vmatpush2.bf16.msra.mxu0 0
    %3498 = vmatprep.subr.bf16.mxu0 0
    %3499 = vmatpush2.bf16.msra.mxu0 0
    %3500 = vmatprep.subr.bf16.mxu0 0
    %3501 = vmatpush2.bf16.msra.mxu0 0
    %3502 = vmatprep.mubr.bf16.mxu0 0
    %3503 = vmatmul.mubr.bf16.gmra.mxu0 %v3414
    %v3504 = vpop.f32.mrf.mxu0
    %v3505 = vadd.f32 %v3420, %v3504
    %v3506 = vpop.f32.mrf.mxu0
    %v3507 = vpop.f32.mrf.mxu0
    %v3508 = vpop.f32.mrf.mxu0
    %3509 = vdwg.mxu0
    %vm3510 = vcmask 58368
    %3511 = vst.msk [vmem:[#allocation49] sm:$0x3] %vm3510, %v3505
    // Predicated region
    $region265: #{tpu_custom_call.1} parent=1 // pred_check
      _
    $region266: #{tpu_custom_call.1} parent=1 // pred_check_branch
      %3513 = sbr.rel (0) target = $region268
    $region267: #{tpu_custom_call.1} parent=1 // pred_region
      %s3515 = ssub.s32 32, 32
      %3516 = vsyncadd [#allocation4], %s3515
      %s3518 = sshll.u32 [#allocation49], 4
      %s3519 = int_to_ptr.vmem [resolvable:$true] %s3518
      %3521 = dma.vmem_to_hbm [thread:$0]  %s3519, 32, %s69, [#allocation4]
    $region268: #{tpu_custom_call.1} parent=1 // pred_fallthru
      _
    // Predicated region
    $region269: #{tpu_custom_call.1} parent=1 // pred_check
      _
    $region270: #{tpu_custom_call.1} parent=1 // pred_check_branch
      %3523 = sbr.rel (0) target = $region272
    $region271: #{tpu_custom_call.1} parent=1 // pred_region
      %3524 = dma.done [#allocation4], 32
    $region272: #{tpu_custom_call.1} parent=1 // pred_fallthru
      _
    %3525 = vsyncpa [#allocation3], 1
    %3526 = vsyncpa [#allocation6], 1
    %3527 = vsyncpa [#allocation9], 1
    %3528 = vsyncpa [#allocation12], 1
    %3529 = vsyncpa [#allocation15], 1
    %3530 = vsyncpa [#allocation18], 1
    %3531 = vsyncpa [#allocation21], 1
    %3532 = vsyncpa [#allocation24], 1
    %3533 = vsyncpa [#allocation27], 1
    %3534 = vsyncpa [#allocation30], 1
    %3535 = vsyncpa [#allocation33], 1
    %3536 = vsyncpa [#allocation36], 1
    %3537 = vsyncpa [#allocation39], 1
    %3538 = vsyncpa [#allocation42], 1
    %3539 = vsyncpa [#allocation45], 1
    %3540 = vsyncpa [#allocation48], 1
    %3541 = vsyncpa [#allocation4], 1

</llo_original>
